<compile_context>
chip_gen: v7x
topology: tpu7x:2x2x1
jax: 0.10.0
libtpu: 0.0.40
codegen_flags: <defaults>
</compile_context>

<pallas_src>
import functools

import jax
import jax.numpy as jnp
import numpy as np
from jax.experimental import pallas as pl
from jax.experimental.pallas import tpu as pltpu


def _silu(x):
    return x * jax.nn.sigmoid(x)


# ----------------------------- kernel ----------------------------------------
def _psa_kernel(x_ref,
                w_cv1_ref, b_cv1_ref,
                w_qkv_ref, b_qkv_ref,
                pe_tab_ref,
                w_proj_ref, b_proj_ref,
                w_f1_ref, b_f1_ref, w_f2_ref, b_f2_ref,
                w_cv2a_ref, w_cv2b_ref, b_cv2_ref,
                o_ref, *, W):
    bb, C1, N = x_ref.shape
    M = bb * N
    bf16 = jnp.bfloat16
    c = w_cv1_ref.shape[1] // 2
    num_heads = w_qkv_ref.shape[0]
    head_dim = w_proj_ref.shape[1]
    key_dim = (w_qkv_ref.shape[2] - head_dim) // 2

    # NCHW block -> (M, C1) rows with one in-kernel XLU transpose (replaces the
    # two host-side HBM transpose round trips).
    x = x_ref[...]                                           # (bb, C1, N) f32
    x = jnp.transpose(x, (0, 2, 1)).reshape(M, C1).astype(bf16)

    # cv1 (1x1 conv + folded BN + SiLU) as a single 2c-wide MXU pass, then
    # lane-slice the a|b halves.
    y = _silu(jnp.dot(x, w_cv1_ref[...], preferred_element_type=jnp.float32)
              + b_cv1_ref[...])                              # (M, 2c) f32
    a = y[:, :c]
    b_act = y[:, c:]

    # ------------- Attention(b) + 3x3 depthwise positional encoding ----------
    b_bf = b_act.astype(bf16)
    proj_acc = jnp.zeros((M, c), jnp.float32)
    for hh in range(num_heads):
        # fused per-head q|k|v: one (c, 2*key_dim+head_dim)-column matmul.
        # Softmax scale already folded into the q columns on the host.
        qkv = (jnp.dot(b_bf, w_qkv_ref[hh], preferred_element_type=jnp.float32)
               + b_qkv_ref[hh])                              # (M, per_head) f32
        q = qkv[:, :key_dim].astype(bf16).reshape(bb, N, key_dim)
        k = qkv[:, key_dim:2 * key_dim].astype(bf16).reshape(bb, N, key_dim)
        v = qkv[:, 2 * key_dim:].reshape(bb, N, head_dim)    # f32 (PE input)

        # batched attention (per-image softmax), no per-image Python loop.
        s = jnp.einsum('bnd,bmd->bnm', q, k,
                       preferred_element_type=jnp.float32)
        s = s - jnp.max(s, axis=-1, keepdims=True)
        p = jnp.exp(s)
        attn = p * pl.reciprocal(jnp.sum(p, axis=-1, keepdims=True),
                                 approx=True)
        o_h = jnp.einsum('bnm,bmd->bnd', attn.astype(bf16), v.astype(bf16),
                         preferred_element_type=jnp.float32)  # (bb, N, hd)

        # 3x3 depthwise conv (padding=1) on v via sublane rolls of the
        # flattened spatial axis; mask*weight pre-fused into pe_tab on host.
        pe = jnp.zeros((bb, N, head_dim), jnp.float32)
        tap = 0
        for dy in (-1, 0, 1):
            for dx in (-1, 0, 1):
                shift = dy * W + dx
                shifted = v if shift == 0 else pltpu.roll(v, (-shift) % N, 1)
                pe = pe + shifted * pe_tab_ref[hh, tap]
                tap += 1

        ohpe = (o_h + pe).reshape(M, head_dim)
        # per-head proj row-blocks summed => no lane concat of head outputs.
        proj_acc = proj_acc + jnp.dot(ohpe.astype(bf16), w_proj_ref[hh],
                                      preferred_element_type=jnp.float32)

    # b_proj already carries the folded pe-bias contribution (b_pe @ w_proj).
    b_act = b_act + proj_acc + b_proj_ref[...]

    # ------------- FFN --------------------------------------------------------
    f = _silu(jnp.dot(b_act.astype(bf16), w_f1_ref[...],
                      preferred_element_type=jnp.float32) + b_f1_ref[...])
    b_act = b_act + jnp.dot(f.astype(bf16), w_f2_ref[...],
                            preferred_element_type=jnp.float32) + b_f2_ref[...]

    # ------------- cv2 on concat(a, b): split weights, no lane concat ---------
    out = _silu(jnp.dot(a.astype(bf16), w_cv2a_ref[...],
                        preferred_element_type=jnp.float32)
                + jnp.dot(b_act.astype(bf16), w_cv2b_ref[...],
                          preferred_element_type=jnp.float32)
                + b_cv2_ref[...])                             # (M, C1) f32

    # back to NCHW layout with one XLU transpose and store.
    # TODO(synk): emit bf16 here if the downstream layer consumes bf16.
    o_ref[...] = jnp.transpose(out.reshape(bb, N, C1), (0, 2, 1)).astype(o_ref.dtype)


# ----------------------------- host-side prep ---------------------------------
_KARG_NAMES = ("w_cv1", "b_cv1", "w_qkv", "b_qkv", "pe_tab",
               "w_proj", "b_proj", "w_f1", "b_f1", "w_f2", "b_f2",
               "w_cv2a", "w_cv2b", "b_cv2")


def _pe_masks_np(H, W):
    """(9, N) f32 validity masks for the 3x3 zero-padded depthwise conv."""
    N = H * W
    ii = np.arange(N) // W
    jj = np.arange(N) % W
    m = np.zeros((9, N), np.float32)
    tap = 0
    for dy in (-1, 0, 1):
        for dx in (-1, 0, 1):
            valid = ((ii + dy >= 0) & (ii + dy < H) &
                     (jj + dx >= 0) & (jj + dx < W))
            m[tap] = valid.astype(np.float32)
            tap += 1
    return m


def prepare_psa_weights(P, *, H, W, c, num_heads, key_dim, head_dim, scale):
    """One-time host prep: fold softmax scale into q, fold b_pe through proj,
    build the lane-dense fused PE table, and cast MXU operands to bf16 exactly
    once from the f32 masters (no double rounding)."""
    f32, bf16 = jnp.float32, jnp.bfloat16
    N = H * W
    K = {}

    K["w_cv1"] = jnp.asarray(P["w_cv1"], f32).astype(bf16)          # (C1, 2c)
    K["b_cv1"] = jnp.asarray(P["b_cv1"], f32)

    per_head = 2 * key_dim + head_dim
    w_qkv = np.asarray(P["w_qkv"], np.float32)
    b_qkv = np.asarray(P["b_qkv"], np.float32)
    w_list, b_list = [], []
    for hh in range(num_heads):
        base = hh * per_head
        w_h = w_qkv[:, base:base + per_head].copy()
        b_h = b_qkv[:, base:base + per_head].copy()
        w_h[:, :key_dim] *= scale                  # fold softmax scale into q
        b_h[:, :key_dim] *= scale
        w_list.append(w_h)
        b_list.append(b_h)
    K["w_qkv"] = jnp.asarray(np.stack(w_list), bf16)   # (heads, c, per_head)
    K["b_qkv"] = jnp.asarray(np.stack(b_list), np.float32)

    # lane-dense fused PE table: pe_tab[h, tap, n, d] = mask[tap, n]*w_pe[tap, d]
    masks = _pe_masks_np(H, W)                                       # (9, N)
    w_pe = np.asarray(P["w_pe"], np.float32)                         # (9, c)
    pe_tab = np.zeros((num_heads, 9, N, head_dim), np.float32)
    for hh in range(num_heads):
        wh = w_pe[:, hh * head_dim:(hh + 1) * head_dim]              # (9, hd)
        pe_tab[hh] = masks[:, :, None] * wh[:, None, :]
    K["pe_tab"] = jnp.asarray(pe_tab)

    w_proj = np.asarray(P["w_proj"], np.float32)                     # (c, c)
    K["w_proj"] = jnp.asarray(
        np.stack([w_proj[hh * head_dim:(hh + 1) * head_dim, :]
                  for hh in range(num_heads)]), bf16)
    # fold the depthwise-pe bias through proj into the proj bias
    K["b_proj"] = jnp.asarray(np.asarray(P["b_proj"], np.float32)
                              + np.asarray(P["b_pe"], np.float32) @ w_proj)

    K["w_f1"] = jnp.asarray(P["w_f1"], f32).astype(bf16)
    K["b_f1"] = jnp.asarray(P["b_f1"], f32)
    K["w_f2"] = jnp.asarray(P["w_f2"], f32).astype(bf16)
    K["b_f2"] = jnp.asarray(P["b_f2"], f32)
    w_cv2 = jnp.asarray(P["w_cv2"], f32)
    K["w_cv2a"] = w_cv2[:c, :].astype(bf16)
    K["w_cv2b"] = w_cv2[c:, :].astype(bf16)
    K["b_cv2"] = jnp.asarray(P["b_cv2"], f32)
    return tuple(K[n] for n in _KARG_NAMES)


def _num_tensorcores():
    """Best-effort TensorCore-per-chip count (v7x = 2, v5e/v6e = 1)."""
    try:
        info = pltpu.get_tpu_info()
        for attr in ("num_cores", "core_count", "num_tensorcores",
                     "tensorcore_count", "cores_per_chip"):
            n = getattr(info, attr, None)
            if n:
                return int(n)
    except Exception:
        pass
    try:
        d = jax.devices()[0]
        n = getattr(d, "num_cores", None)
        if n:
            return int(n)
        if "v7" in d.device_kind.lower():
            return 2
    except Exception:
        pass
    return 1


def _pick_batch_block(B):
    # Multi-TC chips: one grid step per TensorCore (batch axis megacore-shards
    # via dimension_semantics=("parallel",)).  Single-TC: whole batch in one
    # step (bigger matmul M, no per-step pipeline overhead).
    nc = _num_tensorcores()
    if nc <= 1 or B <= 1:
        return B
    if B % nc == 0:
        return B // nc
    return 1      # non-divisible batch: fall back to one image / step (safe)


# ----------------------------- forward ----------------------------------------
def _psa_forward_impl(x_nchw, weights):
    B, C1, H, W = x_nchw.shape
    N = H * W
    assert N % 8 == 0, "pltpu.roll over the flat spatial axis needs N % 8 == 0"
    x = x_nchw.reshape(B, C1, N)          # NCHW kept; reshape is metadata only

    bb = _pick_batch_block(B)
    grid = (B // bb,)

    def full_spec(arr):
        nd = arr.ndim
        # TODO(synk): pipeline_mode=pl.Buffered(1) would single-buffer these
        # grid-invariant operands once c/N scale to real YOLO feature maps.
        return pl.BlockSpec(arr.shape, lambda i, _nd=nd: (0,) * _nd)

    kernel = functools.partial(_psa_kernel, W=W)
    out = pl.pallas_call(
        kernel,
        out_shape=jax.ShapeDtypeStruct((B, C1, N), x_nchw.dtype),
        grid=grid,
        in_specs=[pl.BlockSpec((bb, C1, N), lambda i: (i, 0, 0))]
                 + [full_spec(w) for w in weights],
        out_specs=pl.BlockSpec((bb, C1, N), lambda i: (i, 0, 0)),
        compiler_params=pltpu.CompilerParams(
            dimension_semantics=("parallel",),
            vmem_limit_bytes=32 * 1024 * 1024),
    )(x, *weights)
    return out.reshape(B, C1, H, W)


psa_forward = jax.jit(_psa_forward_impl)


# ----------------- deterministic parameter construction (Conv+BN folded) ------
def _fold_conv_bn(key, cin, cout, k=1, groups=1, eps=1e-3):
    k1, k2, k3, k4, k5 = jax.random.split(key, 5)
    w = jax.random.normal(k1, (cout, cin // groups, k, k), jnp.float32) * 0.05
    gamma = jax.random.uniform(k2, (cout,), jnp.float32, 0.5, 1.5)
    beta = jax.random.normal(k3, (cout,), jnp.float32) * 0.1
    mean = jax.random.normal(k4, (cout,), jnp.float32) * 0.1
    var = jax.random.uniform(k5, (cout,), jnp.float32, 0.5, 1.5)
    s = gamma / jnp.sqrt(var + eps)
    w_eff = w * s[:, None, None, None]
    b_eff = beta - mean * s
    return w_eff, b_eff


def make_params(key, C1, c, num_heads, key_dim, head_dim):
    """f32 master parameters (bf16 cast happens once in prepare_psa_weights)."""
    h = c + 2 * key_dim * num_heads
    ks = jax.random.split(key, 7)

    def mat(weff):      # (cout, cin, 1, 1) -> (cin, cout)
        return weff[:, :, 0, 0].T

    P = {}
    w, b = _fold_conv_bn(ks[0], C1, 2 * c, 1);  P["w_cv1"], P["b_cv1"] = mat(w), b[None, :]
    w, b = _fold_conv_bn(ks[1], c, h, 1);       P["w_qkv"], P["b_qkv"] = mat(w), b[None, :]
    w, b = _fold_conv_bn(ks[2], c, c, 3, groups=c)                      # depthwise pe
    P["w_pe"] = w[:, 0, :, :].transpose(1, 2, 0).reshape(9, c)
    P["b_pe"] = b[None, :]
    w, b = _fold_conv_bn(ks[3], c, c, 1);       P["w_proj"], P["b_proj"] = mat(w), b[None, :]
    w, b = _fold_conv_bn(ks[4], c, 2 * c, 1);   P["w_f1"], P["b_f1"] = mat(w), b[None, :]
    w, b = _fold_conv_bn(ks[5], 2 * c, c, 1);   P["w_f2"], P["b_f2"] = mat(w), b[None, :]
    w, b = _fold_conv_bn(ks[6], 2 * c, C1, 1);  P["w_cv2"], P["b_cv2"] = mat(w), b[None, :]
    return P


# ----------------- pure-JAX f32 reference (mirrors PyTorch semantics) ---------
def psa_reference(x_nchw, P, *, c, num_heads, key_dim, head_dim, scale):
    f32 = jnp.float32
    B, C1, H, W = x_nchw.shape
    N = H * W
    x = jnp.transpose(x_nchw, (0, 2, 3, 1)).reshape(B, N, C1)
    y = _silu(x @ P["w_cv1"].astype(f32) + P["b_cv1"])
    a, b = y[..., :c], y[..., c:]

    qkv = b @ P["w_qkv"].astype(f32) + P["b_qkv"]
    per_head = 2 * key_dim + head_dim
    outs, vs = [], []
    for hh in range(num_heads):
        base = hh * per_head
        q = qkv[..., base:base + key_dim]
        k = qkv[..., base + key_dim:base + 2 * key_dim]
        v = qkv[..., base + 2 * key_dim:base + per_head]
        s = jnp.einsum("bnd,bmd->bnm", q, k) * scale
        attn = jax.nn.softmax(s, axis=-1)
        outs.append(jnp.einsum("bnm,bmd->bnd", attn, v))
        vs.append(v)
    o = jnp.concatenate(outs, -1)
    v_img = jnp.concatenate(vs, -1).reshape(B, H, W, c)

    vp = jnp.pad(v_img, ((0, 0), (1, 1), (1, 1), (0, 0)))
    w33 = P["w_pe"].reshape(3, 3, c)
    pe = sum(vp[:, ky:ky + H, kx:kx + W, :] * w33[ky, kx]
             for ky in range(3) for kx in range(3))
    pe = pe.reshape(B, N, c) + P["b_pe"]

    att = (o + pe) @ P["w_proj"].astype(f32) + P["b_proj"]
    b = b + att
    f = _silu(b @ P["w_f1"].astype(f32) + P["b_f1"])
    b = b + (f @ P["w_f2"].astype(f32) + P["b_f2"])
    out = _silu(jnp.concatenate([a, b], -1) @ P["w_cv2"].astype(f32) + P["b_cv2"])
    return out.reshape(B, H, W, C1).transpose(0, 3, 1, 2)


if __name__ == "__main__":
    # PSA(c1=128, c2=128, e=0.5): c = 64, num_heads = c // 64 = 1,
    # head_dim = 64, key_dim = 32.  Small spatial: 8x8.
    B, C1, H, W = 2, 128, 8, 8
    c = C1 // 2
    num_heads = max(1, c // 64)
    head_dim = c // num_heads
    key_dim = head_dim // 2
    scale = key_dim ** -0.5

    root = jax.random.PRNGKey(0)
    kp, kx = jax.random.split(root)
    P = make_params(kp, C1, c, num_heads, key_dim, head_dim)
    x = jax.random.normal(kx, (B, C1, H, W), jnp.float32)

    # one-time weight prep, hoisted out of the forward pass.
    weights = prepare_psa_weights(P, H=H, W=W, c=c, num_heads=num_heads,
                                  key_dim=key_dim, head_dim=head_dim,
                                  scale=scale)

    out = psa_forward(x, weights)
    out = jax.block_until_ready(out)

    ref = psa_reference(x, P, c=c, num_heads=num_heads, key_dim=key_dim,
                        head_dim=head_dim, scale=scale)
    # bf16 MXU operands + approx reciprocal vs f32 reference -> relaxed tol.
    np.testing.assert_allclose(np.asarray(out), np.asarray(ref),
                               rtol=2e-2, atol=2e-2)
    print("KERNEL_OK")
</pallas_src>

<mosaic_0001>
module attributes {stable_mosaic.version = 11 : i64} {
  func.func @_psa_kernel(%arg0: i32, %arg1: memref<2x128x64xf32, #tpu.memory_space<vmem>>, %arg2: memref<128x128xbf16, #tpu.memory_space<vmem>>, %arg3: memref<1x128xf32, #tpu.memory_space<vmem>>, %arg4: memref<1x64x128xbf16, #tpu.memory_space<vmem>>, %arg5: memref<1x1x128xf32, #tpu.memory_space<vmem>>, %arg6: memref<1x9x64x64xf32, #tpu.memory_space<vmem>>, %arg7: memref<1x64x64xbf16, #tpu.memory_space<vmem>>, %arg8: memref<1x64xf32, #tpu.memory_space<vmem>>, %arg9: memref<64x128xbf16, #tpu.memory_space<vmem>>, %arg10: memref<1x128xf32, #tpu.memory_space<vmem>>, %arg11: memref<128x64xbf16, #tpu.memory_space<vmem>>, %arg12: memref<1x64xf32, #tpu.memory_space<vmem>>, %arg13: memref<64x128xbf16, #tpu.memory_space<vmem>>, %arg14: memref<64x128xbf16, #tpu.memory_space<vmem>>, %arg15: memref<1x128xf32, #tpu.memory_space<vmem>>, %arg16: memref<2x128x64xf32, #tpu.memory_space<vmem>>) attributes {dimension_semantics = [#tpu.dimension_semantics<parallel>], iteration_bounds = array<i64: 1>, scalar_prefetch = 0 : i64, scratch_operands = 0 : i64, tpu.core_type = #tpu.core_type<tc>, window_params = [{transform_indices = @transform_0, window_bounds = array<i64: 2, 128, 64>}, {pipeline_mode = #tpu.pipeline_mode<synchronous>, transform_indices = @transform_1, window_bounds = array<i64: 128, 128>}, {pipeline_mode = #tpu.pipeline_mode<synchronous>, transform_indices = @transform_2, window_bounds = array<i64: 1, 128>}, {pipeline_mode = #tpu.pipeline_mode<synchronous>, transform_indices = @transform_3, window_bounds = array<i64: 1, 64, 128>}, {pipeline_mode = #tpu.pipeline_mode<synchronous>, transform_indices = @transform_4, window_bounds = array<i64: 1, 1, 128>}, {pipeline_mode = #tpu.pipeline_mode<synchronous>, transform_indices = @transform_5, window_bounds = array<i64: 1, 9, 64, 64>}, {pipeline_mode = #tpu.pipeline_mode<synchronous>, transform_indices = @transform_6, window_bounds = array<i64: 1, 64, 64>}, {pipeline_mode = #tpu.pipeline_mode<synchronous>, transform_indices = @transform_7, window_bounds = array<i64: 1, 64>}, {pipeline_mode = #tpu.pipeline_mode<synchronous>, transform_indices = @transform_8, window_bounds = array<i64: 64, 128>}, {pipeline_mode = #tpu.pipeline_mode<synchronous>, transform_indices = @transform_9, window_bounds = array<i64: 1, 128>}, {pipeline_mode = #tpu.pipeline_mode<synchronous>, transform_indices = @transform_10, window_bounds = array<i64: 128, 64>}, {pipeline_mode = #tpu.pipeline_mode<synchronous>, transform_indices = @transform_11, window_bounds = array<i64: 1, 64>}, {pipeline_mode = #tpu.pipeline_mode<synchronous>, transform_indices = @transform_12, window_bounds = array<i64: 64, 128>}, {pipeline_mode = #tpu.pipeline_mode<synchronous>, transform_indices = @transform_13, window_bounds = array<i64: 64, 128>}, {pipeline_mode = #tpu.pipeline_mode<synchronous>, transform_indices = @transform_14, window_bounds = array<i64: 1, 128>}, {transform_indices = @transform_15, window_bounds = array<i64: 2, 128, 64>}]} {
    %c0 = arith.constant 0 : index
    %c0_0 = arith.constant 0 : index
    %c0_1 = arith.constant 0 : index
    %0 = vector.load %arg1[%c0, %c0_0, %c0_1] : memref<2x128x64xf32, #tpu.memory_space<vmem>>, vector<2x128x64xf32>
    %1 = tpu.transpose %0, [0, 2, 1] : vector<2x128x64xf32> -> vector<2x64x128xf32>
    %2 = vector.shape_cast %1 : vector<2x64x128xf32> to vector<128x128xf32>
    %3 = arith.truncf %2 : vector<128x128xf32> to vector<128x128xbf16>
    %c0_2 = arith.constant 0 : index
    %c0_3 = arith.constant 0 : index
    %4 = vector.load %arg2[%c0_2, %c0_3] : memref<128x128xbf16, #tpu.memory_space<vmem>>, vector<128x128xbf16>
    %cst = arith.constant dense<0.000000e+00> : vector<128x128xf32>
    %5 = tpu.matmul %3, %4, %cst {dimension_numbers = #tpu.dot_dimension_numbers<[1], [0], [0], [1], [0, 0, 1, 1], [], []>} : vector<128x128xbf16>, vector<128x128xbf16>, vector<128x128xf32> -> vector<128x128xf32>
    %c0_4 = arith.constant 0 : index
    %c0_5 = arith.constant 0 : index
    %6 = vector.load %arg3[%c0_4, %c0_5] : memref<1x128xf32, #tpu.memory_space<vmem>>, vector<1x128xf32>
    %7 = vector.broadcast %6 : vector<1x128xf32> to vector<128x128xf32>
    %8 = arith.addf %5, %7 : vector<128x128xf32>
    %9 = arith.negf %8 : vector<128x128xf32>
    %10 = math.exp %9 : vector<128x128xf32>
    %cst_6 = arith.constant 1.000000e+00 : f32
    %11 = vector.broadcast %cst_6 : f32 to vector<128x128xf32>
    %12 = arith.addf %11, %10 : vector<128x128xf32>
    %13 = arith.divf %11, %12 : vector<128x128xf32>
    %14 = arith.mulf %8, %13 : vector<128x128xf32>
    %15 = vector.extract_strided_slice %14 {offsets = [0, 0], sizes = [128, 64], strides = [1, 1]} : vector<128x128xf32> to vector<128x64xf32>
    %16 = vector.extract_strided_slice %14 {offsets = [0, 64], sizes = [128, 64], strides = [1, 1]} : vector<128x128xf32> to vector<128x64xf32>
    %17 = arith.truncf %16 : vector<128x64xf32> to vector<128x64xbf16>
    %cst_7 = arith.constant 0.000000e+00 : f32
    %18 = vector.broadcast %cst_7 : f32 to vector<128x64xf32>
    %c0_8 = arith.constant 0 : index
    %c0_9 = arith.constant 0 : index
    %c0_10 = arith.constant 0 : index
    %19 = vector.load %arg4[%c0_8, %c0_9, %c0_10] : memref<1x64x128xbf16, #tpu.memory_space<vmem>>, vector<1x64x128xbf16>
    %20 = vector.shape_cast %19 : vector<1x64x128xbf16> to vector<64x128xbf16>
    %cst_11 = arith.constant dense<0.000000e+00> : vector<128x128xf32>
    %21 = tpu.matmul %17, %20, %cst_11 {dimension_numbers = #tpu.dot_dimension_numbers<[1], [0], [0], [1], [0, 0, 1, 1], [], []>} : vector<128x64xbf16>, vector<64x128xbf16>, vector<128x128xf32> -> vector<128x128xf32>
    %c0_12 = arith.constant 0 : index
    %c0_13 = arith.constant 0 : index
    %c0_14 = arith.constant 0 : index
    %22 = vector.load %arg5[%c0_12, %c0_13, %c0_14] : memref<1x1x128xf32, #tpu.memory_space<vmem>>, vector<1x1x128xf32>
    %23 = vector.shape_cast %22 : vector<1x1x128xf32> to vector<1x128xf32>
    %24 = vector.broadcast %23 : vector<1x128xf32> to vector<128x128xf32>
    %25 = arith.addf %21, %24 : vector<128x128xf32>
    %26 = vector.extract_strided_slice %25 {offsets = [0, 0], sizes = [128, 32], strides = [1, 1]} : vector<128x128xf32> to vector<128x32xf32>
    %27 = arith.truncf %26 : vector<128x32xf32> to vector<128x32xbf16>
    %28 = vector.shape_cast %27 : vector<128x32xbf16> to vector<2x64x32xbf16>
    %29 = vector.extract_strided_slice %25 {offsets = [0, 32], sizes = [128, 32], strides = [1, 1]} : vector<128x128xf32> to vector<128x32xf32>
    %30 = arith.truncf %29 : vector<128x32xf32> to vector<128x32xbf16>
    %31 = vector.shape_cast %30 : vector<128x32xbf16> to vector<2x64x32xbf16>
    %32 = vector.extract_strided_slice %25 {offsets = [0, 64], sizes = [128, 64], strides = [1, 1]} : vector<128x128xf32> to vector<128x64xf32>
    %33 = vector.shape_cast %32 : vector<128x64xf32> to vector<2x64x64xf32>
    "tpu.trace_start"() <{level = 10 : i32, message = "bnd,bmd->bnm"}> : () -> ()
    %cst_15 = arith.constant dense<0.000000e+00> : vector<2x64x64xf32>
    %34 = tpu.matmul %28, %31, %cst_15 {dimension_numbers = #tpu.dot_dimension_numbers<[2], [2], [1], [1], [0, 0, 0, 1, 1, 1], [0], [0]>} : vector<2x64x32xbf16>, vector<2x64x32xbf16>, vector<2x64x64xf32> -> vector<2x64x64xf32>
    "tpu.trace_stop"() : () -> ()
    %cst_16 = arith.constant dense<0xFF800000> : vector<2x64xf32>
    %35 = vector.multi_reduction <maximumf>, %34, %cst_16 [2] : vector<2x64x64xf32> to vector<2x64xf32>
    %36 = vector.shape_cast %35 : vector<2x64xf32> to vector<2x64x1xf32>
    %37 = vector.broadcast %36 : vector<2x64x1xf32> to vector<2x64x64xf32>
    %38 = arith.subf %34, %37 : vector<2x64x64xf32>
    %39 = math.exp %38 : vector<2x64x64xf32>
    %cst_17 = arith.constant dense<0.000000e+00> : vector<2x64xf32>
    %40 = vector.multi_reduction <add>, %39, %cst_17 [2] : vector<2x64x64xf32> to vector<2x64xf32>
    %41 = vector.shape_cast %40 : vector<2x64xf32> to vector<2x64x1xf32>
    %42 = tpu.reciprocal %41 {approx = true} : vector<2x64x1xf32> -> vector<2x64x1xf32>
    %43 = vector.broadcast %42 : vector<2x64x1xf32> to vector<2x64x64xf32>
    %44 = arith.mulf %39, %43 : vector<2x64x64xf32>
    %45 = arith.truncf %44 : vector<2x64x64xf32> to vector<2x64x64xbf16>
    %46 = arith.truncf %33 : vector<2x64x64xf32> to vector<2x64x64xbf16>
    "tpu.trace_start"() <{level = 10 : i32, message = "bnm,bmd->bnd"}> : () -> ()
    %cst_18 = arith.constant dense<0.000000e+00> : vector<2x64x64xf32>
    %47 = tpu.matmul %45, %46, %cst_18 {dimension_numbers = #tpu.dot_dimension_numbers<[2], [1], [1], [2], [0, 0, 0, 1, 1, 2], [0], [0]>} : vector<2x64x64xbf16>, vector<2x64x64xbf16>, vector<2x64x64xf32> -> vector<2x64x64xf32>
    %cst_19 = arith.constant 0.000000e+00 : f32
    "tpu.trace_stop"() : () -> ()
    %48 = vector.broadcast %cst_19 : f32 to vector<2x64x64xf32>
    %c9_i32 = arith.constant 9 : i32
    %49 = tpu.dynamic_rotate %33 by %c9_i32 dim 1 : vector<2x64x64xf32>, i32 -> vector<2x64x64xf32>
    %c0_20 = arith.constant 0 : index
    %c0_21 = arith.constant 0 : index
    %c0_22 = arith.constant 0 : index
    %c0_23 = arith.constant 0 : index
    %50 = vector.load %arg6[%c0_20, %c0_21, %c0_22, %c0_23] : memref<1x9x64x64xf32, #tpu.memory_space<vmem>>, vector<1x1x64x64xf32>
    %51 = vector.shape_cast %50 : vector<1x1x64x64xf32> to vector<64x64xf32>
    %52 = vector.shape_cast %51 : vector<64x64xf32> to vector<1x64x64xf32>
    %53 = vector.broadcast %52 : vector<1x64x64xf32> to vector<2x64x64xf32>
    %54 = arith.mulf %49, %53 : vector<2x64x64xf32>
    %55 = arith.addf %48, %54 : vector<2x64x64xf32>
    %c8_i32 = arith.constant 8 : i32
    %56 = tpu.dynamic_rotate %33 by %c8_i32 dim 1 : vector<2x64x64xf32>, i32 -> vector<2x64x64xf32>
    %c0_24 = arith.constant 0 : index
    %c1 = arith.constant 1 : index
    %c0_25 = arith.constant 0 : index
    %c0_26 = arith.constant 0 : index
    %57 = vector.load %arg6[%c0_24, %c1, %c0_25, %c0_26] : memref<1x9x64x64xf32, #tpu.memory_space<vmem>>, vector<1x1x64x64xf32>
    %58 = vector.shape_cast %57 : vector<1x1x64x64xf32> to vector<64x64xf32>
    %59 = vector.shape_cast %58 : vector<64x64xf32> to vector<1x64x64xf32>
    %60 = vector.broadcast %59 : vector<1x64x64xf32> to vector<2x64x64xf32>
    %61 = arith.mulf %56, %60 : vector<2x64x64xf32>
    %62 = arith.addf %55, %61 : vector<2x64x64xf32>
    %c7_i32 = arith.constant 7 : i32
    %63 = tpu.dynamic_rotate %33 by %c7_i32 dim 1 : vector<2x64x64xf32>, i32 -> vector<2x64x64xf32>
    %c0_27 = arith.constant 0 : index
    %c2 = arith.constant 2 : index
    %c0_28 = arith.constant 0 : index
    %c0_29 = arith.constant 0 : index
    %64 = vector.load %arg6[%c0_27, %c2, %c0_28, %c0_29] : memref<1x9x64x64xf32, #tpu.memory_space<vmem>>, vector<1x1x64x64xf32>
    %65 = vector.shape_cast %64 : vector<1x1x64x64xf32> to vector<64x64xf32>
    %66 = vector.shape_cast %65 : vector<64x64xf32> to vector<1x64x64xf32>
    %67 = vector.broadcast %66 : vector<1x64x64xf32> to vector<2x64x64xf32>
    %68 = arith.mulf %63, %67 : vector<2x64x64xf32>
    %69 = arith.addf %62, %68 : vector<2x64x64xf32>
    %c1_i32 = arith.constant 1 : i32
    %70 = tpu.dynamic_rotate %33 by %c1_i32 dim 1 : vector<2x64x64xf32>, i32 -> vector<2x64x64xf32>
    %c0_30 = arith.constant 0 : index
    %c3 = arith.constant 3 : index
    %c0_31 = arith.constant 0 : index
    %c0_32 = arith.constant 0 : index
    %71 = vector.load %arg6[%c0_30, %c3, %c0_31, %c0_32] : memref<1x9x64x64xf32, #tpu.memory_space<vmem>>, vector<1x1x64x64xf32>
    %72 = vector.shape_cast %71 : vector<1x1x64x64xf32> to vector<64x64xf32>
    %73 = vector.shape_cast %72 : vector<64x64xf32> to vector<1x64x64xf32>
    %74 = vector.broadcast %73 : vector<1x64x64xf32> to vector<2x64x64xf32>
    %75 = arith.mulf %70, %74 : vector<2x64x64xf32>
    %76 = arith.addf %69, %75 : vector<2x64x64xf32>
    %c0_33 = arith.constant 0 : index
    %c4 = arith.constant 4 : index
    %c0_34 = arith.constant 0 : index
    %c0_35 = arith.constant 0 : index
    %77 = vector.load %arg6[%c0_33, %c4, %c0_34, %c0_35] : memref<1x9x64x64xf32, #tpu.memory_space<vmem>>, vector<1x1x64x64xf32>
    %78 = vector.shape_cast %77 : vector<1x1x64x64xf32> to vector<64x64xf32>
    %79 = vector.shape_cast %78 : vector<64x64xf32> to vector<1x64x64xf32>
    %80 = vector.broadcast %79 : vector<1x64x64xf32> to vector<2x64x64xf32>
    %81 = arith.mulf %33, %80 : vector<2x64x64xf32>
    %82 = arith.addf %76, %81 : vector<2x64x64xf32>
    %c63_i32 = arith.constant 63 : i32
    %83 = tpu.dynamic_rotate %33 by %c63_i32 dim 1 : vector<2x64x64xf32>, i32 -> vector<2x64x64xf32>
    %c0_36 = arith.constant 0 : index
    %c5 = arith.constant 5 : index
    %c0_37 = arith.constant 0 : index
    %c0_38 = arith.constant 0 : index
    %84 = vector.load %arg6[%c0_36, %c5, %c0_37, %c0_38] : memref<1x9x64x64xf32, #tpu.memory_space<vmem>>, vector<1x1x64x64xf32>
    %85 = vector.shape_cast %84 : vector<1x1x64x64xf32> to vector<64x64xf32>
    %86 = vector.shape_cast %85 : vector<64x64xf32> to vector<1x64x64xf32>
    %87 = vector.broadcast %86 : vector<1x64x64xf32> to vector<2x64x64xf32>
    %88 = arith.mulf %83, %87 : vector<2x64x64xf32>
    %89 = arith.addf %82, %88 : vector<2x64x64xf32>
    %c57_i32 = arith.constant 57 : i32
    %90 = tpu.dynamic_rotate %33 by %c57_i32 dim 1 : vector<2x64x64xf32>, i32 -> vector<2x64x64xf32>
    %c0_39 = arith.constant 0 : index
    %c6 = arith.constant 6 : index
    %c0_40 = arith.constant 0 : index
    %c0_41 = arith.constant 0 : index
    %91 = vector.load %arg6[%c0_39, %c6, %c0_40, %c0_41] : memref<1x9x64x64xf32, #tpu.memory_space<vmem>>, vector<1x1x64x64xf32>
    %92 = vector.shape_cast %91 : vector<1x1x64x64xf32> to vector<64x64xf32>
    %93 = vector.shape_cast %92 : vector<64x64xf32> to vector<1x64x64xf32>
    %94 = vector.broadcast %93 : vector<1x64x64xf32> to vector<2x64x64xf32>
    %95 = arith.mulf %90, %94 : vector<2x64x64xf32>
    %96 = arith.addf %89, %95 : vector<2x64x64xf32>
    %c56_i32 = arith.constant 56 : i32
    %97 = tpu.dynamic_rotate %33 by %c56_i32 dim 1 : vector<2x64x64xf32>, i32 -> vector<2x64x64xf32>
    %c0_42 = arith.constant 0 : index
    %c7 = arith.constant 7 : index
    %c0_43 = arith.constant 0 : index
    %c0_44 = arith.constant 0 : index
    %98 = vector.load %arg6[%c0_42, %c7, %c0_43, %c0_44] : memref<1x9x64x64xf32, #tpu.memory_space<vmem>>, vector<1x1x64x64xf32>
    %99 = vector.shape_cast %98 : vector<1x1x64x64xf32> to vector<64x64xf32>
    %100 = vector.shape_cast %99 : vector<64x64xf32> to vector<1x64x64xf32>
    %101 = vector.broadcast %100 : vector<1x64x64xf32> to vector<2x64x64xf32>
    %102 = arith.mulf %97, %101 : vector<2x64x64xf32>
    %103 = arith.addf %96, %102 : vector<2x64x64xf32>
    %c55_i32 = arith.constant 55 : i32
    %104 = tpu.dynamic_rotate %33 by %c55_i32 dim 1 : vector<2x64x64xf32>, i32 -> vector<2x64x64xf32>
    %c0_45 = arith.constant 0 : index
    %c8 = arith.constant 8 : index
    %c0_46 = arith.constant 0 : index
    %c0_47 = arith.constant 0 : index
    %105 = vector.load %arg6[%c0_45, %c8, %c0_46, %c0_47] : memref<1x9x64x64xf32, #tpu.memory_space<vmem>>, vector<1x1x64x64xf32>
    %106 = vector.shape_cast %105 : vector<1x1x64x64xf32> to vector<64x64xf32>
    %107 = vector.shape_cast %106 : vector<64x64xf32> to vector<1x64x64xf32>
    %108 = vector.broadcast %107 : vector<1x64x64xf32> to vector<2x64x64xf32>
    %109 = arith.mulf %104, %108 : vector<2x64x64xf32>
    %110 = arith.addf %103, %109 : vector<2x64x64xf32>
    %111 = arith.addf %47, %110 : vector<2x64x64xf32>
    %112 = vector.shape_cast %111 : vector<2x64x64xf32> to vector<128x64xf32>
    %113 = arith.truncf %112 : vector<128x64xf32> to vector<128x64xbf16>
    %c0_48 = arith.constant 0 : index
    %c0_49 = arith.constant 0 : index
    %c0_50 = arith.constant 0 : index
    %114 = vector.load %arg7[%c0_48, %c0_49, %c0_50] : memref<1x64x64xbf16, #tpu.memory_space<vmem>>, vector<1x64x64xbf16>
    %115 = vector.shape_cast %114 : vector<1x64x64xbf16> to vector<64x64xbf16>
    %cst_51 = arith.constant dense<0.000000e+00> : vector<128x64xf32>
    %116 = tpu.matmul %113, %115, %cst_51 {dimension_numbers = #tpu.dot_dimension_numbers<[1], [0], [0], [1], [0, 0, 1, 1], [], []>} : vector<128x64xbf16>, vector<64x64xbf16>, vector<128x64xf32> -> vector<128x64xf32>
    %117 = arith.addf %18, %116 : vector<128x64xf32>
    %118 = arith.addf %16, %117 : vector<128x64xf32>
    %c0_52 = arith.constant 0 : index
    %c0_53 = arith.constant 0 : index
    %119 = vector.load %arg8[%c0_52, %c0_53] : memref<1x64xf32, #tpu.memory_space<vmem>>, vector<1x64xf32>
    %120 = vector.broadcast %119 : vector<1x64xf32> to vector<128x64xf32>
    %121 = arith.addf %118, %120 : vector<128x64xf32>
    %122 = arith.truncf %121 : vector<128x64xf32> to vector<128x64xbf16>
    %c0_54 = arith.constant 0 : index
    %c0_55 = arith.constant 0 : index
    %123 = vector.load %arg9[%c0_54, %c0_55] : memref<64x128xbf16, #tpu.memory_space<vmem>>, vector<64x128xbf16>
    %cst_56 = arith.constant dense<0.000000e+00> : vector<128x128xf32>
    %124 = tpu.matmul %122, %123, %cst_56 {dimension_numbers = #tpu.dot_dimension_numbers<[1], [0], [0], [1], [0, 0, 1, 1], [], []>} : vector<128x64xbf16>, vector<64x128xbf16>, vector<128x128xf32> -> vector<128x128xf32>
    %c0_57 = arith.constant 0 : index
    %c0_58 = arith.constant 0 : index
    %125 = vector.load %arg10[%c0_57, %c0_58] : memref<1x128xf32, #tpu.memory_space<vmem>>, vector<1x128xf32>
    %126 = vector.broadcast %125 : vector<1x128xf32> to vector<128x128xf32>
    %127 = arith.addf %124, %126 : vector<128x128xf32>
    %128 = arith.negf %127 : vector<128x128xf32>
    %129 = math.exp %128 : vector<128x128xf32>
    %cst_59 = arith.constant 1.000000e+00 : f32
    %130 = vector.broadcast %cst_59 : f32 to vector<128x128xf32>
    %131 = arith.addf %130, %129 : vector<128x128xf32>
    %132 = arith.divf %130, %131 : vector<128x128xf32>
    %133 = arith.mulf %127, %132 : vector<128x128xf32>
    %134 = arith.truncf %133 : vector<128x128xf32> to vector<128x128xbf16>
    %c0_60 = arith.constant 0 : index
    %c0_61 = arith.constant 0 : index
    %135 = vector.load %arg11[%c0_60, %c0_61] : memref<128x64xbf16, #tpu.memory_space<vmem>>, vector<128x64xbf16>
    %cst_62 = arith.constant dense<0.000000e+00> : vector<128x64xf32>
    %136 = tpu.matmul %134, %135, %cst_62 {dimension_numbers = #tpu.dot_dimension_numbers<[1], [0], [0], [1], [0, 0, 1, 1], [], []>} : vector<128x128xbf16>, vector<128x64xbf16>, vector<128x64xf32> -> vector<128x64xf32>
    %137 = arith.addf %121, %136 : vector<128x64xf32>
    %c0_63 = arith.constant 0 : index
    %c0_64 = arith.constant 0 : index
    %138 = vector.load %arg12[%c0_63, %c0_64] : memref<1x64xf32, #tpu.memory_space<vmem>>, vector<1x64xf32>
    %139 = vector.broadcast %138 : vector<1x64xf32> to vector<128x64xf32>
    %140 = arith.addf %137, %139 : vector<128x64xf32>
    %141 = arith.truncf %15 : vector<128x64xf32> to vector<128x64xbf16>
    %c0_65 = arith.constant 0 : index
    %c0_66 = arith.constant 0 : index
    %142 = vector.load %arg13[%c0_65, %c0_66] : memref<64x128xbf16, #tpu.memory_space<vmem>>, vector<64x128xbf16>
    %cst_67 = arith.constant dense<0.000000e+00> : vector<128x128xf32>
    %143 = tpu.matmul %141, %142, %cst_67 {dimension_numbers = #tpu.dot_dimension_numbers<[1], [0], [0], [1], [0, 0, 1, 1], [], []>} : vector<128x64xbf16>, vector<64x128xbf16>, vector<128x128xf32> -> vector<128x128xf32>
    %144 = arith.truncf %140 : vector<128x64xf32> to vector<128x64xbf16>
    %c0_68 = arith.constant 0 : index
    %c0_69 = arith.constant 0 : index
    %145 = vector.load %arg14[%c0_68, %c0_69] : memref<64x128xbf16, #tpu.memory_space<vmem>>, vector<64x128xbf16>
    %cst_70 = arith.constant dense<0.000000e+00> : vector<128x128xf32>
    %146 = tpu.matmul %144, %145, %cst_70 {dimension_numbers = #tpu.dot_dimension_numbers<[1], [0], [0], [1], [0, 0, 1, 1], [], []>} : vector<128x64xbf16>, vector<64x128xbf16>, vector<128x128xf32> -> vector<128x128xf32>
    %147 = arith.addf %143, %146 : vector<128x128xf32>
    %c0_71 = arith.constant 0 : index
    %c0_72 = arith.constant 0 : index
    %148 = vector.load %arg15[%c0_71, %c0_72] : memref<1x128xf32, #tpu.memory_space<vmem>>, vector<1x128xf32>
    %149 = vector.broadcast %148 : vector<1x128xf32> to vector<128x128xf32>
    %150 = arith.addf %147, %149 : vector<128x128xf32>
    %151 = arith.negf %150 : vector<128x128xf32>
    %152 = math.exp %151 : vector<128x128xf32>
    %cst_73 = arith.constant 1.000000e+00 : f32
    %153 = vector.broadcast %cst_73 : f32 to vector<128x128xf32>
    %154 = arith.addf %153, %152 : vector<128x128xf32>
    %155 = arith.divf %153, %154 : vector<128x128xf32>
    %156 = arith.mulf %150, %155 : vector<128x128xf32>
    %157 = vector.shape_cast %156 : vector<128x128xf32> to vector<2x64x128xf32>
    %158 = tpu.transpose %157, [0, 2, 1] : vector<2x64x128xf32> -> vector<2x128x64xf32>
    %c0_74 = arith.constant 0 : index
    %c0_75 = arith.constant 0 : index
    %c0_76 = arith.constant 0 : index
    %159 = vector.load %arg16[%c0_74, %c0_75, %c0_76] : memref<2x128x64xf32, #tpu.memory_space<vmem>>, vector<2x128x64xf32>
    tpu.vector_store %arg16[%c0_74, %c0_75, %c0_76], %158 {strides = array<i32>} : memref<2x128x64xf32, #tpu.memory_space<vmem>>, vector<2x128x64xf32>,
    return
  }
  func.func @transform_0(%arg0: i32) -> (i32, i32, i32) {
    %c0_i32 = arith.constant 0 : i32
    %c0_i32_0 = arith.constant 0 : i32
    %c0_i32_1 = arith.constant 0 : i32
    return %arg0, %c0_i32, %c0_i32_0 : i32, i32, i32
  }
  func.func @transform_1(%arg0: i32) -> (i32, i32) {
    %c0_i32 = arith.constant 0 : i32
    %c0_i32_0 = arith.constant 0 : i32
    %c0_i32_1 = arith.constant 0 : i32
    return %c0_i32, %c0_i32_0 : i32, i32
  }
  func.func @transform_2(%arg0: i32) -> (i32, i32) {
    %c0_i32 = arith.constant 0 : i32
    %c0_i32_0 = arith.constant 0 : i32
    %c0_i32_1 = arith.constant 0 : i32
    return %c0_i32, %c0_i32_0 : i32, i32
  }
  func.func @transform_3(%arg0: i32) -> (i32, i32, i32) {
    %c0_i32 = arith.constant 0 : i32
    %c0_i32_0 = arith.constant 0 : i32
    %c0_i32_1 = arith.constant 0 : i32
    %c0_i32_2 = arith.constant 0 : i32
    return %c0_i32, %c0_i32_0, %c0_i32_1 : i32, i32, i32
  }
  func.func @transform_4(%arg0: i32) -> (i32, i32, i32) {
    %c0_i32 = arith.constant 0 : i32
    %c0_i32_0 = arith.constant 0 : i32
    %c0_i32_1 = arith.constant 0 : i32
    %c0_i32_2 = arith.constant 0 : i32
    return %c0_i32, %c0_i32_0, %c0_i32_1 : i32, i32, i32
  }
  func.func @transform_5(%arg0: i32) -> (i32, i32, i32, i32) {
    %c0_i32 = arith.constant 0 : i32
    %c0_i32_0 = arith.constant 0 : i32
    %c0_i32_1 = arith.constant 0 : i32
    %c0_i32_2 = arith.constant 0 : i32
    %c0_i32_3 = arith.constant 0 : i32
    return %c0_i32, %c0_i32_0, %c0_i32_1, %c0_i32_2 : i32, i32, i32, i32
  }
  func.func @transform_6(%arg0: i32) -> (i32, i32, i32) {
    %c0_i32 = arith.constant 0 : i32
    %c0_i32_0 = arith.constant 0 : i32
    %c0_i32_1 = arith.constant 0 : i32
    %c0_i32_2 = arith.constant 0 : i32
    return %c0_i32, %c0_i32_0, %c0_i32_1 : i32, i32, i32
  }
  func.func @transform_7(%arg0: i32) -> (i32, i32) {
    %c0_i32 = arith.constant 0 : i32
    %c0_i32_0 = arith.constant 0 : i32
    %c0_i32_1 = arith.constant 0 : i32
    return %c0_i32, %c0_i32_0 : i32, i32
  }
  func.func @transform_8(%arg0: i32) -> (i32, i32) {
    %c0_i32 = arith.constant 0 : i32
    %c0_i32_0 = arith.constant 0 : i32
    %c0_i32_1 = arith.constant 0 : i32
    return %c0_i32, %c0_i32_0 : i32, i32
  }
  func.func @transform_9(%arg0: i32) -> (i32, i32) {
    %c0_i32 = arith.constant 0 : i32
    %c0_i32_0 = arith.constant 0 : i32
    %c0_i32_1 = arith.constant 0 : i32
    return %c0_i32, %c0_i32_0 : i32, i32
  }
  func.func @transform_10(%arg0: i32) -> (i32, i32) {
    %c0_i32 = arith.constant 0 : i32
    %c0_i32_0 = arith.constant 0 : i32
    %c0_i32_1 = arith.constant 0 : i32
    return %c0_i32, %c0_i32_0 : i32, i32
  }
  func.func @transform_11(%arg0: i32) -> (i32, i32) {
    %c0_i32 = arith.constant 0 : i32
    %c0_i32_0 = arith.constant 0 : i32
    %c0_i32_1 = arith.constant 0 : i32
    return %c0_i32, %c0_i32_0 : i32, i32
  }
  func.func @transform_12(%arg0: i32) -> (i32, i32) {
    %c0_i32 = arith.constant 0 : i32
    %c0_i32_0 = arith.constant 0 : i32
    %c0_i32_1 = arith.constant 0 : i32
    return %c0_i32, %c0_i32_0 : i32, i32
  }
  func.func @transform_13(%arg0: i32) -> (i32, i32) {
    %c0_i32 = arith.constant 0 : i32
    %c0_i32_0 = arith.constant 0 : i32
    %c0_i32_1 = arith.constant 0 : i32
    return %c0_i32, %c0_i32_0 : i32, i32
  }
  func.func @transform_14(%arg0: i32) -> (i32, i32) {
    %c0_i32 = arith.constant 0 : i32
    %c0_i32_0 = arith.constant 0 : i32
    %c0_i32_1 = arith.constant 0 : i32
    return %c0_i32, %c0_i32_0 : i32, i32
  }
  func.func @transform_15(%arg0: i32) -> (i32, i32, i32) {
    %c0_i32 = arith.constant 0 : i32
    %c0_i32_0 = arith.constant 0 : i32
    %c0_i32_1 = arith.constant 0 : i32
    return %arg0, %c0_i32, %c0_i32_0 : i32, i32, i32
  }
}

</mosaic_0001>

<llo_original>
// kernel: _psa_forward_impl.1
$region0: #{_psa_forward_impl.1}
  #allocation0 [shape = 'u32[]', space=smem, size = 0x4, offset = 0x4, fixed_abs, tag = 'smem constant byte address 0x4 - core index']
  #allocation1 [shape = 'u32[144,128]{1,0:T(1,128)}', space=vmem, size = 0x12000, scoped, tag = 'internal scratch']
  %s0 = inlined_call_operand.vmem [shape: f32[2,128,64], index: 0, kind: input, shape index: {}]
  %s1 = inlined_call_operand.vmem [shape: bf16[128,128], index: 1, kind: input, shape index: {}]
  %s2 = inlined_call_operand.vmem [shape: f32[1,128], index: 2, kind: input, shape index: {}]
  %s3 = inlined_call_operand.vmem [shape: bf16[1,64,128], index: 3, kind: input, shape index: {}]
  %s4 = inlined_call_operand.vmem [shape: f32[1,1,128], index: 4, kind: input, shape index: {}]
  %s5 = inlined_call_operand.hbm [shape: f32[1,9,64,64], index: 5, kind: input, shape index: {}]
  %s6 = inlined_call_operand.vmem [shape: bf16[1,64,64], index: 6, kind: input, shape index: {}]
  %s7 = inlined_call_operand.vmem [shape: f32[1,64], index: 7, kind: input, shape index: {}]
  %s8 = inlined_call_operand.vmem [shape: bf16[64,128], index: 8, kind: input, shape index: {}]
  %s9 = inlined_call_operand.vmem [shape: f32[1,128], index: 9, kind: input, shape index: {}]
  %s10 = inlined_call_operand.vmem [shape: bf16[128,64], index: 10, kind: input, shape index: {}]
  %s11 = inlined_call_operand.vmem [shape: f32[1,64], index: 11, kind: input, shape index: {}]
  %s12 = inlined_call_operand.vmem [shape: bf16[64,128], index: 12, kind: input, shape index: {}]
  %s13 = inlined_call_operand.vmem [shape: bf16[64,128], index: 13, kind: input, shape index: {}]
  %s14 = inlined_call_operand.vmem [shape: f32[1,128], index: 14, kind: input, shape index: {}]
  %s15 = inlined_call_operand.vmem [shape: f32[2,128,64], index: 15, kind: output, shape index: {}]
  %s16 = sld [smem:[#allocation0]]
  $region74: #{_psa_forward_impl.1} parent=0
    _
  %s18 = ssub.s32 1, %s16
  %s19 = scalar_select 0, %s18, %s16
  $region1: #{_psa_forward_impl.1} parent=0
    #allocation2 [shape = 'u8[294912]{0}', space=vmem, size = 0x48000, scoped, tag = 'input window, operand 5, single buffered']
    #allocation3 [shape = 's32[1]{0}', space=sflag, size = 0x4, scoped, tag = 'scoped memory for _psa_forward_impl.1']
    %20 = vsyncpa [#allocation3], 0
    // Predicated region
    $region2: #{_psa_forward_impl.1} parent=1 // pred_check
      _
    $region3: #{_psa_forward_impl.1} parent=1 // pred_check_branch
      %22 = sbr.rel (0) target = $region5
    $region4: #{_psa_forward_impl.1} parent=1 // pred_region
      _
    $region5: #{_psa_forward_impl.1} parent=1 // pred_fallthru
      _
    // Predicated region
    $region6: #{_psa_forward_impl.1} parent=1 // pred_check
      _
    $region7: #{_psa_forward_impl.1} parent=1 // pred_check_branch
      %24 = sbr.rel (0) target = $region9
    $region8: #{_psa_forward_impl.1} parent=1 // pred_region
      _
    $region9: #{_psa_forward_impl.1} parent=1 // pred_fallthru
      _
    // Predicated region
    $region10: #{_psa_forward_impl.1} parent=1 // pred_check
      _
    $region11: #{_psa_forward_impl.1} parent=1 // pred_check_branch
      %26 = sbr.rel (0) target = $region13
    $region12: #{_psa_forward_impl.1} parent=1 // pred_region
      _
    $region13: #{_psa_forward_impl.1} parent=1 // pred_fallthru
      _
    // Predicated region
    $region14: #{_psa_forward_impl.1} parent=1 // pred_check
      _
    $region15: #{_psa_forward_impl.1} parent=1 // pred_check_branch
      %28 = sbr.rel (0) target = $region17
    $region16: #{_psa_forward_impl.1} parent=1 // pred_region
      _
    $region17: #{_psa_forward_impl.1} parent=1 // pred_fallthru
      _
    // Predicated region
    $region18: #{_psa_forward_impl.1} parent=1 // pred_check
      _
    $region19: #{_psa_forward_impl.1} parent=1 // pred_check_branch
      %30 = sbr.rel (0) target = $region21
    $region20: #{_psa_forward_impl.1} parent=1 // pred_region
      _
    $region21: #{_psa_forward_impl.1} parent=1 // pred_fallthru
      _
    // Predicated region
    $region22: #{_psa_forward_impl.1} parent=1 // pred_check
      _
    $region23: #{_psa_forward_impl.1} parent=1 // pred_check_branch
      %32 = sbr.rel (0) target = $region25
    $region24: #{_psa_forward_impl.1} parent=1 // pred_region
      %s34 = ssub.s32 9216, 9216
      %35 = vsyncadd [#allocation3], %s34
      %s36 = sshll.u32 [#allocation2], 4
      %s37 = int_to_ptr.vmem [resolvable:$true] %s36
      %42 = dma.hbm_to_vmem [thread:$0]  %s5, 9216, %s37, [#allocation3], 128, 128, 8
    $region25: #{_psa_forward_impl.1} parent=1 // pred_fallthru
      _
    // Predicated region
    $region26: #{_psa_forward_impl.1} parent=1 // pred_check
      _
    $region27: #{_psa_forward_impl.1} parent=1 // pred_check_branch
      %44 = sbr.rel (0) target = $region29
    $region28: #{_psa_forward_impl.1} parent=1 // pred_region
      _
    $region29: #{_psa_forward_impl.1} parent=1 // pred_fallthru
      _
    // Predicated region
    $region30: #{_psa_forward_impl.1} parent=1 // pred_check
      _
    $region31: #{_psa_forward_impl.1} parent=1 // pred_check_branch
      %46 = sbr.rel (0) target = $region33
    $region32: #{_psa_forward_impl.1} parent=1 // pred_region
      _
    $region33: #{_psa_forward_impl.1} parent=1 // pred_fallthru
      _
    // Predicated region
    $region34: #{_psa_forward_impl.1} parent=1 // pred_check
      _
    $region35: #{_psa_forward_impl.1} parent=1 // pred_check_branch
      %48 = sbr.rel (0) target = $region37
    $region36: #{_psa_forward_impl.1} parent=1 // pred_region
      _
    $region37: #{_psa_forward_impl.1} parent=1 // pred_fallthru
      _
    // Predicated region
    $region38: #{_psa_forward_impl.1} parent=1 // pred_check
      _
    $region39: #{_psa_forward_impl.1} parent=1 // pred_check_branch
      %50 = sbr.rel (0) target = $region41
    $region40: #{_psa_forward_impl.1} parent=1 // pred_region
      _
    $region41: #{_psa_forward_impl.1} parent=1 // pred_fallthru
      _
    // Predicated region
    $region42: #{_psa_forward_impl.1} parent=1 // pred_check
      _
    $region43: #{_psa_forward_impl.1} parent=1 // pred_check_branch
      %52 = sbr.rel (0) target = $region45
    $region44: #{_psa_forward_impl.1} parent=1 // pred_region
      _
    $region45: #{_psa_forward_impl.1} parent=1 // pred_fallthru
      _
    // Predicated region
    $region46: #{_psa_forward_impl.1} parent=1 // pred_check
      _
    $region47: #{_psa_forward_impl.1} parent=1 // pred_check_branch
      %54 = sbr.rel (0) target = $region49
    $region48: #{_psa_forward_impl.1} parent=1 // pred_region
      _
    $region49: #{_psa_forward_impl.1} parent=1 // pred_fallthru
      _
    // Predicated region
    $region50: #{_psa_forward_impl.1} parent=1 // pred_check
      _
    $region51: #{_psa_forward_impl.1} parent=1 // pred_check_branch
      %56 = sbr.rel (0) target = $region53
    $region52: #{_psa_forward_impl.1} parent=1 // pred_region
      _
    $region53: #{_psa_forward_impl.1} parent=1 // pred_fallthru
      _
    // Predicated region
    $region54: #{_psa_forward_impl.1} parent=1 // pred_check
      _
    $region55: #{_psa_forward_impl.1} parent=1 // pred_check_branch
      %58 = sbr.rel (0) target = $region57
    $region56: #{_psa_forward_impl.1} parent=1 // pred_region
      _
    $region57: #{_psa_forward_impl.1} parent=1 // pred_fallthru
      _
    // Predicated region
    $region58: #{_psa_forward_impl.1} parent=1 // pred_check
      _
    $region59: #{_psa_forward_impl.1} parent=1 // pred_check_branch
      %60 = sbr.rel (0) target = $region61
    $region60: #{_psa_forward_impl.1} parent=1 // pred_region
      _
    $region61: #{_psa_forward_impl.1} parent=1 // pred_fallthru
      _
    // Predicated region
    $region62: #{_psa_forward_impl.1} parent=1 // pred_check
      _
    $region63: #{_psa_forward_impl.1} parent=1 // pred_check_branch
      %62 = sbr.rel (0) target = $region65
    $region64: #{_psa_forward_impl.1} parent=1 // pred_region
      %63 = dma.done [#allocation3], 9216
    $region65: #{_psa_forward_impl.1} parent=1 // pred_fallthru
      _
    %v65 = vld [vmem:[%s0] sm:$0xff]
    %v66 = vld [vmem:[%s0 + $0x8] sm:$0xff]
    %v67 = vld [vmem:[%s0 + $0x10] sm:$0xff]
    %v68 = vld [vmem:[%s0 + $0x18] sm:$0xff]
    %v69 = vld [vmem:[%s0 + $0x20] sm:$0xff]
    %v70 = vld [vmem:[%s0 + $0x28] sm:$0xff]
    %v71 = vld [vmem:[%s0 + $0x30] sm:$0xff]
    %v72 = vld [vmem:[%s0 + $0x38] sm:$0xff]
    %v73 = vld [vmem:[%s0 + $0x40] sm:$0xff]
    %v74 = vld [vmem:[%s0 + $0x48] sm:$0xff]
    %v75 = vld [vmem:[%s0 + $0x50] sm:$0xff]
    %v76 = vld [vmem:[%s0 + $0x58] sm:$0xff]
    %v77 = vld [vmem:[%s0 + $0x60] sm:$0xff]
    %v78 = vld [vmem:[%s0 + $0x68] sm:$0xff]
    %v79 = vld [vmem:[%s0 + $0x70] sm:$0xff]
    %v80 = vld [vmem:[%s0 + $0x78] sm:$0xff]
    %v81 = vld [vmem:[%s0 + $0x80] sm:$0xff]
    %v82 = vld [vmem:[%s0 + $0x88] sm:$0xff]
    %v83 = vld [vmem:[%s0 + $0x90] sm:$0xff]
    %v84 = vld [vmem:[%s0 + $0x98] sm:$0xff]
    %v85 = vld [vmem:[%s0 + $0xa0] sm:$0xff]
    %v86 = vld [vmem:[%s0 + $0xa8] sm:$0xff]
    %v87 = vld [vmem:[%s0 + $0xb0] sm:$0xff]
    %v88 = vld [vmem:[%s0 + $0xb8] sm:$0xff]
    %v89 = vld [vmem:[%s0 + $0xc0] sm:$0xff]
    %v90 = vld [vmem:[%s0 + $0xc8] sm:$0xff]
    %v91 = vld [vmem:[%s0 + $0xd0] sm:$0xff]
    %v92 = vld [vmem:[%s0 + $0xd8] sm:$0xff]
    %v93 = vld [vmem:[%s0 + $0xe0] sm:$0xff]
    %v94 = vld [vmem:[%s0 + $0xe8] sm:$0xff]
    %v95 = vld [vmem:[%s0 + $0xf0] sm:$0xff]
    %v96 = vld [vmem:[%s0 + $0xf8] sm:$0xff]
    %97 = vxpose.xlu0.b32.start [1/16] %v65, 128
    %98 = vxpose.xlu0.b32.cont [2/16] %v66, 128
    %99 = vxpose.xlu0.b32.cont [3/16] %v67, 128
    %100 = vxpose.xlu0.b32.cont [4/16] %v68, 128
    %101 = vxpose.xlu0.b32.cont [5/16] %v69, 128
    %102 = vxpose.xlu0.b32.cont [6/16] %v70, 128
    %103 = vxpose.xlu0.b32.cont [7/16] %v71, 128
    %104 = vxpose.xlu0.b32.cont [8/16] %v72, 128
    %105 = vxpose.xlu0.b32.cont [9/16] %v73, 128
    %106 = vxpose.xlu0.b32.cont [10/16] %v74, 128
    %107 = vxpose.xlu0.b32.cont [11/16] %v75, 128
    %108 = vxpose.xlu0.b32.cont [12/16] %v76, 128
    %109 = vxpose.xlu0.b32.cont [13/16] %v77, 128
    %110 = vxpose.xlu0.b32.cont [14/16] %v78, 128
    %111 = vxpose.xlu0.b32.cont [15/16] %v79, 128
    %112 = vxpose.xlu0.b32.end [16/16] %v80, 128
    %v113 = vpop.trf.xlu0
    %v114 = vpop.trf.xlu0
    %v115 = vpop.trf.xlu0
    %v116 = vpop.trf.xlu0
    %v117 = vpop.trf.xlu0
    %v118 = vpop.trf.xlu0
    %v119 = vpop.trf.xlu0
    %v120 = vpop.trf.xlu0
    %v121 = vpop.trf.xlu0
    %v122 = vpop.trf.xlu0
    %v123 = vpop.trf.xlu0
    %v124 = vpop.trf.xlu0
    %v125 = vpop.trf.xlu0
    %v126 = vpop.trf.xlu0
    %v127 = vpop.trf.xlu0
    %v128 = vpop.trf.xlu0
    %129 = vxpose.xlu0.b32.start [1/16] %v81, 128
    %130 = vxpose.xlu0.b32.cont [2/16] %v82, 128
    %131 = vxpose.xlu0.b32.cont [3/16] %v83, 128
    %132 = vxpose.xlu0.b32.cont [4/16] %v84, 128
    %133 = vxpose.xlu0.b32.cont [5/16] %v85, 128
    %134 = vxpose.xlu0.b32.cont [6/16] %v86, 128
    %135 = vxpose.xlu0.b32.cont [7/16] %v87, 128
    %136 = vxpose.xlu0.b32.cont [8/16] %v88, 128
    %137 = vxpose.xlu0.b32.cont [9/16] %v89, 128
    %138 = vxpose.xlu0.b32.cont [10/16] %v90, 128
    %139 = vxpose.xlu0.b32.cont [11/16] %v91, 128
    %140 = vxpose.xlu0.b32.cont [12/16] %v92, 128
    %141 = vxpose.xlu0.b32.cont [13/16] %v93, 128
    %142 = vxpose.xlu0.b32.cont [14/16] %v94, 128
    %143 = vxpose.xlu0.b32.cont [15/16] %v95, 128
    %144 = vxpose.xlu0.b32.end [16/16] %v96, 128
    %v145 = vpop.trf.xlu0
    %v146 = vpop.trf.xlu0
    %v147 = vpop.trf.xlu0
    %v148 = vpop.trf.xlu0
    %v149 = vpop.trf.xlu0
    %v150 = vpop.trf.xlu0
    %v151 = vpop.trf.xlu0
    %v152 = vpop.trf.xlu0
    %v153 = vpop.trf.xlu0
    %v154 = vpop.trf.xlu0
    %v155 = vpop.trf.xlu0
    %v156 = vpop.trf.xlu0
    %v157 = vpop.trf.xlu0
    %v158 = vpop.trf.xlu0
    %v159 = vpop.trf.xlu0
    %v160 = vpop.trf.xlu0
    %v161 = vpack.c.bf16 %v114, %v113
    %v162 = vpack.c.bf16 %v116, %v115
    %v163 = vpack.c.bf16 %v118, %v117
    %v164 = vpack.c.bf16 %v120, %v119
    %v165 = vpack.c.bf16 %v146, %v145
    %v166 = vpack.c.bf16 %v148, %v147
    %v167 = vpack.c.bf16 %v150, %v149
    %v168 = vpack.c.bf16 %v152, %v151
    %v169 = vld [vmem:[%s1] sm:$0xf]
    %v170 = vld [vmem:[%s1 + $0x4] sm:$0xf]
    %v171 = vld [vmem:[%s1 + $0x8] sm:$0xf]
    %v172 = vld [vmem:[%s1 + $0xc] sm:$0xf]
    %v173 = vld [vmem:[%s1 + $0x10] sm:$0xf]
    %v174 = vld [vmem:[%s1 + $0x14] sm:$0xf]
    %v175 = vld [vmem:[%s1 + $0x18] sm:$0xf]
    %v176 = vld [vmem:[%s1 + $0x1c] sm:$0xf]
    %v177 = vld [vmem:[%s1 + $0x20] sm:$0xf]
    %v178 = vld [vmem:[%s1 + $0x24] sm:$0xf]
    %v179 = vld [vmem:[%s1 + $0x28] sm:$0xf]
    %v180 = vld [vmem:[%s1 + $0x2c] sm:$0xf]
    %v181 = vld [vmem:[%s1 + $0x30] sm:$0xf]
    %v182 = vld [vmem:[%s1 + $0x34] sm:$0xf]
    %v183 = vld [vmem:[%s1 + $0x38] sm:$0xf]
    %v184 = vld [vmem:[%s1 + $0x3c] sm:$0xf]
    %v185 = vld [vmem:[%s2] sm:$0x1]
    %v187 = vlaneseq
    %v188 = vshrl.u32 %v187, 7
    %v189 = vsub.s32 0, %v188
    %v190 = vrot.slane %v185, %v189
    %v208 = vunpack.c.l.b16 %v169
    %v209 = vunpack.c.l.b16 %v170
    %v210 = vunpack.c.l.b16 %v171
    %v211 = vunpack.c.l.b16 %v172
    %v212 = vunpack.c.l.b16 %v173
    %v213 = vunpack.c.l.b16 %v174
    %v214 = vunpack.c.l.b16 %v175
    %v215 = vunpack.c.l.b16 %v176
    %v216 = vunpack.c.l.b16 %v177
    %v217 = vunpack.c.l.b16 %v178
    %v218 = vunpack.c.l.b16 %v179
    %v219 = vunpack.c.l.b16 %v180
    %v220 = vunpack.c.l.b16 %v181
    %v221 = vunpack.c.l.b16 %v182
    %v222 = vunpack.c.l.b16 %v183
    %v223 = vunpack.c.l.b16 %v184
    %v224 = vpack.c.b16 %v209, %v208
    %v225 = vpack.c.b16 %v211, %v210
    %v226 = vpack.c.b16 %v213, %v212
    %v227 = vpack.c.b16 %v215, %v214
    %v228 = vpack.c.b16 %v217, %v216
    %v229 = vpack.c.b16 %v219, %v218
    %v230 = vpack.c.b16 %v221, %v220
    %v231 = vpack.c.b16 %v223, %v222
    %240 = vmatprep.subr.bf16.mxu0 0
    %241 = vmatpush1.bf16.msra.mxu0 %v224
    %242 = vmatprep.subr.bf16.mxu0 0
    %243 = vmatpush1.bf16.msra.mxu0 %v225
    %244 = vmatprep.subr.bf16.mxu0 0
    %245 = vmatpush1.bf16.msra.mxu0 %v226
    %246 = vmatprep.subr.bf16.mxu0 0
    %247 = vmatpush1.bf16.msra.mxu0 %v227
    %248 = vmatprep.subr.bf16.mxu0 0
    %249 = vmatpush1.bf16.msra.mxu0 %v228
    %250 = vmatprep.subr.bf16.mxu0 0
    %251 = vmatpush1.bf16.msra.mxu0 %v229
    %252 = vmatprep.subr.bf16.mxu0 0
    %253 = vmatpush1.bf16.msra.mxu0 %v230
    %254 = vmatprep.subr.bf16.mxu0 0
    %255 = vmatpush1.bf16.msra.mxu0 %v231
    %256 = vmatprep.subr.bf16.mxu0 0
    %257 = vmatpush1.bf16.msra.mxu0 0
    %258 = vmatprep.subr.bf16.mxu0 0
    %259 = vmatpush1.bf16.msra.mxu0 0
    %260 = vmatprep.subr.bf16.mxu0 0
    %261 = vmatpush1.bf16.msra.mxu0 0
    %262 = vmatprep.subr.bf16.mxu0 0
    %263 = vmatpush1.bf16.msra.mxu0 0
    %264 = vmatprep.subr.bf16.mxu0 0
    %265 = vmatpush1.bf16.msra.mxu0 0
    %266 = vmatprep.subr.bf16.mxu0 0
    %267 = vmatpush1.bf16.msra.mxu0 0
    %268 = vmatprep.subr.bf16.mxu0 0
    %269 = vmatpush1.bf16.msra.mxu0 0
    %270 = vmatprep.subr.bf16.mxu0 0
    %271 = vmatpush1.bf16.msra.mxu0 0
    %272 = vmatprep.mubr.bf16.mxu0 0
    %273 = vmatmul.mubr.bf16.gmra.mrb[0].mxu0 %v161
    %v274 = vpop.f32.mrb[0].mxu0
    %v275 = vadd.f32 %v190, %v274
    %v276 = vpop.f32.mrb[0].mxu0
    %v277 = vpop.f32.mrb[0].mxu0
    %v278 = vadd.f32 %v190, %v277
    %v279 = vpop.f32.mrb[0].mxu0
    %280 = vmatprep.mubr.bf16.mxu0 0
    %281 = vmatmul.mubr.bf16.gmra.mrb[0].mxu0 %v162
    %v282 = vpop.f32.mrb[0].mxu0
    %v283 = vadd.f32 %v190, %v282
    %v284 = vpop.f32.mrb[0].mxu0
    %v285 = vpop.f32.mrb[0].mxu0
    %v286 = vadd.f32 %v190, %v285
    %v287 = vpop.f32.mrb[0].mxu0
    %288 = vmatprep.mubr.bf16.mxu0 0
    %289 = vmatmul.mubr.bf16.gmra.mrb[0].mxu0 %v163
    %v290 = vpop.f32.mrb[0].mxu0
    %v291 = vadd.f32 %v190, %v290
    %v292 = vpop.f32.mrb[0].mxu0
    %v293 = vpop.f32.mrb[0].mxu0
    %v294 = vadd.f32 %v190, %v293
    %v295 = vpop.f32.mrb[0].mxu0
    %296 = vmatprep.mubr.bf16.mxu0 0
    %297 = vmatmul.mubr.bf16.gmra.mrb[0].mxu0 %v164
    %v298 = vpop.f32.mrb[0].mxu0
    %v299 = vadd.f32 %v190, %v298
    %v300 = vpop.f32.mrb[0].mxu0
    %v301 = vpop.f32.mrb[0].mxu0
    %v302 = vadd.f32 %v190, %v301
    %v303 = vpop.f32.mrb[0].mxu0
    %304 = vmatprep.mubr.bf16.mxu0 0
    %305 = vmatmul.mubr.bf16.gmra.mrb[0].mxu0 %v165
    %v306 = vpop.f32.mrb[0].mxu0
    %v307 = vadd.f32 %v190, %v306
    %v308 = vpop.f32.mrb[0].mxu0
    %v309 = vpop.f32.mrb[0].mxu0
    %v310 = vadd.f32 %v190, %v309
    %v311 = vpop.f32.mrb[0].mxu0
    %312 = vmatprep.mubr.bf16.mxu0 0
    %313 = vmatmul.mubr.bf16.gmra.mrb[0].mxu0 %v166
    %v314 = vpop.f32.mrb[0].mxu0
    %v315 = vadd.f32 %v190, %v314
    %v316 = vpop.f32.mrb[0].mxu0
    %v317 = vpop.f32.mrb[0].mxu0
    %v318 = vadd.f32 %v190, %v317
    %v319 = vpop.f32.mrb[0].mxu0
    %320 = vmatprep.mubr.bf16.mxu0 0
    %321 = vmatmul.mubr.bf16.gmra.mrb[0].mxu0 %v167
    %v322 = vpop.f32.mrb[0].mxu0
    %v323 = vadd.f32 %v190, %v322
    %v324 = vpop.f32.mrb[0].mxu0
    %v325 = vpop.f32.mrb[0].mxu0
    %v326 = vadd.f32 %v190, %v325
    %v327 = vpop.f32.mrb[0].mxu0
    %328 = vmatprep.mubr.bf16.mxu0 0
    %329 = vmatmul.mubr.bf16.gmra.mrb[0].mxu0 %v168
    %v330 = vpop.f32.mrb[0].mxu0
    %v331 = vadd.f32 %v190, %v330
    %v332 = vpop.f32.mrb[0].mxu0
    %v333 = vpop.f32.mrb[0].mxu0
    %v334 = vadd.f32 %v190, %v333
    %v335 = vpop.f32.mrb[0].mxu0
    %336 = vdwg.mxu0
    %v337 = vxor.u32 %v275, 2147483648
    %v338 = vxor.u32 %v278, 2147483648
    %v339 = vxor.u32 %v283, 2147483648
    %v340 = vxor.u32 %v286, 2147483648
    %v341 = vxor.u32 %v291, 2147483648
    %v342 = vxor.u32 %v294, 2147483648
    %v343 = vxor.u32 %v299, 2147483648
    %v344 = vxor.u32 %v302, 2147483648
    %v345 = vxor.u32 %v307, 2147483648
    %v346 = vxor.u32 %v310, 2147483648
    %v347 = vxor.u32 %v315, 2147483648
    %v348 = vxor.u32 %v318, 2147483648
    %v349 = vxor.u32 %v323, 2147483648
    %v350 = vxor.u32 %v326, 2147483648
    %v351 = vxor.u32 %v331, 2147483648
    %v352 = vxor.u32 %v334, 2147483648
    %v353 = vmul.f32 %v337, 1.442695
    %v354 = vpow.pop %v353
    %v355 = vmul.f32 %v338, 1.442695
    %v356 = vpow.pop %v355
    %v357 = vmul.f32 %v339, 1.442695
    %v358 = vpow.pop %v357
    %v359 = vmul.f32 %v340, 1.442695
    %v360 = vpow.pop %v359
    %v361 = vmul.f32 %v341, 1.442695
    %v362 = vpow.pop %v361
    %v363 = vmul.f32 %v342, 1.442695
    %v364 = vpow.pop %v363
    %v365 = vmul.f32 %v343, 1.442695
    %v366 = vpow.pop %v365
    %v367 = vmul.f32 %v344, 1.442695
    %v368 = vpow.pop %v367
    %v369 = vmul.f32 %v345, 1.442695
    %v370 = vpow.pop %v369
    %v371 = vmul.f32 %v346, 1.442695
    %v372 = vpow.pop %v371
    %v373 = vmul.f32 %v347, 1.442695
    %v374 = vpow.pop %v373
    %v375 = vmul.f32 %v348, 1.442695
    %v376 = vpow.pop %v375
    %v377 = vmul.f32 %v349, 1.442695
    %v378 = vpow.pop %v377
    %v379 = vmul.f32 %v350, 1.442695
    %v380 = vpow.pop %v379
    %v381 = vmul.f32 %v351, 1.442695
    %v382 = vpow.pop %v381
    %v383 = vmul.f32 %v352, 1.442695
    %v384 = vpow.pop %v383
    %v385 = vadd.f32 %v354, 1.0
    %v386 = vadd.f32 %v356, 1.0
    %v387 = vadd.f32 %v358, 1.0
    %v388 = vadd.f32 %v360, 1.0
    %v389 = vadd.f32 %v362, 1.0
    %v390 = vadd.f32 %v364, 1.0
    %v391 = vadd.f32 %v366, 1.0
    %v392 = vadd.f32 %v368, 1.0
    %v393 = vadd.f32 %v370, 1.0
    %v394 = vadd.f32 %v372, 1.0
    %v395 = vadd.f32 %v374, 1.0
    %v396 = vadd.f32 %v376, 1.0
    %v397 = vadd.f32 %v378, 1.0
    %v398 = vadd.f32 %v380, 1.0
    %v399 = vadd.f32 %v382, 1.0
    %v400 = vadd.f32 %v384, 1.0
    %v401 = vrcp.pop %v385
    %v402 = vmul.f32 1.0, %v401
    %v403 = vrcp.pop %v386
    %v404 = vmul.f32 1.0, %v403
    %v405 = vrcp.pop %v387
    %v406 = vmul.f32 1.0, %v405
    %v407 = vrcp.pop %v388
    %v408 = vmul.f32 1.0, %v407
    %v409 = vrcp.pop %v389
    %v410 = vmul.f32 1.0, %v409
    %v411 = vrcp.pop %v390
    %v412 = vmul.f32 1.0, %v411
    %v413 = vrcp.pop %v391
    %v414 = vmul.f32 1.0, %v413
    %v415 = vrcp.pop %v392
    %v416 = vmul.f32 1.0, %v415
    %v417 = vrcp.pop %v393
    %v418 = vmul.f32 1.0, %v417
    %v419 = vrcp.pop %v394
    %v420 = vmul.f32 1.0, %v419
    %v421 = vrcp.pop %v395
    %v422 = vmul.f32 1.0, %v421
    %v423 = vrcp.pop %v396
    %v424 = vmul.f32 1.0, %v423
    %v425 = vrcp.pop %v397
    %v426 = vmul.f32 1.0, %v425
    %v427 = vrcp.pop %v398
    %v428 = vmul.f32 1.0, %v427
    %v429 = vrcp.pop %v399
    %v430 = vmul.f32 1.0, %v429
    %v431 = vrcp.pop %v400
    %v432 = vmul.f32 1.0, %v431
    %v433 = vmul.f32 %v275, %v402
    %v434 = vmul.f32 %v278, %v404
    %v435 = vmul.f32 %v283, %v406
    %v436 = vmul.f32 %v286, %v408
    %v437 = vmul.f32 %v291, %v410
    %v438 = vmul.f32 %v294, %v412
    %v439 = vmul.f32 %v299, %v414
    %v440 = vmul.f32 %v302, %v416
    %v441 = vmul.f32 %v307, %v418
    %v442 = vmul.f32 %v310, %v420
    %v443 = vmul.f32 %v315, %v422
    %v444 = vmul.f32 %v318, %v424
    %v445 = vmul.f32 %v323, %v426
    %v446 = vmul.f32 %v326, %v428
    %v447 = vmul.f32 %v331, %v430
    %v448 = vmul.f32 %v334, %v432
    %v449 = vpack.c.bf16 %v434, %v433
    %v450 = vpack.c.bf16 %v436, %v435
    %v451 = vpack.c.bf16 %v438, %v437
    %v452 = vpack.c.bf16 %v440, %v439
    %v453 = vpack.c.bf16 %v442, %v441
    %v454 = vpack.c.bf16 %v444, %v443
    %v455 = vpack.c.bf16 %v446, %v445
    %v456 = vpack.c.bf16 %v448, %v447
    %v457 = vld [vmem:[%s3] sm:$0xf]
    %v458 = vld [vmem:[%s3 + $0x4] sm:$0xf]
    %v459 = vld [vmem:[%s3 + $0x8] sm:$0xf]
    %v460 = vld [vmem:[%s3 + $0xc] sm:$0xf]
    %v461 = vld [vmem:[%s3 + $0x10] sm:$0xf]
    %v462 = vld [vmem:[%s3 + $0x14] sm:$0xf]
    %v463 = vld [vmem:[%s3 + $0x18] sm:$0xf]
    %v464 = vld [vmem:[%s3 + $0x1c] sm:$0xf]
    %v465 = vld [vmem:[%s4] sm:$0x1]
    %v467 = vlaneseq
    %v468 = vshrl.u32 %v467, 7
    %v469 = vsub.s32 0, %v468
    %v470 = vrot.slane %v465, %v469
    %480 = vrot.lane.b32.xlu0 %v449, 64
    %v481 = vpop.permute.xlu0 %480
    %482 = vrot.lane.b32.xlu0 %v450, 64
    %v483 = vpop.permute.xlu0 %482
    %484 = vrot.lane.b32.xlu0 %v451, 64
    %v485 = vpop.permute.xlu0 %484
    %486 = vrot.lane.b32.xlu0 %v452, 64
    %v487 = vpop.permute.xlu0 %486
    %488 = vrot.lane.b32.xlu0 %v453, 64
    %v489 = vpop.permute.xlu0 %488
    %490 = vrot.lane.b32.xlu0 %v454, 64
    %v491 = vpop.permute.xlu0 %490
    %492 = vrot.lane.b32.xlu0 %v455, 64
    %v493 = vpop.permute.xlu0 %492
    %494 = vrot.lane.b32.xlu0 %v456, 64
    %v495 = vpop.permute.xlu0 %494
    %v504 = vunpack.c.l.b16 %v457
    %v505 = vunpack.c.l.b16 %v458
    %v506 = vunpack.c.l.b16 %v459
    %v507 = vunpack.c.l.b16 %v460
    %v508 = vunpack.c.l.b16 %v461
    %v509 = vunpack.c.l.b16 %v462
    %v510 = vunpack.c.l.b16 %v463
    %v511 = vunpack.c.l.b16 %v464
    %v512 = vpack.c.b16 %v505, %v504
    %v513 = vpack.c.b16 %v507, %v506
    %v514 = vpack.c.b16 %v509, %v508
    %v515 = vpack.c.b16 %v511, %v510
    %vm520 = vcmask 523264
    %v522 = vsel %vm520, %v481, 0
    %v525 = vsel %vm520, %v483, 0
    %v528 = vsel %vm520, %v485, 0
    %v531 = vsel %vm520, %v487, 0
    %v534 = vsel %vm520, %v489, 0
    %v537 = vsel %vm520, %v491, 0
    %v540 = vsel %vm520, %v493, 0
    %v543 = vsel %vm520, %v495, 0
    %545 = vmatprep.subr.bf16.mxu0 0
    %546 = vmatpush1.bf16.msra.mxu0 %v512
    %547 = vmatprep.subr.bf16.mxu0 0
    %548 = vmatpush1.bf16.msra.mxu0 %v513
    %549 = vmatprep.subr.bf16.mxu0 0
    %550 = vmatpush1.bf16.msra.mxu0 %v514
    %551 = vmatprep.subr.bf16.mxu0 0
    %552 = vmatpush1.bf16.msra.mxu0 %v515
    %553 = vmatprep.subr.bf16.mxu0 0
    %554 = vmatpush1.bf16.msra.mxu0 0
    %555 = vmatprep.subr.bf16.mxu0 0
    %556 = vmatpush1.bf16.msra.mxu0 0
    %557 = vmatprep.subr.bf16.mxu0 0
    %558 = vmatpush1.bf16.msra.mxu0 0
    %559 = vmatprep.subr.bf16.mxu0 0
    %560 = vmatpush1.bf16.msra.mxu0 0
    %561 = vmatprep.subr.bf16.mxu0 0
    %562 = vmatpush1.bf16.msra.mxu0 0
    %563 = vmatprep.subr.bf16.mxu0 0
    %564 = vmatpush1.bf16.msra.mxu0 0
    %565 = vmatprep.subr.bf16.mxu0 0
    %566 = vmatpush1.bf16.msra.mxu0 0
    %567 = vmatprep.subr.bf16.mxu0 0
    %568 = vmatpush1.bf16.msra.mxu0 0
    %569 = vmatprep.subr.bf16.mxu0 0
    %570 = vmatpush1.bf16.msra.mxu0 0
    %571 = vmatprep.subr.bf16.mxu0 0
    %572 = vmatpush1.bf16.msra.mxu0 0
    %573 = vmatprep.subr.bf16.mxu0 0
    %574 = vmatpush1.bf16.msra.mxu0 0
    %575 = vmatprep.subr.bf16.mxu0 0
    %576 = vmatpush1.bf16.msra.mxu0 0
    %577 = vmatprep.mubr.bf16.mxu0 0
    %578 = vmatmul.mubr.bf16.gmra.mrb[0].mxu0 %v522
    %v579 = vpop.f32.mrb[0].mxu0
    %v580 = vadd.f32 %v470, %v579
    %v581 = vpop.f32.mrb[0].mxu0
    %v582 = vpop.f32.mrb[0].mxu0
    %v583 = vadd.f32 %v470, %v582
    %v584 = vpop.f32.mrb[0].mxu0
    %585 = vmatprep.mubr.bf16.mxu0 0
    %586 = vmatmul.mubr.bf16.gmra.mrb[0].mxu0 %v525
    %v587 = vpop.f32.mrb[0].mxu0
    %v588 = vadd.f32 %v470, %v587
    %v589 = vpop.f32.mrb[0].mxu0
    %v590 = vpop.f32.mrb[0].mxu0
    %v591 = vadd.f32 %v470, %v590
    %v592 = vpop.f32.mrb[0].mxu0
    %593 = vmatprep.mubr.bf16.mxu0 0
    %594 = vmatmul.mubr.bf16.gmra.mrb[0].mxu0 %v528
    %v595 = vpop.f32.mrb[0].mxu0
    %v596 = vadd.f32 %v470, %v595
    %v597 = vpop.f32.mrb[0].mxu0
    %v598 = vpop.f32.mrb[0].mxu0
    %v599 = vadd.f32 %v470, %v598
    %v600 = vpop.f32.mrb[0].mxu0
    %601 = vmatprep.mubr.bf16.mxu0 0
    %602 = vmatmul.mubr.bf16.gmra.mrb[0].mxu0 %v531
    %v603 = vpop.f32.mrb[0].mxu0
    %v604 = vadd.f32 %v470, %v603
    %v605 = vpop.f32.mrb[0].mxu0
    %v606 = vpop.f32.mrb[0].mxu0
    %v607 = vadd.f32 %v470, %v606
    %v608 = vpop.f32.mrb[0].mxu0
    %609 = vmatprep.mubr.bf16.mxu0 0
    %610 = vmatmul.mubr.bf16.gmra.mrb[0].mxu0 %v534
    %v611 = vpop.f32.mrb[0].mxu0
    %v612 = vadd.f32 %v470, %v611
    %v613 = vpop.f32.mrb[0].mxu0
    %v614 = vpop.f32.mrb[0].mxu0
    %v615 = vadd.f32 %v470, %v614
    %v616 = vpop.f32.mrb[0].mxu0
    %617 = vmatprep.mubr.bf16.mxu0 0
    %618 = vmatmul.mubr.bf16.gmra.mrb[0].mxu0 %v537
    %v619 = vpop.f32.mrb[0].mxu0
    %v620 = vadd.f32 %v470, %v619
    %v621 = vpop.f32.mrb[0].mxu0
    %v622 = vpop.f32.mrb[0].mxu0
    %v623 = vadd.f32 %v470, %v622
    %v624 = vpop.f32.mrb[0].mxu0
    %625 = vmatprep.mubr.bf16.mxu0 0
    %626 = vmatmul.mubr.bf16.gmra.mrb[0].mxu0 %v540
    %v627 = vpop.f32.mrb[0].mxu0
    %v628 = vadd.f32 %v470, %v627
    %v629 = vpop.f32.mrb[0].mxu0
    %v630 = vpop.f32.mrb[0].mxu0
    %v631 = vadd.f32 %v470, %v630
    %v632 = vpop.f32.mrb[0].mxu0
    %633 = vmatprep.mubr.bf16.mxu0 0
    %634 = vmatmul.mubr.bf16.gmra.mrb[0].mxu0 %v543
    %v635 = vpop.f32.mrb[0].mxu0
    %v636 = vadd.f32 %v470, %v635
    %v637 = vpop.f32.mrb[0].mxu0
    %v638 = vpop.f32.mrb[0].mxu0
    %v639 = vadd.f32 %v470, %v638
    %v640 = vpop.f32.mrb[0].mxu0
    %641 = vdwg.mxu0
    %v642 = vpack.c.bf16 %v583, %v580
    %v643 = vpack.c.bf16 %v591, %v588
    %v644 = vpack.c.bf16 %v599, %v596
    %v645 = vpack.c.bf16 %v607, %v604
    %v646 = vpack.c.bf16 %v615, %v612
    %v647 = vpack.c.bf16 %v623, %v620
    %v648 = vpack.c.bf16 %v631, %v628
    %v649 = vpack.c.bf16 %v639, %v636
    %654 = vrot.lane.b32.xlu0 %v642, 96
    %v655 = vpop.permute.xlu0 %654
    %656 = vrot.lane.b32.xlu0 %v643, 96
    %v657 = vpop.permute.xlu0 %656
    %658 = vrot.lane.b32.xlu0 %v644, 96
    %v659 = vpop.permute.xlu0 %658
    %660 = vrot.lane.b32.xlu0 %v645, 96
    %v661 = vpop.permute.xlu0 %660
    %vm662 = vcmask 261120
    %v664 = vsel %vm662, %v642, 0
    %v667 = vsel %vm662, %v643, 0
    %v670 = vsel %vm662, %v644, 0
    %v673 = vsel %vm662, %v645, 0
    %v676 = vsel %vm662, %v655, 0
    %v679 = vsel %vm662, %v657, 0
    %v682 = vsel %vm662, %v659, 0
    %v685 = vsel %vm662, %v661, 0
    %687 = vmatprep.subr.bf16.mxu0 0
    %688 = vmatpush1.bf16.xpose.msra.mxu0 %v676
    %689 = vmatprep.subr.bf16.mxu0 0
    %690 = vmatpush1.bf16.xpose.msra.mxu0 %v679
    %691 = vmatprep.subr.bf16.mxu0 0
    %692 = vmatpush1.bf16.xpose.msra.mxu0 %v682
    %693 = vmatprep.subr.bf16.mxu0 0
    %694 = vmatpush1.bf16.xpose.msra.mxu0 %v685
    %695 = vmatprep.subr.bf16.mxu0 0
    %696 = vmatpush1.bf16.xpose.msra.mxu0 0
    %697 = vmatprep.subr.bf16.mxu0 0
    %698 = vmatpush1.bf16.xpose.msra.mxu0 0
    %699 = vmatprep.subr.bf16.mxu0 0
    %700 = vmatpush1.bf16.xpose.msra.mxu0 0
    %701 = vmatprep.subr.bf16.mxu0 0
    %702 = vmatpush1.bf16.xpose.msra.mxu0 0
    %703 = vmatprep.subr.bf16.mxu0 0
    %704 = vmatpush1.bf16.xpose.msra.mxu0 0
    %705 = vmatprep.subr.bf16.mxu0 0
    %706 = vmatpush1.bf16.xpose.msra.mxu0 0
    %707 = vmatprep.subr.bf16.mxu0 0
    %708 = vmatpush1.bf16.xpose.msra.mxu0 0
    %709 = vmatprep.subr.bf16.mxu0 0
    %710 = vmatpush1.bf16.xpose.msra.mxu0 0
    %711 = vmatprep.subr.bf16.mxu0 0
    %712 = vmatpush1.bf16.xpose.msra.mxu0 0
    %713 = vmatprep.subr.bf16.mxu0 0
    %714 = vmatpush1.bf16.xpose.msra.mxu0 0
    %715 = vmatprep.subr.bf16.mxu0 0
    %716 = vmatpush1.bf16.xpose.msra.mxu0 0
    %717 = vmatprep.subr.bf16.mxu0 0
    %718 = vmatpush1.bf16.xpose.msra.mxu0 0
    %719 = vmatprep.mubr.bf16.mxu0 0
    %720 = vmatmul.mubr.bf16.gmra.mrb[0].mxu0 %v664
    %v721 = vpop.f32.mrb[0].mxu0
    %v722 = vadd.f32 0.0, %v721
    %v723 = vpop.f32.mrb[0].mxu0
    %v724 = vpop.f32.mrb[0].mxu0
    %v725 = vadd.f32 0.0, %v724
    %v726 = vpop.f32.mrb[0].mxu0
    %727 = vmatprep.mubr.bf16.mxu0 0
    %728 = vmatmul.mubr.bf16.gmra.mrb[0].mxu0 %v667
    %v729 = vpop.f32.mrb[0].mxu0
    %v730 = vadd.f32 0.0, %v729
    %v731 = vpop.f32.mrb[0].mxu0
    %v732 = vpop.f32.mrb[0].mxu0
    %v733 = vadd.f32 0.0, %v732
    %v734 = vpop.f32.mrb[0].mxu0
    %735 = vmatprep.mubr.bf16.mxu0 0
    %736 = vmatmul.mubr.bf16.gmra.mrb[0].mxu0 %v670
    %v737 = vpop.f32.mrb[0].mxu0
    %v738 = vadd.f32 0.0, %v737
    %v739 = vpop.f32.mrb[0].mxu0
    %v740 = vpop.f32.mrb[0].mxu0
    %v741 = vadd.f32 0.0, %v740
    %v742 = vpop.f32.mrb[0].mxu0
    %743 = vmatprep.mubr.bf16.mxu0 0
    %744 = vmatmul.mubr.bf16.gmra.mrb[0].mxu0 %v673
    %v745 = vpop.f32.mrb[0].mxu0
    %v746 = vadd.f32 0.0, %v745
    %v747 = vpop.f32.mrb[0].mxu0
    %v748 = vpop.f32.mrb[0].mxu0
    %v749 = vadd.f32 0.0, %v748
    %v750 = vpop.f32.mrb[0].mxu0
    %751 = vdwg.mxu0
    %756 = vrot.lane.b32.xlu0 %v646, 96
    %v757 = vpop.permute.xlu0 %756
    %758 = vrot.lane.b32.xlu0 %v647, 96
    %v759 = vpop.permute.xlu0 %758
    %760 = vrot.lane.b32.xlu0 %v648, 96
    %v761 = vpop.permute.xlu0 %760
    %762 = vrot.lane.b32.xlu0 %v649, 96
    %v763 = vpop.permute.xlu0 %762
    %v765 = vsel %vm662, %v646, 0
    %v768 = vsel %vm662, %v647, 0
    %v771 = vsel %vm662, %v648, 0
    %v774 = vsel %vm662, %v649, 0
    %v777 = vsel %vm662, %v757, 0
    %v780 = vsel %vm662, %v759, 0
    %v783 = vsel %vm662, %v761, 0
    %v786 = vsel %vm662, %v763, 0
    %788 = vmatprep.subr.bf16.mxu0 0
    %789 = vmatpush1.bf16.xpose.msra.mxu0 %v777
    %790 = vmatprep.subr.bf16.mxu0 0
    %791 = vmatpush1.bf16.xpose.msra.mxu0 %v780
    %792 = vmatprep.subr.bf16.mxu0 0
    %793 = vmatpush1.bf16.xpose.msra.mxu0 %v783
    %794 = vmatprep.subr.bf16.mxu0 0
    %795 = vmatpush1.bf16.xpose.msra.mxu0 %v786
    %796 = vmatprep.subr.bf16.mxu0 0
    %797 = vmatpush1.bf16.xpose.msra.mxu0 0
    %798 = vmatprep.subr.bf16.mxu0 0
    %799 = vmatpush1.bf16.xpose.msra.mxu0 0
    %800 = vmatprep.subr.bf16.mxu0 0
    %801 = vmatpush1.bf16.xpose.msra.mxu0 0
    %802 = vmatprep.subr.bf16.mxu0 0
    %803 = vmatpush1.bf16.xpose.msra.mxu0 0
    %804 = vmatprep.subr.bf16.mxu0 0
    %805 = vmatpush1.bf16.xpose.msra.mxu0 0
    %806 = vmatprep.subr.bf16.mxu0 0
    %807 = vmatpush1.bf16.xpose.msra.mxu0 0
    %808 = vmatprep.subr.bf16.mxu0 0
    %809 = vmatpush1.bf16.xpose.msra.mxu0 0
    %810 = vmatprep.subr.bf16.mxu0 0
    %811 = vmatpush1.bf16.xpose.msra.mxu0 0
    %812 = vmatprep.subr.bf16.mxu0 0
    %813 = vmatpush1.bf16.xpose.msra.mxu0 0
    %814 = vmatprep.subr.bf16.mxu0 0
    %815 = vmatpush1.bf16.xpose.msra.mxu0 0
    %816 = vmatprep.subr.bf16.mxu0 0
    %817 = vmatpush1.bf16.xpose.msra.mxu0 0
    %818 = vmatprep.subr.bf16.mxu0 0
    %819 = vmatpush1.bf16.xpose.msra.mxu0 0
    %820 = vmatprep.mubr.bf16.mxu0 0
    %821 = vmatmul.mubr.bf16.gmra.mrb[0].mxu0 %v765
    %v822 = vpop.f32.mrb[0].mxu0
    %v823 = vadd.f32 0.0, %v822
    %v824 = vpop.f32.mrb[0].mxu0
    %v825 = vpop.f32.mrb[0].mxu0
    %v826 = vadd.f32 0.0, %v825
    %v827 = vpop.f32.mrb[0].mxu0
    %828 = vmatprep.mubr.bf16.mxu0 0
    %829 = vmatmul.mubr.bf16.gmra.mrb[0].mxu0 %v768
    %v830 = vpop.f32.mrb[0].mxu0
    %v831 = vadd.f32 0.0, %v830
    %v832 = vpop.f32.mrb[0].mxu0
    %v833 = vpop.f32.mrb[0].mxu0
    %v834 = vadd.f32 0.0, %v833
    %v835 = vpop.f32.mrb[0].mxu0
    %836 = vmatprep.mubr.bf16.mxu0 0
    %837 = vmatmul.mubr.bf16.gmra.mrb[0].mxu0 %v771
    %v838 = vpop.f32.mrb[0].mxu0
    %v839 = vadd.f32 0.0, %v838
    %v840 = vpop.f32.mrb[0].mxu0
    %v841 = vpop.f32.mrb[0].mxu0
    %v842 = vadd.f32 0.0, %v841
    %v843 = vpop.f32.mrb[0].mxu0
    %844 = vmatprep.mubr.bf16.mxu0 0
    %845 = vmatmul.mubr.bf16.gmra.mrb[0].mxu0 %v774
    %v846 = vpop.f32.mrb[0].mxu0
    %v847 = vadd.f32 0.0, %v846
    %v848 = vpop.f32.mrb[0].mxu0
    %v849 = vpop.f32.mrb[0].mxu0
    %v850 = vadd.f32 0.0, %v849
    %v851 = vpop.f32.mrb[0].mxu0
    %852 = vdwg.mxu0
    %v853 = vsel %vm520, %v722, -inf
    %854 = vmax.xlane.f32.xlu0 %v853
    %v855 = vpop.xlane.xlu0 %854
    %v856 = vsel %vm520, %v725, -inf
    %857 = vmax.xlane.f32.xlu0 %v856
    %v858 = vpop.xlane.xlu0 %857
    %v859 = vsel %vm520, %v730, -inf
    %860 = vmax.xlane.f32.xlu0 %v859
    %v861 = vpop.xlane.xlu0 %860
    %v862 = vsel %vm520, %v733, -inf
    %863 = vmax.xlane.f32.xlu0 %v862
    %v864 = vpop.xlane.xlu0 %863
    %v865 = vsel %vm520, %v738, -inf
    %866 = vmax.xlane.f32.xlu0 %v865
    %v867 = vpop.xlane.xlu0 %866
    %v868 = vsel %vm520, %v741, -inf
    %869 = vmax.xlane.f32.xlu0 %v868
    %v870 = vpop.xlane.xlu0 %869
    %v871 = vsel %vm520, %v746, -inf
    %872 = vmax.xlane.f32.xlu0 %v871
    %v873 = vpop.xlane.xlu0 %872
    %v874 = vsel %vm520, %v749, -inf
    %875 = vmax.xlane.f32.xlu0 %v874
    %v876 = vpop.xlane.xlu0 %875
    %v877 = vsel %vm520, %v823, -inf
    %878 = vmax.xlane.f32.xlu0 %v877
    %v879 = vpop.xlane.xlu0 %878
    %v880 = vsel %vm520, %v826, -inf
    %881 = vmax.xlane.f32.xlu0 %v880
    %v882 = vpop.xlane.xlu0 %881
    %v883 = vsel %vm520, %v831, -inf
    %884 = vmax.xlane.f32.xlu0 %v883
    %v885 = vpop.xlane.xlu0 %884
    %v886 = vsel %vm520, %v834, -inf
    %887 = vmax.xlane.f32.xlu0 %v886
    %v888 = vpop.xlane.xlu0 %887
    %v889 = vsel %vm520, %v839, -inf
    %890 = vmax.xlane.f32.xlu0 %v889
    %v891 = vpop.xlane.xlu0 %890
    %v892 = vsel %vm520, %v842, -inf
    %893 = vmax.xlane.f32.xlu0 %v892
    %v894 = vpop.xlane.xlu0 %893
    %v895 = vsel %vm520, %v847, -inf
    %896 = vmax.xlane.f32.xlu0 %v895
    %v897 = vpop.xlane.xlu0 %896
    %v898 = vsel %vm520, %v850, -inf
    %899 = vmax.xlane.f32.xlu0 %v898
    %v900 = vpop.xlane.xlu0 %899
    %v901 = vsub.f32 %v722, %v855
    %v902 = vsub.f32 %v725, %v858
    %v903 = vsub.f32 %v730, %v861
    %v904 = vsub.f32 %v733, %v864
    %v905 = vsub.f32 %v738, %v867
    %v906 = vsub.f32 %v741, %v870
    %v907 = vsub.f32 %v746, %v873
    %v908 = vsub.f32 %v749, %v876
    %v909 = vsub.f32 %v823, %v879
    %v910 = vsub.f32 %v826, %v882
    %v911 = vsub.f32 %v831, %v885
    %v912 = vsub.f32 %v834, %v888
    %v913 = vsub.f32 %v839, %v891
    %v914 = vsub.f32 %v842, %v894
    %v915 = vsub.f32 %v847, %v897
    %v916 = vsub.f32 %v850, %v900
    %v917 = vmul.f32 %v901, 1.442695
    %v918 = vpow.pop %v917
    %v919 = vmul.f32 %v902, 1.442695
    %v920 = vpow.pop %v919
    %v921 = vmul.f32 %v903, 1.442695
    %v922 = vpow.pop %v921
    %v923 = vmul.f32 %v904, 1.442695
    %v924 = vpow.pop %v923
    %v925 = vmul.f32 %v905, 1.442695
    %v926 = vpow.pop %v925
    %v927 = vmul.f32 %v906, 1.442695
    %v928 = vpow.pop %v927
    %v929 = vmul.f32 %v907, 1.442695
    %v930 = vpow.pop %v929
    %v931 = vmul.f32 %v908, 1.442695
    %v932 = vpow.pop %v931
    %v933 = vmul.f32 %v909, 1.442695
    %v934 = vpow.pop %v933
    %v935 = vmul.f32 %v910, 1.442695
    %v936 = vpow.pop %v935
    %v937 = vmul.f32 %v911, 1.442695
    %v938 = vpow.pop %v937
    %v939 = vmul.f32 %v912, 1.442695
    %v940 = vpow.pop %v939
    %v941 = vmul.f32 %v913, 1.442695
    %v942 = vpow.pop %v941
    %v943 = vmul.f32 %v914, 1.442695
    %v944 = vpow.pop %v943
    %v945 = vmul.f32 %v915, 1.442695
    %v946 = vpow.pop %v945
    %v947 = vmul.f32 %v916, 1.442695
    %v948 = vpow.pop %v947
    %v949 = vsel %vm520, %v918, 0.0
    %950 = vadd.xlane.f32.xlu0 %v949
    %v951 = vpop.xlane.xlu0 %950
    %v952 = vsel %vm520, %v920, 0.0
    %953 = vadd.xlane.f32.xlu0 %v952
    %v954 = vpop.xlane.xlu0 %953
    %v955 = vsel %vm520, %v922, 0.0
    %956 = vadd.xlane.f32.xlu0 %v955
    %v957 = vpop.xlane.xlu0 %956
    %v958 = vsel %vm520, %v924, 0.0
    %959 = vadd.xlane.f32.xlu0 %v958
    %v960 = vpop.xlane.xlu0 %959
    %v961 = vsel %vm520, %v926, 0.0
    %962 = vadd.xlane.f32.xlu0 %v961
    %v963 = vpop.xlane.xlu0 %962
    %v964 = vsel %vm520, %v928, 0.0
    %965 = vadd.xlane.f32.xlu0 %v964
    %v966 = vpop.xlane.xlu0 %965
    %v967 = vsel %vm520, %v930, 0.0
    %968 = vadd.xlane.f32.xlu0 %v967
    %v969 = vpop.xlane.xlu0 %968
    %v970 = vsel %vm520, %v932, 0.0
    %971 = vadd.xlane.f32.xlu0 %v970
    %v972 = vpop.xlane.xlu0 %971
    %v973 = vsel %vm520, %v934, 0.0
    %974 = vadd.xlane.f32.xlu0 %v973
    %v975 = vpop.xlane.xlu0 %974
    %v976 = vsel %vm520, %v936, 0.0
    %977 = vadd.xlane.f32.xlu0 %v976
    %v978 = vpop.xlane.xlu0 %977
    %v979 = vsel %vm520, %v938, 0.0
    %980 = vadd.xlane.f32.xlu0 %v979
    %v981 = vpop.xlane.xlu0 %980
    %v982 = vsel %vm520, %v940, 0.0
    %983 = vadd.xlane.f32.xlu0 %v982
    %v984 = vpop.xlane.xlu0 %983
    %v985 = vsel %vm520, %v942, 0.0
    %986 = vadd.xlane.f32.xlu0 %v985
    %v987 = vpop.xlane.xlu0 %986
    %v988 = vsel %vm520, %v944, 0.0
    %989 = vadd.xlane.f32.xlu0 %v988
    %v990 = vpop.xlane.xlu0 %989
    %v991 = vsel %vm520, %v946, 0.0
    %992 = vadd.xlane.f32.xlu0 %v991
    %v993 = vpop.xlane.xlu0 %992
    %v994 = vsel %vm520, %v948, 0.0
    %995 = vadd.xlane.f32.xlu0 %v994
    %v996 = vpop.xlane.xlu0 %995
    %v997 = vrcp.pop %v951
    %v998 = vrcp.pop %v954
    %v999 = vrcp.pop %v957
    %v1000 = vrcp.pop %v960
    %v1001 = vrcp.pop %v963
    %v1002 = vrcp.pop %v966
    %v1003 = vrcp.pop %v969
    %v1004 = vrcp.pop %v972
    %v1005 = vrcp.pop %v975
    %v1006 = vrcp.pop %v978
    %v1007 = vrcp.pop %v981
    %v1008 = vrcp.pop %v984
    %v1009 = vrcp.pop %v987
    %v1010 = vrcp.pop %v990
    %v1011 = vrcp.pop %v993
    %v1012 = vrcp.pop %v996
    %v1013 = vmul.f32 %v918, %v997
    %v1014 = vmul.f32 %v920, %v998
    %v1015 = vmul.f32 %v922, %v999
    %v1016 = vmul.f32 %v924, %v1000
    %v1017 = vmul.f32 %v926, %v1001
    %v1018 = vmul.f32 %v928, %v1002
    %v1019 = vmul.f32 %v930, %v1003
    %v1020 = vmul.f32 %v932, %v1004
    %v1021 = vmul.f32 %v934, %v1005
    %v1022 = vmul.f32 %v936, %v1006
    %v1023 = vmul.f32 %v938, %v1007
    %v1024 = vmul.f32 %v940, %v1008
    %v1025 = vmul.f32 %v942, %v1009
    %v1026 = vmul.f32 %v944, %v1010
    %v1027 = vmul.f32 %v946, %v1011
    %v1028 = vmul.f32 %v948, %v1012
    %v1029 = vpack.c.bf16 %v1014, %v1013
    %v1030 = vpack.c.bf16 %v1016, %v1015
    %v1031 = vpack.c.bf16 %v1018, %v1017
    %v1032 = vpack.c.bf16 %v1020, %v1019
    %v1033 = vpack.c.bf16 %v1022, %v1021
    %v1034 = vpack.c.bf16 %v1024, %v1023
    %v1035 = vpack.c.bf16 %v1026, %v1025
    %v1036 = vpack.c.bf16 %v1028, %v1027
    %1053 = vrot.lane.b32.xlu0 %v580, 64
    %v1054 = vpop.permute.xlu0 %1053
    %1055 = vrot.lane.b32.xlu0 %v583, 64
    %v1056 = vpop.permute.xlu0 %1055
    %1057 = vrot.lane.b32.xlu0 %v588, 64
    %v1058 = vpop.permute.xlu0 %1057
    %1059 = vrot.lane.b32.xlu0 %v591, 64
    %v1060 = vpop.permute.xlu0 %1059
    %1061 = vrot.lane.b32.xlu0 %v596, 64
    %v1062 = vpop.permute.xlu0 %1061
    %1063 = vrot.lane.b32.xlu0 %v599, 64
    %v1064 = vpop.permute.xlu0 %1063
    %1065 = vrot.lane.b32.xlu0 %v604, 64
    %v1066 = vpop.permute.xlu0 %1065
    %1067 = vrot.lane.b32.xlu0 %v607, 64
    %v1068 = vpop.permute.xlu0 %1067
    %1069 = vrot.lane.b32.xlu0 %v612, 64
    %v1070 = vpop.permute.xlu0 %1069
    %1071 = vrot.lane.b32.xlu0 %v615, 64
    %v1072 = vpop.permute.xlu0 %1071
    %1073 = vrot.lane.b32.xlu0 %v620, 64
    %v1074 = vpop.permute.xlu0 %1073
    %1075 = vrot.lane.b32.xlu0 %v623, 64
    %v1076 = vpop.permute.xlu0 %1075
    %1077 = vrot.lane.b32.xlu0 %v628, 64
    %v1078 = vpop.permute.xlu0 %1077
    %1079 = vrot.lane.b32.xlu0 %v631, 64
    %v1080 = vpop.permute.xlu0 %1079
    %1081 = vrot.lane.b32.xlu0 %v636, 64
    %v1082 = vpop.permute.xlu0 %1081
    %1083 = vrot.lane.b32.xlu0 %v639, 64
    %v1084 = vpop.permute.xlu0 %1083
    %v1101 = vrot.slane %v1054, 7
    %v1102 = vrot.slane %v1070, 7
    %v1103 = vrot.slane %v1056, 7
    %v1104 = vrot.slane %v1072, 7
    %v1105 = vrot.slane %v1058, 7
    %v1106 = vrot.slane %v1074, 7
    %v1107 = vrot.slane %v1060, 7
    %v1108 = vrot.slane %v1076, 7
    %v1109 = vrot.slane %v1062, 7
    %v1110 = vrot.slane %v1078, 7
    %v1111 = vrot.slane %v1064, 7
    %v1112 = vrot.slane %v1080, 7
    %v1113 = vrot.slane %v1066, 7
    %v1114 = vrot.slane %v1082, 7
    %v1115 = vrot.slane %v1068, 7
    %v1116 = vrot.slane %v1084, 7
    %v1117 = vlaneseq
    %v1118 = vshrl.u32 %v1117, 7
    %vm1119 = vcmp.lt.s32.totalorder %v1118, 1
    %v1120 = vsel %vm1119, %v1113, %v1115
    %v1121 = vsel %vm1119, %v1114, %v1116
    %v1122 = vsel %vm1119, %v1111, %v1113
    %v1123 = vsel %vm1119, %v1112, %v1114
    %v1124 = vsel %vm1119, %v1109, %v1111
    %v1125 = vsel %vm1119, %v1110, %v1112
    %v1126 = vsel %vm1119, %v1107, %v1109
    %v1127 = vsel %vm1119, %v1108, %v1110
    %v1128 = vsel %vm1119, %v1105, %v1107
    %v1129 = vsel %vm1119, %v1106, %v1108
    %v1130 = vsel %vm1119, %v1103, %v1105
    %v1131 = vsel %vm1119, %v1104, %v1106
    %v1132 = vsel %vm1119, %v1101, %v1103
    %v1133 = vsel %vm1119, %v1102, %v1104
    %v1134 = vsel %vm1119, %v1115, %v1101
    %v1135 = vsel %vm1119, %v1116, %v1102
    %v1136 = vld [vmem:[#allocation2] sm:$0xff]
    %v1137 = vld [vmem:[#allocation2 + $0x8] sm:$0xff]
    %v1138 = vld [vmem:[#allocation2 + $0x10] sm:$0xff]
    %v1139 = vld [vmem:[#allocation2 + $0x18] sm:$0xff]
    %v1140 = vld [vmem:[#allocation2 + $0x20] sm:$0xff]
    %v1141 = vld [vmem:[#allocation2 + $0x28] sm:$0xff]
    %v1142 = vld [vmem:[#allocation2 + $0x30] sm:$0xff]
    %v1143 = vld [vmem:[#allocation2 + $0x38] sm:$0xff]
    %v1144 = vmul.f32 %v1120, %v1136
    %v1145 = vmul.f32 %v1134, %v1137
    %v1146 = vmul.f32 %v1132, %v1138
    %v1147 = vmul.f32 %v1130, %v1139
    %v1148 = vmul.f32 %v1128, %v1140
    %v1149 = vmul.f32 %v1126, %v1141
    %v1150 = vmul.f32 %v1124, %v1142
    %v1151 = vmul.f32 %v1122, %v1143
    %v1152 = vmul.f32 %v1121, %v1136
    %v1153 = vmul.f32 %v1135, %v1137
    %v1154 = vmul.f32 %v1133, %v1138
    %v1155 = vmul.f32 %v1131, %v1139
    %v1156 = vmul.f32 %v1129, %v1140
    %v1157 = vmul.f32 %v1127, %v1141
    %v1158 = vmul.f32 %v1125, %v1142
    %v1159 = vmul.f32 %v1123, %v1143
    %v1160 = vadd.f32 %v1144, 0.0
    %v1161 = vadd.f32 %v1145, 0.0
    %v1162 = vadd.f32 %v1146, 0.0
    %v1163 = vadd.f32 %v1147, 0.0
    %v1164 = vadd.f32 %v1148, 0.0
    %v1165 = vadd.f32 %v1149, 0.0
    %v1166 = vadd.f32 %v1150, 0.0
    %v1167 = vadd.f32 %v1151, 0.0
    %v1168 = vadd.f32 %v1152, 0.0
    %v1169 = vadd.f32 %v1153, 0.0
    %v1170 = vadd.f32 %v1154, 0.0
    %v1171 = vadd.f32 %v1155, 0.0
    %v1172 = vadd.f32 %v1156, 0.0
    %v1173 = vadd.f32 %v1157, 0.0
    %v1174 = vadd.f32 %v1158, 0.0
    %v1175 = vadd.f32 %v1159, 0.0
    %s1176 = scalar_lea.vmem [#allocation2], 64
    %v1177 = vld [vmem:[%s1176] sm:$0xff]
    %v1178 = vld [vmem:[%s1176 + $0x8] sm:$0xff]
    %v1179 = vld [vmem:[%s1176 + $0x10] sm:$0xff]
    %v1180 = vld [vmem:[%s1176 + $0x18] sm:$0xff]
    %v1181 = vld [vmem:[%s1176 + $0x20] sm:$0xff]
    %v1182 = vld [vmem:[%s1176 + $0x28] sm:$0xff]
    %v1183 = vld [vmem:[%s1176 + $0x30] sm:$0xff]
    %v1184 = vld [vmem:[%s1176 + $0x38] sm:$0xff]
    %v1185 = vmul.f32 %v1068, %v1177
    %v1186 = vmul.f32 %v1054, %v1178
    %v1187 = vmul.f32 %v1056, %v1179
    %v1188 = vmul.f32 %v1058, %v1180
    %v1189 = vmul.f32 %v1060, %v1181
    %v1190 = vmul.f32 %v1062, %v1182
    %v1191 = vmul.f32 %v1064, %v1183
    %v1192 = vmul.f32 %v1066, %v1184
    %v1193 = vmul.f32 %v1084, %v1177
    %v1194 = vmul.f32 %v1070, %v1178
    %v1195 = vmul.f32 %v1072, %v1179
    %v1196 = vmul.f32 %v1074, %v1180
    %v1197 = vmul.f32 %v1076, %v1181
    %v1198 = vmul.f32 %v1078, %v1182
    %v1199 = vmul.f32 %v1080, %v1183
    %v1200 = vmul.f32 %v1082, %v1184
    %v1201 = vadd.f32 %v1160, %v1185
    %v1202 = vadd.f32 %v1161, %v1186
    %v1203 = vadd.f32 %v1162, %v1187
    %v1204 = vadd.f32 %v1163, %v1188
    %v1205 = vadd.f32 %v1164, %v1189
    %v1206 = vadd.f32 %v1165, %v1190
    %v1207 = vadd.f32 %v1166, %v1191
    %v1208 = vadd.f32 %v1167, %v1192
    %v1209 = vadd.f32 %v1168, %v1193
    %v1210 = vadd.f32 %v1169, %v1194
    %v1211 = vadd.f32 %v1170, %v1195
    %v1212 = vadd.f32 %v1171, %v1196
    %v1213 = vadd.f32 %v1172, %v1197
    %v1214 = vadd.f32 %v1173, %v1198
    %v1215 = vadd.f32 %v1174, %v1199
    %v1216 = vadd.f32 %v1175, %v1200
    %v1217 = vrot.slane %v1054, 1
    %v1218 = vrot.slane %v1070, 1
    %v1219 = vrot.slane %v1056, 1
    %v1220 = vrot.slane %v1072, 1
    %v1221 = vrot.slane %v1058, 1
    %v1222 = vrot.slane %v1074, 1
    %v1223 = vrot.slane %v1060, 1
    %v1224 = vrot.slane %v1076, 1
    %v1225 = vrot.slane %v1062, 1
    %v1226 = vrot.slane %v1078, 1
    %v1227 = vrot.slane %v1064, 1
    %v1228 = vrot.slane %v1080, 1
    %v1229 = vrot.slane %v1066, 1
    %v1230 = vrot.slane %v1082, 1
    %v1231 = vrot.slane %v1068, 1
    %v1232 = vrot.slane %v1084, 1
    %vm1233 = vcmp.lt.s32.totalorder %v1118, 7
    %v1234 = vsel %vm1233, %v1229, %v1231
    %v1235 = vsel %vm1233, %v1230, %v1232
    %v1236 = vsel %vm1233, %v1227, %v1229
    %v1237 = vsel %vm1233, %v1228, %v1230
    %v1238 = vsel %vm1233, %v1225, %v1227
    %v1239 = vsel %vm1233, %v1226, %v1228
    %v1240 = vsel %vm1233, %v1223, %v1225
    %v1241 = vsel %vm1233, %v1224, %v1226
    %v1242 = vsel %vm1233, %v1221, %v1223
    %v1243 = vsel %vm1233, %v1222, %v1224
    %v1244 = vsel %vm1233, %v1219, %v1221
    %v1245 = vsel %vm1233, %v1220, %v1222
    %v1246 = vsel %vm1233, %v1217, %v1219
    %v1247 = vsel %vm1233, %v1218, %v1220
    %v1248 = vsel %vm1233, %v1231, %v1217
    %v1249 = vsel %vm1233, %v1232, %v1218
    %s1250 = scalar_lea.vmem [#allocation2], 128
    %v1251 = vld [vmem:[%s1250] sm:$0xff]
    %v1252 = vld [vmem:[%s1250 + $0x8] sm:$0xff]
    %v1253 = vld [vmem:[%s1250 + $0x10] sm:$0xff]
    %v1254 = vld [vmem:[%s1250 + $0x18] sm:$0xff]
    %v1255 = vld [vmem:[%s1250 + $0x20] sm:$0xff]
    %v1256 = vld [vmem:[%s1250 + $0x28] sm:$0xff]
    %v1257 = vld [vmem:[%s1250 + $0x30] sm:$0xff]
    %v1258 = vld [vmem:[%s1250 + $0x38] sm:$0xff]
    %v1259 = vmul.f32 %v1248, %v1251
    %v1260 = vmul.f32 %v1246, %v1252
    %v1261 = vmul.f32 %v1244, %v1253
    %v1262 = vmul.f32 %v1242, %v1254
    %v1263 = vmul.f32 %v1240, %v1255
    %v1264 = vmul.f32 %v1238, %v1256
    %v1265 = vmul.f32 %v1236, %v1257
    %v1266 = vmul.f32 %v1234, %v1258
    %v1267 = vmul.f32 %v1249, %v1251
    %v1268 = vmul.f32 %v1247, %v1252
    %v1269 = vmul.f32 %v1245, %v1253
    %v1270 = vmul.f32 %v1243, %v1254
    %v1271 = vmul.f32 %v1241, %v1255
    %v1272 = vmul.f32 %v1239, %v1256
    %v1273 = vmul.f32 %v1237, %v1257
    %v1274 = vmul.f32 %v1235, %v1258
    %v1275 = vadd.f32 %v1201, %v1259
    %v1276 = vadd.f32 %v1202, %v1260
    %v1277 = vadd.f32 %v1203, %v1261
    %v1278 = vadd.f32 %v1204, %v1262
    %v1279 = vadd.f32 %v1205, %v1263
    %v1280 = vadd.f32 %v1206, %v1264
    %v1281 = vadd.f32 %v1207, %v1265
    %v1282 = vadd.f32 %v1208, %v1266
    %v1283 = vadd.f32 %v1209, %v1267
    %v1284 = vadd.f32 %v1210, %v1268
    %v1285 = vadd.f32 %v1211, %v1269
    %v1286 = vadd.f32 %v1212, %v1270
    %v1287 = vadd.f32 %v1213, %v1271
    %v1288 = vadd.f32 %v1214, %v1272
    %v1289 = vadd.f32 %v1215, %v1273
    %v1290 = vadd.f32 %v1216, %v1274
    %s1291 = scalar_lea.vmem [#allocation2], 192
    %v1292 = vld [vmem:[%s1291] sm:$0xff]
    %v1293 = vld [vmem:[%s1291 + $0x8] sm:$0xff]
    %v1294 = vld [vmem:[%s1291 + $0x10] sm:$0xff]
    %v1295 = vld [vmem:[%s1291 + $0x18] sm:$0xff]
    %v1296 = vld [vmem:[%s1291 + $0x20] sm:$0xff]
    %v1297 = vld [vmem:[%s1291 + $0x28] sm:$0xff]
    %v1298 = vld [vmem:[%s1291 + $0x30] sm:$0xff]
    %v1299 = vld [vmem:[%s1291 + $0x38] sm:$0xff]
    %v1300 = vmul.f32 %v1134, %v1292
    %v1301 = vmul.f32 %v1132, %v1293
    %v1302 = vmul.f32 %v1130, %v1294
    %v1303 = vmul.f32 %v1128, %v1295
    %v1304 = vmul.f32 %v1126, %v1296
    %v1305 = vmul.f32 %v1124, %v1297
    %v1306 = vmul.f32 %v1122, %v1298
    %v1307 = vmul.f32 %v1120, %v1299
    %v1308 = vmul.f32 %v1135, %v1292
    %v1309 = vmul.f32 %v1133, %v1293
    %v1310 = vmul.f32 %v1131, %v1294
    %v1311 = vmul.f32 %v1129, %v1295
    %v1312 = vmul.f32 %v1127, %v1296
    %v1313 = vmul.f32 %v1125, %v1297
    %v1314 = vmul.f32 %v1123, %v1298
    %v1315 = vmul.f32 %v1121, %v1299
    %v1316 = vadd.f32 %v1275, %v1300
    %v1317 = vadd.f32 %v1276, %v1301
    %v1318 = vadd.f32 %v1277, %v1302
    %v1319 = vadd.f32 %v1278, %v1303
    %v1320 = vadd.f32 %v1279, %v1304
    %v1321 = vadd.f32 %v1280, %v1305
    %v1322 = vadd.f32 %v1281, %v1306
    %v1323 = vadd.f32 %v1282, %v1307
    %v1324 = vadd.f32 %v1283, %v1308
    %v1325 = vadd.f32 %v1284, %v1309
    %v1326 = vadd.f32 %v1285, %v1310
    %v1327 = vadd.f32 %v1286, %v1311
    %v1328 = vadd.f32 %v1287, %v1312
    %v1329 = vadd.f32 %v1288, %v1313
    %v1330 = vadd.f32 %v1289, %v1314
    %v1331 = vadd.f32 %v1290, %v1315
    %s1332 = scalar_lea.vmem [#allocation2], 256
    %v1333 = vld [vmem:[%s1332] sm:$0xff]
    %v1334 = vld [vmem:[%s1332 + $0x8] sm:$0xff]
    %v1335 = vld [vmem:[%s1332 + $0x10] sm:$0xff]
    %v1336 = vld [vmem:[%s1332 + $0x18] sm:$0xff]
    %v1337 = vld [vmem:[%s1332 + $0x20] sm:$0xff]
    %v1338 = vld [vmem:[%s1332 + $0x28] sm:$0xff]
    %v1339 = vld [vmem:[%s1332 + $0x30] sm:$0xff]
    %v1340 = vld [vmem:[%s1332 + $0x38] sm:$0xff]
    %1349 = vrot.lane.b32.xlu0 %v1333, 64
    %v1350 = vpop.permute.xlu0 %1349
    %1351 = vrot.lane.b32.xlu0 %v1334, 64
    %v1352 = vpop.permute.xlu0 %1351
    %1353 = vrot.lane.b32.xlu0 %v1335, 64
    %v1354 = vpop.permute.xlu0 %1353
    %1355 = vrot.lane.b32.xlu0 %v1336, 64
    %v1356 = vpop.permute.xlu0 %1355
    %1357 = vrot.lane.b32.xlu0 %v1337, 64
    %v1358 = vpop.permute.xlu0 %1357
    %1359 = vrot.lane.b32.xlu0 %v1338, 64
    %v1360 = vpop.permute.xlu0 %1359
    %1361 = vrot.lane.b32.xlu0 %v1339, 64
    %v1362 = vpop.permute.xlu0 %1361
    %1363 = vrot.lane.b32.xlu0 %v1340, 64
    %v1364 = vpop.permute.xlu0 %1363
    %v1373 = vmul.f32 %v580, %v1350
    %v1374 = vmul.f32 %v583, %v1352
    %v1375 = vmul.f32 %v588, %v1354
    %v1376 = vmul.f32 %v591, %v1356
    %v1377 = vmul.f32 %v596, %v1358
    %v1378 = vmul.f32 %v599, %v1360
    %v1379 = vmul.f32 %v604, %v1362
    %v1380 = vmul.f32 %v607, %v1364
    %v1381 = vmul.f32 %v612, %v1350
    %v1382 = vmul.f32 %v615, %v1352
    %v1383 = vmul.f32 %v620, %v1354
    %v1384 = vmul.f32 %v623, %v1356
    %v1385 = vmul.f32 %v628, %v1358
    %v1386 = vmul.f32 %v631, %v1360
    %v1387 = vmul.f32 %v636, %v1362
    %v1388 = vmul.f32 %v639, %v1364
    %1405 = vrot.lane.b32.xlu0 %v1373, 64
    %v1406 = vpop.permute.xlu0 %1405
    %1407 = vrot.lane.b32.xlu0 %v1374, 64
    %v1408 = vpop.permute.xlu0 %1407
    %1409 = vrot.lane.b32.xlu0 %v1375, 64
    %v1410 = vpop.permute.xlu0 %1409
    %1411 = vrot.lane.b32.xlu0 %v1376, 64
    %v1412 = vpop.permute.xlu0 %1411
    %1413 = vrot.lane.b32.xlu0 %v1377, 64
    %v1414 = vpop.permute.xlu0 %1413
    %1415 = vrot.lane.b32.xlu0 %v1378, 64
    %v1416 = vpop.permute.xlu0 %1415
    %1417 = vrot.lane.b32.xlu0 %v1379, 64
    %v1418 = vpop.permute.xlu0 %1417
    %1419 = vrot.lane.b32.xlu0 %v1380, 64
    %v1420 = vpop.permute.xlu0 %1419
    %1421 = vrot.lane.b32.xlu0 %v1381, 64
    %v1422 = vpop.permute.xlu0 %1421
    %1423 = vrot.lane.b32.xlu0 %v1382, 64
    %v1424 = vpop.permute.xlu0 %1423
    %1425 = vrot.lane.b32.xlu0 %v1383, 64
    %v1426 = vpop.permute.xlu0 %1425
    %1427 = vrot.lane.b32.xlu0 %v1384, 64
    %v1428 = vpop.permute.xlu0 %1427
    %1429 = vrot.lane.b32.xlu0 %v1385, 64
    %v1430 = vpop.permute.xlu0 %1429
    %1431 = vrot.lane.b32.xlu0 %v1386, 64
    %v1432 = vpop.permute.xlu0 %1431
    %1433 = vrot.lane.b32.xlu0 %v1387, 64
    %v1434 = vpop.permute.xlu0 %1433
    %1435 = vrot.lane.b32.xlu0 %v1388, 64
    %v1436 = vpop.permute.xlu0 %1435
    %v1453 = vadd.f32 %v1316, %v1406
    %v1454 = vadd.f32 %v1317, %v1408
    %v1455 = vadd.f32 %v1318, %v1410
    %v1456 = vadd.f32 %v1319, %v1412
    %v1457 = vadd.f32 %v1320, %v1414
    %v1458 = vadd.f32 %v1321, %v1416
    %v1459 = vadd.f32 %v1322, %v1418
    %v1460 = vadd.f32 %v1323, %v1420
    %v1461 = vadd.f32 %v1324, %v1422
    %v1462 = vadd.f32 %v1325, %v1424
    %v1463 = vadd.f32 %v1326, %v1426
    %v1464 = vadd.f32 %v1327, %v1428
    %v1465 = vadd.f32 %v1328, %v1430
    %v1466 = vadd.f32 %v1329, %v1432
    %v1467 = vadd.f32 %v1330, %v1434
    %v1468 = vadd.f32 %v1331, %v1436
    %s1469 = scalar_lea.vmem [#allocation2], 320
    %v1470 = vld [vmem:[%s1469] sm:$0xff]
    %v1471 = vld [vmem:[%s1469 + $0x8] sm:$0xff]
    %v1472 = vld [vmem:[%s1469 + $0x10] sm:$0xff]
    %v1473 = vld [vmem:[%s1469 + $0x18] sm:$0xff]
    %v1474 = vld [vmem:[%s1469 + $0x20] sm:$0xff]
    %v1475 = vld [vmem:[%s1469 + $0x28] sm:$0xff]
    %v1476 = vld [vmem:[%s1469 + $0x30] sm:$0xff]
    %v1477 = vld [vmem:[%s1469 + $0x38] sm:$0xff]
    %v1478 = vmul.f32 %v1246, %v1470
    %v1479 = vmul.f32 %v1244, %v1471
    %v1480 = vmul.f32 %v1242, %v1472
    %v1481 = vmul.f32 %v1240, %v1473
    %v1482 = vmul.f32 %v1238, %v1474
    %v1483 = vmul.f32 %v1236, %v1475
    %v1484 = vmul.f32 %v1234, %v1476
    %v1485 = vmul.f32 %v1248, %v1477
    %v1486 = vmul.f32 %v1247, %v1470
    %v1487 = vmul.f32 %v1245, %v1471
    %v1488 = vmul.f32 %v1243, %v1472
    %v1489 = vmul.f32 %v1241, %v1473
    %v1490 = vmul.f32 %v1239, %v1474
    %v1491 = vmul.f32 %v1237, %v1475
    %v1492 = vmul.f32 %v1235, %v1476
    %v1493 = vmul.f32 %v1249, %v1477
    %v1494 = vadd.f32 %v1453, %v1478
    %v1495 = vadd.f32 %v1454, %v1479
    %v1496 = vadd.f32 %v1455, %v1480
    %v1497 = vadd.f32 %v1456, %v1481
    %v1498 = vadd.f32 %v1457, %v1482
    %v1499 = vadd.f32 %v1458, %v1483
    %v1500 = vadd.f32 %v1459, %v1484
    %v1501 = vadd.f32 %v1460, %v1485
    %v1502 = vadd.f32 %v1461, %v1486
    %v1503 = vadd.f32 %v1462, %v1487
    %v1504 = vadd.f32 %v1463, %v1488
    %v1505 = vadd.f32 %v1464, %v1489
    %v1506 = vadd.f32 %v1465, %v1490
    %v1507 = vadd.f32 %v1466, %v1491
    %v1508 = vadd.f32 %v1467, %v1492
    %v1509 = vadd.f32 %v1468, %v1493
    %s1510 = scalar_lea.vmem [#allocation2], 384
    %v1511 = vld [vmem:[%s1510] sm:$0xff]
    %v1512 = vld [vmem:[%s1510 + $0x8] sm:$0xff]
    %v1513 = vld [vmem:[%s1510 + $0x10] sm:$0xff]
    %v1514 = vld [vmem:[%s1510 + $0x18] sm:$0xff]
    %v1515 = vld [vmem:[%s1510 + $0x20] sm:$0xff]
    %v1516 = vld [vmem:[%s1510 + $0x28] sm:$0xff]
    %v1517 = vld [vmem:[%s1510 + $0x30] sm:$0xff]
    %v1518 = vld [vmem:[%s1510 + $0x38] sm:$0xff]
    %v1519 = vmul.f32 %v1132, %v1511
    %v1520 = vmul.f32 %v1130, %v1512
    %v1521 = vmul.f32 %v1128, %v1513
    %v1522 = vmul.f32 %v1126, %v1514
    %v1523 = vmul.f32 %v1124, %v1515
    %v1524 = vmul.f32 %v1122, %v1516
    %v1525 = vmul.f32 %v1120, %v1517
    %v1526 = vmul.f32 %v1134, %v1518
    %v1527 = vmul.f32 %v1133, %v1511
    %v1528 = vmul.f32 %v1131, %v1512
    %v1529 = vmul.f32 %v1129, %v1513
    %v1530 = vmul.f32 %v1127, %v1514
    %v1531 = vmul.f32 %v1125, %v1515
    %v1532 = vmul.f32 %v1123, %v1516
    %v1533 = vmul.f32 %v1121, %v1517
    %v1534 = vmul.f32 %v1135, %v1518
    %v1535 = vadd.f32 %v1494, %v1519
    %v1536 = vadd.f32 %v1495, %v1520
    %v1537 = vadd.f32 %v1496, %v1521
    %v1538 = vadd.f32 %v1497, %v1522
    %v1539 = vadd.f32 %v1498, %v1523
    %v1540 = vadd.f32 %v1499, %v1524
    %v1541 = vadd.f32 %v1500, %v1525
    %v1542 = vadd.f32 %v1501, %v1526
    %v1543 = vadd.f32 %v1502, %v1527
    %v1544 = vadd.f32 %v1503, %v1528
    %v1545 = vadd.f32 %v1504, %v1529
    %v1546 = vadd.f32 %v1505, %v1530
    %v1547 = vadd.f32 %v1506, %v1531
    %v1548 = vadd.f32 %v1507, %v1532
    %v1549 = vadd.f32 %v1508, %v1533
    %v1550 = vadd.f32 %v1509, %v1534
    %s1551 = scalar_lea.vmem [#allocation2], 448
    %v1552 = vld [vmem:[%s1551] sm:$0xff]
    %v1553 = vld [vmem:[%s1551 + $0x8] sm:$0xff]
    %v1554 = vld [vmem:[%s1551 + $0x10] sm:$0xff]
    %v1555 = vld [vmem:[%s1551 + $0x18] sm:$0xff]
    %v1556 = vld [vmem:[%s1551 + $0x20] sm:$0xff]
    %v1557 = vld [vmem:[%s1551 + $0x28] sm:$0xff]
    %v1558 = vld [vmem:[%s1551 + $0x30] sm:$0xff]
    %v1559 = vld [vmem:[%s1551 + $0x38] sm:$0xff]
    %v1560 = vmul.f32 %v1056, %v1552
    %v1561 = vmul.f32 %v1058, %v1553
    %v1562 = vmul.f32 %v1060, %v1554
    %v1563 = vmul.f32 %v1062, %v1555
    %v1564 = vmul.f32 %v1064, %v1556
    %v1565 = vmul.f32 %v1066, %v1557
    %v1566 = vmul.f32 %v1068, %v1558
    %v1567 = vmul.f32 %v1054, %v1559
    %v1568 = vmul.f32 %v1072, %v1552
    %v1569 = vmul.f32 %v1074, %v1553
    %v1570 = vmul.f32 %v1076, %v1554
    %v1571 = vmul.f32 %v1078, %v1555
    %v1572 = vmul.f32 %v1080, %v1556
    %v1573 = vmul.f32 %v1082, %v1557
    %v1574 = vmul.f32 %v1084, %v1558
    %v1575 = vmul.f32 %v1070, %v1559
    %v1576 = vadd.f32 %v1535, %v1560
    %v1577 = vadd.f32 %v1536, %v1561
    %v1578 = vadd.f32 %v1537, %v1562
    %v1579 = vadd.f32 %v1538, %v1563
    %v1580 = vadd.f32 %v1539, %v1564
    %v1581 = vadd.f32 %v1540, %v1565
    %v1582 = vadd.f32 %v1541, %v1566
    %v1583 = vadd.f32 %v1542, %v1567
    %v1584 = vadd.f32 %v1543, %v1568
    %v1585 = vadd.f32 %v1544, %v1569
    %v1586 = vadd.f32 %v1545, %v1570
    %v1587 = vadd.f32 %v1546, %v1571
    %v1588 = vadd.f32 %v1547, %v1572
    %v1589 = vadd.f32 %v1548, %v1573
    %v1590 = vadd.f32 %v1549, %v1574
    %v1591 = vadd.f32 %v1550, %v1575
    %s1592 = scalar_lea.vmem [#allocation2], 512
    %v1593 = vld [vmem:[%s1592] sm:$0xff]
    %v1594 = vld [vmem:[%s1592 + $0x8] sm:$0xff]
    %v1595 = vld [vmem:[%s1592 + $0x10] sm:$0xff]
    %v1596 = vld [vmem:[%s1592 + $0x18] sm:$0xff]
    %v1597 = vld [vmem:[%s1592 + $0x20] sm:$0xff]
    %v1598 = vld [vmem:[%s1592 + $0x28] sm:$0xff]
    %v1599 = vld [vmem:[%s1592 + $0x30] sm:$0xff]
    %v1600 = vld [vmem:[%s1592 + $0x38] sm:$0xff]
    %v1601 = vmul.f32 %v1244, %v1593
    %v1602 = vmul.f32 %v1242, %v1594
    %v1603 = vmul.f32 %v1240, %v1595
    %v1604 = vmul.f32 %v1238, %v1596
    %v1605 = vmul.f32 %v1236, %v1597
    %v1606 = vmul.f32 %v1234, %v1598
    %v1607 = vmul.f32 %v1248, %v1599
    %v1608 = vmul.f32 %v1246, %v1600
    %v1609 = vmul.f32 %v1245, %v1593
    %v1610 = vmul.f32 %v1243, %v1594
    %v1611 = vmul.f32 %v1241, %v1595
    %v1612 = vmul.f32 %v1239, %v1596
    %v1613 = vmul.f32 %v1237, %v1597
    %v1614 = vmul.f32 %v1235, %v1598
    %v1615 = vmul.f32 %v1249, %v1599
    %v1616 = vmul.f32 %v1247, %v1600
    %v1617 = vadd.f32 %v1576, %v1601
    %v1618 = vadd.f32 %v1577, %v1602
    %v1619 = vadd.f32 %v1578, %v1603
    %v1620 = vadd.f32 %v1579, %v1604
    %v1621 = vadd.f32 %v1580, %v1605
    %v1622 = vadd.f32 %v1581, %v1606
    %v1623 = vadd.f32 %v1582, %v1607
    %v1624 = vadd.f32 %v1583, %v1608
    %v1625 = vadd.f32 %v1584, %v1609
    %v1626 = vadd.f32 %v1585, %v1610
    %v1627 = vadd.f32 %v1586, %v1611
    %v1628 = vadd.f32 %v1587, %v1612
    %v1629 = vadd.f32 %v1588, %v1613
    %v1630 = vadd.f32 %v1589, %v1614
    %v1631 = vadd.f32 %v1590, %v1615
    %v1632 = vadd.f32 %v1591, %v1616
    %1633 = vrot.lane.b32.xlu0 %v642, 64
    %v1634 = vpop.permute.xlu0 %1633
    %1635 = vrot.lane.b32.xlu0 %v643, 64
    %v1636 = vpop.permute.xlu0 %1635
    %1637 = vrot.lane.b32.xlu0 %v644, 64
    %v1638 = vpop.permute.xlu0 %1637
    %1639 = vrot.lane.b32.xlu0 %v645, 64
    %v1640 = vpop.permute.xlu0 %1639
    %v1646 = vsel %vm520, %v1029, 0
    %v1649 = vsel %vm520, %v1030, 0
    %v1652 = vsel %vm520, %v1031, 0
    %v1655 = vsel %vm520, %v1032, 0
    %1657 = vmatprep.subr.bf16.mxu0 0
    %1658 = vmatpush1.bf16.msra.mxu0 %v1634
    %1659 = vmatprep.subr.bf16.mxu0 0
    %1660 = vmatpush1.bf16.msra.mxu0 %v1636
    %1661 = vmatprep.subr.bf16.mxu0 0
    %1662 = vmatpush1.bf16.msra.mxu0 %v1638
    %1663 = vmatprep.subr.bf16.mxu0 0
    %1664 = vmatpush1.bf16.msra.mxu0 %v1640
    %1665 = vmatprep.subr.bf16.mxu0 0
    %1666 = vmatpush1.bf16.msra.mxu0 0
    %1667 = vmatprep.subr.bf16.mxu0 0
    %1668 = vmatpush1.bf16.msra.mxu0 0
    %1669 = vmatprep.subr.bf16.mxu0 0
    %1670 = vmatpush1.bf16.msra.mxu0 0
    %1671 = vmatprep.subr.bf16.mxu0 0
    %1672 = vmatpush1.bf16.msra.mxu0 0
    %1673 = vmatprep.subr.bf16.mxu0 0
    %1674 = vmatpush1.bf16.msra.mxu0 0
    %1675 = vmatprep.subr.bf16.mxu0 0
    %1676 = vmatpush1.bf16.msra.mxu0 0
    %1677 = vmatprep.subr.bf16.mxu0 0
    %1678 = vmatpush1.bf16.msra.mxu0 0
    %1679 = vmatprep.subr.bf16.mxu0 0
    %1680 = vmatpush1.bf16.msra.mxu0 0
    %1681 = vmatprep.subr.bf16.mxu0 0
    %1682 = vmatpush1.bf16.msra.mxu0 0
    %1683 = vmatprep.subr.bf16.mxu0 0
    %1684 = vmatpush1.bf16.msra.mxu0 0
    %1685 = vmatprep.subr.bf16.mxu0 0
    %1686 = vmatpush1.bf16.msra.mxu0 0
    %1687 = vmatprep.subr.bf16.mxu0 0
    %1688 = vmatpush1.bf16.msra.mxu0 0
    %1689 = vmatprep.mubr.bf16.mxu0 0
    %1690 = vmatmul.mubr.bf16.gmra.mrb[0].mxu0 %v1646
    %v1691 = vpop.f32.mrb[0].mxu0
    %v1692 = vadd.f32 %v1617, %v1691
    %v1693 = vpop.f32.mrb[0].mxu0
    %v1694 = vpop.f32.mrb[0].mxu0
    %v1695 = vadd.f32 %v1618, %v1694
    %v1696 = vpop.f32.mrb[0].mxu0
    %1697 = vmatprep.mubr.bf16.mxu0 0
    %1698 = vmatmul.mubr.bf16.gmra.mrb[0].mxu0 %v1649
    %v1699 = vpop.f32.mrb[0].mxu0
    %v1700 = vadd.f32 %v1619, %v1699
    %v1701 = vpop.f32.mrb[0].mxu0
    %v1702 = vpop.f32.mrb[0].mxu0
    %v1703 = vadd.f32 %v1620, %v1702
    %v1704 = vpop.f32.mrb[0].mxu0
    %1705 = vmatprep.mubr.bf16.mxu0 0
    %1706 = vmatmul.mubr.bf16.gmra.mrb[0].mxu0 %v1652
    %v1707 = vpop.f32.mrb[0].mxu0
    %v1708 = vadd.f32 %v1621, %v1707
    %v1709 = vpop.f32.mrb[0].mxu0
    %v1710 = vpop.f32.mrb[0].mxu0
    %v1711 = vadd.f32 %v1622, %v1710
    %v1712 = vpop.f32.mrb[0].mxu0
    %1713 = vmatprep.mubr.bf16.mxu0 0
    %1714 = vmatmul.mubr.bf16.gmra.mrb[0].mxu0 %v1655
    %v1715 = vpop.f32.mrb[0].mxu0
    %v1716 = vadd.f32 %v1623, %v1715
    %v1717 = vpop.f32.mrb[0].mxu0
    %v1718 = vpop.f32.mrb[0].mxu0
    %v1719 = vadd.f32 %v1624, %v1718
    %v1720 = vpop.f32.mrb[0].mxu0
    %1721 = vdwg.mxu0
    %1722 = vrot.lane.b32.xlu0 %v646, 64
    %v1723 = vpop.permute.xlu0 %1722
    %1724 = vrot.lane.b32.xlu0 %v647, 64
    %v1725 = vpop.permute.xlu0 %1724
    %1726 = vrot.lane.b32.xlu0 %v648, 64
    %v1727 = vpop.permute.xlu0 %1726
    %1728 = vrot.lane.b32.xlu0 %v649, 64
    %v1729 = vpop.permute.xlu0 %1728
    %v1735 = vsel %vm520, %v1033, 0
    %v1738 = vsel %vm520, %v1034, 0
    %v1741 = vsel %vm520, %v1035, 0
    %v1744 = vsel %vm520, %v1036, 0
    %1746 = vmatprep.subr.bf16.mxu0 0
    %1747 = vmatpush1.bf16.msra.mxu0 %v1723
    %1748 = vmatprep.subr.bf16.mxu0 0
    %1749 = vmatpush1.bf16.msra.mxu0 %v1725
    %1750 = vmatprep.subr.bf16.mxu0 0
    %1751 = vmatpush1.bf16.msra.mxu0 %v1727
    %1752 = vmatprep.subr.bf16.mxu0 0
    %1753 = vmatpush1.bf16.msra.mxu0 %v1729
    %1754 = vmatprep.subr.bf16.mxu0 0
    %1755 = vmatpush1.bf16.msra.mxu0 0
    %1756 = vmatprep.subr.bf16.mxu0 0
    %1757 = vmatpush1.bf16.msra.mxu0 0
    %1758 = vmatprep.subr.bf16.mxu0 0
    %1759 = vmatpush1.bf16.msra.mxu0 0
    %1760 = vmatprep.subr.bf16.mxu0 0
    %1761 = vmatpush1.bf16.msra.mxu0 0
    %1762 = vmatprep.subr.bf16.mxu0 0
    %1763 = vmatpush1.bf16.msra.mxu0 0
    %1764 = vmatprep.subr.bf16.mxu0 0
    %1765 = vmatpush1.bf16.msra.mxu0 0
    %1766 = vmatprep.subr.bf16.mxu0 0
    %1767 = vmatpush1.bf16.msra.mxu0 0
    %1768 = vmatprep.subr.bf16.mxu0 0
    %1769 = vmatpush1.bf16.msra.mxu0 0
    %1770 = vmatprep.subr.bf16.mxu0 0
    %1771 = vmatpush1.bf16.msra.mxu0 0
    %1772 = vmatprep.subr.bf16.mxu0 0
    %1773 = vmatpush1.bf16.msra.mxu0 0
    %1774 = vmatprep.subr.bf16.mxu0 0
    %1775 = vmatpush1.bf16.msra.mxu0 0
    %1776 = vmatprep.subr.bf16.mxu0 0
    %1777 = vmatpush1.bf16.msra.mxu0 0
    %1778 = vmatprep.mubr.bf16.mxu0 0
    %1779 = vmatmul.mubr.bf16.gmra.mrb[0].mxu0 %v1735
    %v1780 = vpop.f32.mrb[0].mxu0
    %v1781 = vadd.f32 %v1625, %v1780
    %v1782 = vpop.f32.mrb[0].mxu0
    %v1783 = vpop.f32.mrb[0].mxu0
    %v1784 = vadd.f32 %v1626, %v1783
    %v1785 = vpop.f32.mrb[0].mxu0
    %1786 = vmatprep.mubr.bf16.mxu0 0
    %1787 = vmatmul.mubr.bf16.gmra.mrb[0].mxu0 %v1738
    %v1788 = vpop.f32.mrb[0].mxu0
    %v1789 = vadd.f32 %v1627, %v1788
    %v1790 = vpop.f32.mrb[0].mxu0
    %v1791 = vpop.f32.mrb[0].mxu0
    %v1792 = vadd.f32 %v1628, %v1791
    %v1793 = vpop.f32.mrb[0].mxu0
    %1794 = vmatprep.mubr.bf16.mxu0 0
    %1795 = vmatmul.mubr.bf16.gmra.mrb[0].mxu0 %v1741
    %v1796 = vpop.f32.mrb[0].mxu0
    %v1797 = vadd.f32 %v1629, %v1796
    %v1798 = vpop.f32.mrb[0].mxu0
    %v1799 = vpop.f32.mrb[0].mxu0
    %v1800 = vadd.f32 %v1630, %v1799
    %v1801 = vpop.f32.mrb[0].mxu0
    %1802 = vmatprep.mubr.bf16.mxu0 0
    %1803 = vmatmul.mubr.bf16.gmra.mrb[0].mxu0 %v1744
    %v1804 = vpop.f32.mrb[0].mxu0
    %v1805 = vadd.f32 %v1631, %v1804
    %v1806 = vpop.f32.mrb[0].mxu0
    %v1807 = vpop.f32.mrb[0].mxu0
    %v1808 = vadd.f32 %v1632, %v1807
    %v1809 = vpop.f32.mrb[0].mxu0
    %1810 = vdwg.mxu0
    %v1811 = vpack.c.bf16 %v1695, %v1692
    %v1812 = vpack.c.bf16 %v1703, %v1700
    %v1813 = vpack.c.bf16 %v1711, %v1708
    %v1814 = vpack.c.bf16 %v1719, %v1716
    %v1815 = vpack.c.bf16 %v1784, %v1781
    %v1816 = vpack.c.bf16 %v1792, %v1789
    %v1817 = vpack.c.bf16 %v1800, %v1797
    %v1818 = vpack.c.bf16 %v1808, %v1805
    %v1819 = vld [vmem:[%s6] sm:$0xf]
    %v1820 = vld [vmem:[%s6 + $0x4] sm:$0xf]
    %v1821 = vld [vmem:[%s6 + $0x8] sm:$0xf]
    %v1822 = vld [vmem:[%s6 + $0xc] sm:$0xf]
    %v1823 = vld [vmem:[%s6 + $0x10] sm:$0xf]
    %v1824 = vld [vmem:[%s6 + $0x14] sm:$0xf]
    %v1825 = vld [vmem:[%s6 + $0x18] sm:$0xf]
    %v1826 = vld [vmem:[%s6 + $0x1c] sm:$0xf]
    %v1835 = vunpack.c.l.b16 %v1819
    %v1836 = vunpack.c.l.b16 %v1820
    %v1837 = vunpack.c.l.b16 %v1821
    %v1838 = vunpack.c.l.b16 %v1822
    %v1839 = vunpack.c.l.b16 %v1823
    %v1840 = vunpack.c.l.b16 %v1824
    %v1841 = vunpack.c.l.b16 %v1825
    %v1842 = vunpack.c.l.b16 %v1826
    %v1843 = vpack.c.b16 %v1836, %v1835
    %v1844 = vpack.c.b16 %v1838, %v1837
    %v1845 = vpack.c.b16 %v1840, %v1839
    %v1846 = vpack.c.b16 %v1842, %v1841
    %v1852 = vsel %vm520, %v1811, 0
    %v1855 = vsel %vm520, %v1812, 0
    %v1858 = vsel %vm520, %v1813, 0
    %v1861 = vsel %vm520, %v1814, 0
    %v1864 = vsel %vm520, %v1815, 0
    %v1867 = vsel %vm520, %v1816, 0
    %v1870 = vsel %vm520, %v1817, 0
    %v1873 = vsel %vm520, %v1818, 0
    %1875 = vmatprep.subr.bf16.mxu0 0
    %1876 = vmatpush1.bf16.msra.mxu0 %v1843
    %1877 = vmatprep.subr.bf16.mxu0 0
    %1878 = vmatpush1.bf16.msra.mxu0 %v1844
    %1879 = vmatprep.subr.bf16.mxu0 0
    %1880 = vmatpush1.bf16.msra.mxu0 %v1845
    %1881 = vmatprep.subr.bf16.mxu0 0
    %1882 = vmatpush1.bf16.msra.mxu0 %v1846
    %1883 = vmatprep.subr.bf16.mxu0 0
    %1884 = vmatpush1.bf16.msra.mxu0 0
    %1885 = vmatprep.subr.bf16.mxu0 0
    %1886 = vmatpush1.bf16.msra.mxu0 0
    %1887 = vmatprep.subr.bf16.mxu0 0
    %1888 = vmatpush1.bf16.msra.mxu0 0
    %1889 = vmatprep.subr.bf16.mxu0 0
    %1890 = vmatpush1.bf16.msra.mxu0 0
    %1891 = vmatprep.subr.bf16.mxu0 0
    %1892 = vmatpush1.bf16.msra.mxu0 0
    %1893 = vmatprep.subr.bf16.mxu0 0
    %1894 = vmatpush1.bf16.msra.mxu0 0
    %1895 = vmatprep.subr.bf16.mxu0 0
    %1896 = vmatpush1.bf16.msra.mxu0 0
    %1897 = vmatprep.subr.bf16.mxu0 0
    %1898 = vmatpush1.bf16.msra.mxu0 0
    %1899 = vmatprep.subr.bf16.mxu0 0
    %1900 = vmatpush1.bf16.msra.mxu0 0
    %1901 = vmatprep.subr.bf16.mxu0 0
    %1902 = vmatpush1.bf16.msra.mxu0 0
    %1903 = vmatprep.subr.bf16.mxu0 0
    %1904 = vmatpush1.bf16.msra.mxu0 0
    %1905 = vmatprep.subr.bf16.mxu0 0
    %1906 = vmatpush1.bf16.msra.mxu0 0
    %1907 = vmatprep.mubr.bf16.mxu0 0
    %1908 = vmatmul.mubr.bf16.gmra.mrb[0].mxu0 %v1852
    %v1909 = vpop.f32.mrb[0].mxu0
    %v1910 = vadd.f32 0.0, %v1909
    %v1911 = vpop.f32.mrb[0].mxu0
    %v1912 = vpop.f32.mrb[0].mxu0
    %v1913 = vadd.f32 0.0, %v1912
    %v1914 = vpop.f32.mrb[0].mxu0
    %1915 = vmatprep.mubr.bf16.mxu0 0
    %1916 = vmatmul.mubr.bf16.gmra.mrb[0].mxu0 %v1855
    %v1917 = vpop.f32.mrb[0].mxu0
    %v1918 = vadd.f32 0.0, %v1917
    %v1919 = vpop.f32.mrb[0].mxu0
    %v1920 = vpop.f32.mrb[0].mxu0
    %v1921 = vadd.f32 0.0, %v1920
    %v1922 = vpop.f32.mrb[0].mxu0
    %1923 = vmatprep.mubr.bf16.mxu0 0
    %1924 = vmatmul.mubr.bf16.gmra.mrb[0].mxu0 %v1858
    %v1925 = vpop.f32.mrb[0].mxu0
    %v1926 = vadd.f32 0.0, %v1925
    %v1927 = vpop.f32.mrb[0].mxu0
    %v1928 = vpop.f32.mrb[0].mxu0
    %v1929 = vadd.f32 0.0, %v1928
    %v1930 = vpop.f32.mrb[0].mxu0
    %1931 = vmatprep.mubr.bf16.mxu0 0
    %1932 = vmatmul.mubr.bf16.gmra.mrb[0].mxu0 %v1861
    %v1933 = vpop.f32.mrb[0].mxu0
    %v1934 = vadd.f32 0.0, %v1933
    %v1935 = vpop.f32.mrb[0].mxu0
    %v1936 = vpop.f32.mrb[0].mxu0
    %v1937 = vadd.f32 0.0, %v1936
    %v1938 = vpop.f32.mrb[0].mxu0
    %1939 = vmatprep.mubr.bf16.mxu0 0
    %1940 = vmatmul.mubr.bf16.gmra.mrb[0].mxu0 %v1864
    %v1941 = vpop.f32.mrb[0].mxu0
    %v1942 = vadd.f32 0.0, %v1941
    %v1943 = vpop.f32.mrb[0].mxu0
    %v1944 = vpop.f32.mrb[0].mxu0
    %v1945 = vadd.f32 0.0, %v1944
    %v1946 = vpop.f32.mrb[0].mxu0
    %1947 = vmatprep.mubr.bf16.mxu0 0
    %1948 = vmatmul.mubr.bf16.gmra.mrb[0].mxu0 %v1867
    %v1949 = vpop.f32.mrb[0].mxu0
    %v1950 = vadd.f32 0.0, %v1949
    %v1951 = vpop.f32.mrb[0].mxu0
    %v1952 = vpop.f32.mrb[0].mxu0
    %v1953 = vadd.f32 0.0, %v1952
    %v1954 = vpop.f32.mrb[0].mxu0
    %1955 = vmatprep.mubr.bf16.mxu0 0
    %1956 = vmatmul.mubr.bf16.gmra.mrb[0].mxu0 %v1870
    %v1957 = vpop.f32.mrb[0].mxu0
    %v1958 = vadd.f32 0.0, %v1957
    %v1959 = vpop.f32.mrb[0].mxu0
    %v1960 = vpop.f32.mrb[0].mxu0
    %v1961 = vadd.f32 0.0, %v1960
    %v1962 = vpop.f32.mrb[0].mxu0
    %1963 = vmatprep.mubr.bf16.mxu0 0
    %1964 = vmatmul.mubr.bf16.gmra.mrb[0].mxu0 %v1873
    %v1965 = vpop.f32.mrb[0].mxu0
    %v1966 = vadd.f32 0.0, %v1965
    %v1967 = vpop.f32.mrb[0].mxu0
    %v1968 = vpop.f32.mrb[0].mxu0
    %v1969 = vadd.f32 0.0, %v1968
    %v1970 = vpop.f32.mrb[0].mxu0
    %1971 = vdwg.mxu0
    %1988 = vrot.lane.b32.xlu0 %v1910, 64
    %v1989 = vpop.permute.xlu0 %1988
    %1990 = vrot.lane.b32.xlu0 %v1913, 64
    %v1991 = vpop.permute.xlu0 %1990
    %1992 = vrot.lane.b32.xlu0 %v1918, 64
    %v1993 = vpop.permute.xlu0 %1992
    %1994 = vrot.lane.b32.xlu0 %v1921, 64
    %v1995 = vpop.permute.xlu0 %1994
    %1996 = vrot.lane.b32.xlu0 %v1926, 64
    %v1997 = vpop.permute.xlu0 %1996
    %1998 = vrot.lane.b32.xlu0 %v1929, 64
    %v1999 = vpop.permute.xlu0 %1998
    %2000 = vrot.lane.b32.xlu0 %v1934, 64
    %v2001 = vpop.permute.xlu0 %2000
    %2002 = vrot.lane.b32.xlu0 %v1937, 64
    %v2003 = vpop.permute.xlu0 %2002
    %2004 = vrot.lane.b32.xlu0 %v1942, 64
    %v2005 = vpop.permute.xlu0 %2004
    %2006 = vrot.lane.b32.xlu0 %v1945, 64
    %v2007 = vpop.permute.xlu0 %2006
    %2008 = vrot.lane.b32.xlu0 %v1950, 64
    %v2009 = vpop.permute.xlu0 %2008
    %2010 = vrot.lane.b32.xlu0 %v1953, 64
    %v2011 = vpop.permute.xlu0 %2010
    %2012 = vrot.lane.b32.xlu0 %v1958, 64
    %v2013 = vpop.permute.xlu0 %2012
    %2014 = vrot.lane.b32.xlu0 %v1961, 64
    %v2015 = vpop.permute.xlu0 %2014
    %2016 = vrot.lane.b32.xlu0 %v1966, 64
    %v2017 = vpop.permute.xlu0 %2016
    %2018 = vrot.lane.b32.xlu0 %v1969, 64
    %v2019 = vpop.permute.xlu0 %2018
    %v2036 = vadd.f32 %v433, %v1989
    %v2037 = vadd.f32 %v434, %v1991
    %v2038 = vadd.f32 %v435, %v1993
    %v2039 = vadd.f32 %v436, %v1995
    %v2040 = vadd.f32 %v437, %v1997
    %v2041 = vadd.f32 %v438, %v1999
    %v2042 = vadd.f32 %v439, %v2001
    %v2043 = vadd.f32 %v440, %v2003
    %v2044 = vadd.f32 %v441, %v2005
    %v2045 = vadd.f32 %v442, %v2007
    %v2046 = vadd.f32 %v443, %v2009
    %v2047 = vadd.f32 %v444, %v2011
    %v2048 = vadd.f32 %v445, %v2013
    %v2049 = vadd.f32 %v446, %v2015
    %v2050 = vadd.f32 %v447, %v2017
    %v2051 = vadd.f32 %v448, %v2019
    %v2052 = vld [vmem:[%s7] sm:$0x1]
    %v2054 = vlaneseq
    %v2055 = vshrl.u32 %v2054, 7
    %v2056 = vsub.s32 0, %v2055
    %v2057 = vrot.slane %v2052, %v2056
    %2058 = vrot.lane.b32.xlu0 %v2057, 64
    %v2059 = vpop.permute.xlu0 %2058
    %v2061 = vadd.f32 %v2036, %v2059
    %v2062 = vadd.f32 %v2037, %v2059
    %v2063 = vadd.f32 %v2038, %v2059
    %v2064 = vadd.f32 %v2039, %v2059
    %v2065 = vadd.f32 %v2040, %v2059
    %v2066 = vadd.f32 %v2041, %v2059
    %v2067 = vadd.f32 %v2042, %v2059
    %v2068 = vadd.f32 %v2043, %v2059
    %v2069 = vadd.f32 %v2044, %v2059
    %v2070 = vadd.f32 %v2045, %v2059
    %v2071 = vadd.f32 %v2046, %v2059
    %v2072 = vadd.f32 %v2047, %v2059
    %v2073 = vadd.f32 %v2048, %v2059
    %v2074 = vadd.f32 %v2049, %v2059
    %v2075 = vadd.f32 %v2050, %v2059
    %v2076 = vadd.f32 %v2051, %v2059
    %v2077 = vpack.c.bf16 %v2062, %v2061
    %v2078 = vpack.c.bf16 %v2064, %v2063
    %v2079 = vpack.c.bf16 %v2066, %v2065
    %v2080 = vpack.c.bf16 %v2068, %v2067
    %v2081 = vpack.c.bf16 %v2070, %v2069
    %v2082 = vpack.c.bf16 %v2072, %v2071
    %v2083 = vpack.c.bf16 %v2074, %v2073
    %v2084 = vpack.c.bf16 %v2076, %v2075
    %v2085 = vld [vmem:[%s8] sm:$0xf]
    %v2086 = vld [vmem:[%s8 + $0x4] sm:$0xf]
    %v2087 = vld [vmem:[%s8 + $0x8] sm:$0xf]
    %v2088 = vld [vmem:[%s8 + $0xc] sm:$0xf]
    %v2089 = vld [vmem:[%s8 + $0x10] sm:$0xf]
    %v2090 = vld [vmem:[%s8 + $0x14] sm:$0xf]
    %v2091 = vld [vmem:[%s8 + $0x18] sm:$0xf]
    %v2092 = vld [vmem:[%s8 + $0x1c] sm:$0xf]
    %v2093 = vld [vmem:[%s9] sm:$0x1]
    %v2095 = vlaneseq
    %v2096 = vshrl.u32 %v2095, 7
    %v2097 = vsub.s32 0, %v2096
    %v2098 = vrot.slane %v2093, %v2097
    %2108 = vrot.lane.b32.xlu0 %v2077, 64
    %v2109 = vpop.permute.xlu0 %2108
    %2110 = vrot.lane.b32.xlu0 %v2078, 64
    %v2111 = vpop.permute.xlu0 %2110
    %2112 = vrot.lane.b32.xlu0 %v2079, 64
    %v2113 = vpop.permute.xlu0 %2112
    %2114 = vrot.lane.b32.xlu0 %v2080, 64
    %v2115 = vpop.permute.xlu0 %2114
    %2116 = vrot.lane.b32.xlu0 %v2081, 64
    %v2117 = vpop.permute.xlu0 %2116
    %2118 = vrot.lane.b32.xlu0 %v2082, 64
    %v2119 = vpop.permute.xlu0 %2118
    %2120 = vrot.lane.b32.xlu0 %v2083, 64
    %v2121 = vpop.permute.xlu0 %2120
    %2122 = vrot.lane.b32.xlu0 %v2084, 64
    %v2123 = vpop.permute.xlu0 %2122
    %v2132 = vunpack.c.l.b16 %v2085
    %v2133 = vunpack.c.l.b16 %v2086
    %v2134 = vunpack.c.l.b16 %v2087
    %v2135 = vunpack.c.l.b16 %v2088
    %v2136 = vunpack.c.l.b16 %v2089
    %v2137 = vunpack.c.l.b16 %v2090
    %v2138 = vunpack.c.l.b16 %v2091
    %v2139 = vunpack.c.l.b16 %v2092
    %v2140 = vpack.c.b16 %v2133, %v2132
    %v2141 = vpack.c.b16 %v2135, %v2134
    %v2142 = vpack.c.b16 %v2137, %v2136
    %v2143 = vpack.c.b16 %v2139, %v2138
    %v2149 = vsel %vm520, %v2109, 0
    %v2152 = vsel %vm520, %v2111, 0
    %v2155 = vsel %vm520, %v2113, 0
    %v2158 = vsel %vm520, %v2115, 0
    %v2161 = vsel %vm520, %v2117, 0
    %v2164 = vsel %vm520, %v2119, 0
    %v2167 = vsel %vm520, %v2121, 0
    %v2170 = vsel %vm520, %v2123, 0
    %2172 = vmatprep.subr.bf16.mxu0 0
    %2173 = vmatpush1.bf16.msra.mxu0 %v2140
    %2174 = vmatprep.subr.bf16.mxu0 0
    %2175 = vmatpush1.bf16.msra.mxu0 %v2141
    %2176 = vmatprep.subr.bf16.mxu0 0
    %2177 = vmatpush1.bf16.msra.mxu0 %v2142
    %2178 = vmatprep.subr.bf16.mxu0 0
    %2179 = vmatpush1.bf16.msra.mxu0 %v2143
    %2180 = vmatprep.subr.bf16.mxu0 0
    %2181 = vmatpush1.bf16.msra.mxu0 0
    %2182 = vmatprep.subr.bf16.mxu0 0
    %2183 = vmatpush1.bf16.msra.mxu0 0
    %2184 = vmatprep.subr.bf16.mxu0 0
    %2185 = vmatpush1.bf16.msra.mxu0 0
    %2186 = vmatprep.subr.bf16.mxu0 0
    %2187 = vmatpush1.bf16.msra.mxu0 0
    %2188 = vmatprep.subr.bf16.mxu0 0
    %2189 = vmatpush1.bf16.msra.mxu0 0
    %2190 = vmatprep.subr.bf16.mxu0 0
    %2191 = vmatpush1.bf16.msra.mxu0 0
    %2192 = vmatprep.subr.bf16.mxu0 0
    %2193 = vmatpush1.bf16.msra.mxu0 0
    %2194 = vmatprep.subr.bf16.mxu0 0
    %2195 = vmatpush1.bf16.msra.mxu0 0
    %2196 = vmatprep.subr.bf16.mxu0 0
    %2197 = vmatpush1.bf16.msra.mxu0 0
    %2198 = vmatprep.subr.bf16.mxu0 0
    %2199 = vmatpush1.bf16.msra.mxu0 0
    %2200 = vmatprep.subr.bf16.mxu0 0
    %2201 = vmatpush1.bf16.msra.mxu0 0
    %2202 = vmatprep.subr.bf16.mxu0 0
    %2203 = vmatpush1.bf16.msra.mxu0 0
    %2204 = vmatprep.mubr.bf16.mxu0 0
    %2205 = vmatmul.mubr.bf16.gmra.mrb[0].mxu0 %v2149
    %v2206 = vpop.f32.mrb[0].mxu0
    %v2207 = vadd.f32 %v2098, %v2206
    %v2208 = vpop.f32.mrb[0].mxu0
    %v2209 = vpop.f32.mrb[0].mxu0
    %v2210 = vadd.f32 %v2098, %v2209
    %v2211 = vpop.f32.mrb[0].mxu0
    %2212 = vmatprep.mubr.bf16.mxu0 0
    %2213 = vmatmul.mubr.bf16.gmra.mrb[0].mxu0 %v2152
    %v2214 = vpop.f32.mrb[0].mxu0
    %v2215 = vadd.f32 %v2098, %v2214
    %v2216 = vpop.f32.mrb[0].mxu0
    %v2217 = vpop.f32.mrb[0].mxu0
    %v2218 = vadd.f32 %v2098, %v2217
    %v2219 = vpop.f32.mrb[0].mxu0
    %2220 = vmatprep.mubr.bf16.mxu0 0
    %2221 = vmatmul.mubr.bf16.gmra.mrb[0].mxu0 %v2155
    %v2222 = vpop.f32.mrb[0].mxu0
    %v2223 = vadd.f32 %v2098, %v2222
    %v2224 = vpop.f32.mrb[0].mxu0
    %v2225 = vpop.f32.mrb[0].mxu0
    %v2226 = vadd.f32 %v2098, %v2225
    %v2227 = vpop.f32.mrb[0].mxu0
    %2228 = vmatprep.mubr.bf16.mxu0 0
    %2229 = vmatmul.mubr.bf16.gmra.mrb[0].mxu0 %v2158
    %v2230 = vpop.f32.mrb[0].mxu0
    %v2231 = vadd.f32 %v2098, %v2230
    %v2232 = vpop.f32.mrb[0].mxu0
    %v2233 = vpop.f32.mrb[0].mxu0
    %v2234 = vadd.f32 %v2098, %v2233
    %v2235 = vpop.f32.mrb[0].mxu0
    %2236 = vmatprep.mubr.bf16.mxu0 0
    %2237 = vmatmul.mubr.bf16.gmra.mrb[0].mxu0 %v2161
    %v2238 = vpop.f32.mrb[0].mxu0
    %v2239 = vadd.f32 %v2098, %v2238
    %v2240 = vpop.f32.mrb[0].mxu0
    %v2241 = vpop.f32.mrb[0].mxu0
    %v2242 = vadd.f32 %v2098, %v2241
    %v2243 = vpop.f32.mrb[0].mxu0
    %2244 = vmatprep.mubr.bf16.mxu0 0
    %2245 = vmatmul.mubr.bf16.gmra.mrb[0].mxu0 %v2164
    %v2246 = vpop.f32.mrb[0].mxu0
    %v2247 = vadd.f32 %v2098, %v2246
    %v2248 = vpop.f32.mrb[0].mxu0
    %v2249 = vpop.f32.mrb[0].mxu0
    %v2250 = vadd.f32 %v2098, %v2249
    %v2251 = vpop.f32.mrb[0].mxu0
    %2252 = vmatprep.mubr.bf16.mxu0 0
    %2253 = vmatmul.mubr.bf16.gmra.mrb[0].mxu0 %v2167
    %v2254 = vpop.f32.mrb[0].mxu0
    %v2255 = vadd.f32 %v2098, %v2254
    %v2256 = vpop.f32.mrb[0].mxu0
    %v2257 = vpop.f32.mrb[0].mxu0
    %v2258 = vadd.f32 %v2098, %v2257
    %v2259 = vpop.f32.mrb[0].mxu0
    %2260 = vmatprep.mubr.bf16.mxu0 0
    %2261 = vmatmul.mubr.bf16.gmra.mrb[0].mxu0 %v2170
    %v2262 = vpop.f32.mrb[0].mxu0
    %v2263 = vadd.f32 %v2098, %v2262
    %v2264 = vpop.f32.mrb[0].mxu0
    %v2265 = vpop.f32.mrb[0].mxu0
    %v2266 = vadd.f32 %v2098, %v2265
    %v2267 = vpop.f32.mrb[0].mxu0
    %2268 = vdwg.mxu0
    %v2269 = vxor.u32 %v2207, 2147483648
    %v2270 = vxor.u32 %v2210, 2147483648
    %v2271 = vxor.u32 %v2215, 2147483648
    %v2272 = vxor.u32 %v2218, 2147483648
    %v2273 = vxor.u32 %v2223, 2147483648
    %v2274 = vxor.u32 %v2226, 2147483648
    %v2275 = vxor.u32 %v2231, 2147483648
    %v2276 = vxor.u32 %v2234, 2147483648
    %v2277 = vxor.u32 %v2239, 2147483648
    %v2278 = vxor.u32 %v2242, 2147483648
    %v2279 = vxor.u32 %v2247, 2147483648
    %v2280 = vxor.u32 %v2250, 2147483648
    %v2281 = vxor.u32 %v2255, 2147483648
    %v2282 = vxor.u32 %v2258, 2147483648
    %v2283 = vxor.u32 %v2263, 2147483648
    %v2284 = vxor.u32 %v2266, 2147483648
    %v2285 = vmul.f32 %v2269, 1.442695
    %v2286 = vpow.pop %v2285
    %v2287 = vmul.f32 %v2270, 1.442695
    %v2288 = vpow.pop %v2287
    %v2289 = vmul.f32 %v2271, 1.442695
    %v2290 = vpow.pop %v2289
    %v2291 = vmul.f32 %v2272, 1.442695
    %v2292 = vpow.pop %v2291
    %v2293 = vmul.f32 %v2273, 1.442695
    %v2294 = vpow.pop %v2293
    %v2295 = vmul.f32 %v2274, 1.442695
    %v2296 = vpow.pop %v2295
    %v2297 = vmul.f32 %v2275, 1.442695
    %v2298 = vpow.pop %v2297
    %v2299 = vmul.f32 %v2276, 1.442695
    %v2300 = vpow.pop %v2299
    %v2301 = vmul.f32 %v2277, 1.442695
    %v2302 = vpow.pop %v2301
    %v2303 = vmul.f32 %v2278, 1.442695
    %v2304 = vpow.pop %v2303
    %v2305 = vmul.f32 %v2279, 1.442695
    %v2306 = vpow.pop %v2305
    %v2307 = vmul.f32 %v2280, 1.442695
    %v2308 = vpow.pop %v2307
    %v2309 = vmul.f32 %v2281, 1.442695
    %v2310 = vpow.pop %v2309
    %v2311 = vmul.f32 %v2282, 1.442695
    %v2312 = vpow.pop %v2311
    %v2313 = vmul.f32 %v2283, 1.442695
    %v2314 = vpow.pop %v2313
    %v2315 = vmul.f32 %v2284, 1.442695
    %v2316 = vpow.pop %v2315
    %v2317 = vadd.f32 %v2286, 1.0
    %v2318 = vadd.f32 %v2288, 1.0
    %v2319 = vadd.f32 %v2290, 1.0
    %v2320 = vadd.f32 %v2292, 1.0
    %v2321 = vadd.f32 %v2294, 1.0
    %v2322 = vadd.f32 %v2296, 1.0
    %v2323 = vadd.f32 %v2298, 1.0
    %v2324 = vadd.f32 %v2300, 1.0
    %v2325 = vadd.f32 %v2302, 1.0
    %v2326 = vadd.f32 %v2304, 1.0
    %v2327 = vadd.f32 %v2306, 1.0
    %v2328 = vadd.f32 %v2308, 1.0
    %v2329 = vadd.f32 %v2310, 1.0
    %v2330 = vadd.f32 %v2312, 1.0
    %v2331 = vadd.f32 %v2314, 1.0
    %v2332 = vadd.f32 %v2316, 1.0
    %v2333 = vrcp.pop %v2317
    %v2334 = vmul.f32 1.0, %v2333
    %v2335 = vrcp.pop %v2318
    %v2336 = vmul.f32 1.0, %v2335
    %v2337 = vrcp.pop %v2319
    %v2338 = vmul.f32 1.0, %v2337
    %v2339 = vrcp.pop %v2320
    %v2340 = vmul.f32 1.0, %v2339
    %v2341 = vrcp.pop %v2321
    %v2342 = vmul.f32 1.0, %v2341
    %v2343 = vrcp.pop %v2322
    %v2344 = vmul.f32 1.0, %v2343
    %v2345 = vrcp.pop %v2323
    %v2346 = vmul.f32 1.0, %v2345
    %v2347 = vrcp.pop %v2324
    %v2348 = vmul.f32 1.0, %v2347
    %v2349 = vrcp.pop %v2325
    %v2350 = vmul.f32 1.0, %v2349
    %v2351 = vrcp.pop %v2326
    %v2352 = vmul.f32 1.0, %v2351
    %v2353 = vrcp.pop %v2327
    %v2354 = vmul.f32 1.0, %v2353
    %v2355 = vrcp.pop %v2328
    %v2356 = vmul.f32 1.0, %v2355
    %v2357 = vrcp.pop %v2329
    %v2358 = vmul.f32 1.0, %v2357
    %v2359 = vrcp.pop %v2330
    %v2360 = vmul.f32 1.0, %v2359
    %v2361 = vrcp.pop %v2331
    %v2362 = vmul.f32 1.0, %v2361
    %v2363 = vrcp.pop %v2332
    %v2364 = vmul.f32 1.0, %v2363
    %v2365 = vmul.f32 %v2207, %v2334
    %v2366 = vmul.f32 %v2210, %v2336
    %v2367 = vmul.f32 %v2215, %v2338
    %v2368 = vmul.f32 %v2218, %v2340
    %v2369 = vmul.f32 %v2223, %v2342
    %v2370 = vmul.f32 %v2226, %v2344
    %v2371 = vmul.f32 %v2231, %v2346
    %v2372 = vmul.f32 %v2234, %v2348
    %v2373 = vmul.f32 %v2239, %v2350
    %v2374 = vmul.f32 %v2242, %v2352
    %v2375 = vmul.f32 %v2247, %v2354
    %v2376 = vmul.f32 %v2250, %v2356
    %v2377 = vmul.f32 %v2255, %v2358
    %v2378 = vmul.f32 %v2258, %v2360
    %v2379 = vmul.f32 %v2263, %v2362
    %v2380 = vmul.f32 %v2266, %v2364
    %v2381 = vpack.c.bf16 %v2366, %v2365
    %v2382 = vpack.c.bf16 %v2368, %v2367
    %v2383 = vpack.c.bf16 %v2370, %v2369
    %v2384 = vpack.c.bf16 %v2372, %v2371
    %v2385 = vpack.c.bf16 %v2374, %v2373
    %v2386 = vpack.c.bf16 %v2376, %v2375
    %v2387 = vpack.c.bf16 %v2378, %v2377
    %v2388 = vpack.c.bf16 %v2380, %v2379
    %v2389 = vld [vmem:[%s10] sm:$0xf]
    %v2390 = vld [vmem:[%s10 + $0x4] sm:$0xf]
    %v2391 = vld [vmem:[%s10 + $0x8] sm:$0xf]
    %v2392 = vld [vmem:[%s10 + $0xc] sm:$0xf]
    %v2393 = vld [vmem:[%s10 + $0x10] sm:$0xf]
    %v2394 = vld [vmem:[%s10 + $0x14] sm:$0xf]
    %v2395 = vld [vmem:[%s10 + $0x18] sm:$0xf]
    %v2396 = vld [vmem:[%s10 + $0x1c] sm:$0xf]
    %v2397 = vld [vmem:[%s10 + $0x20] sm:$0xf]
    %v2398 = vld [vmem:[%s10 + $0x24] sm:$0xf]
    %v2399 = vld [vmem:[%s10 + $0x28] sm:$0xf]
    %v2400 = vld [vmem:[%s10 + $0x2c] sm:$0xf]
    %v2401 = vld [vmem:[%s10 + $0x30] sm:$0xf]
    %v2402 = vld [vmem:[%s10 + $0x34] sm:$0xf]
    %v2403 = vld [vmem:[%s10 + $0x38] sm:$0xf]
    %v2404 = vld [vmem:[%s10 + $0x3c] sm:$0xf]
    %v2421 = vunpack.c.l.b16 %v2389
    %v2422 = vunpack.c.l.b16 %v2390
    %v2423 = vunpack.c.l.b16 %v2391
    %v2424 = vunpack.c.l.b16 %v2392
    %v2425 = vunpack.c.l.b16 %v2393
    %v2426 = vunpack.c.l.b16 %v2394
    %v2427 = vunpack.c.l.b16 %v2395
    %v2428 = vunpack.c.l.b16 %v2396
    %v2429 = vunpack.c.l.b16 %v2397
    %v2430 = vunpack.c.l.b16 %v2398
    %v2431 = vunpack.c.l.b16 %v2399
    %v2432 = vunpack.c.l.b16 %v2400
    %v2433 = vunpack.c.l.b16 %v2401
    %v2434 = vunpack.c.l.b16 %v2402
    %v2435 = vunpack.c.l.b16 %v2403
    %v2436 = vunpack.c.l.b16 %v2404
    %v2437 = vpack.c.b16 %v2422, %v2421
    %v2438 = vpack.c.b16 %v2424, %v2423
    %v2439 = vpack.c.b16 %v2426, %v2425
    %v2440 = vpack.c.b16 %v2428, %v2427
    %v2441 = vpack.c.b16 %v2430, %v2429
    %v2442 = vpack.c.b16 %v2432, %v2431
    %v2443 = vpack.c.b16 %v2434, %v2433
    %v2444 = vpack.c.b16 %v2436, %v2435
    %2453 = vmatprep.subr.bf16.mxu0 0
    %2454 = vmatpush1.bf16.msra.mxu0 %v2437
    %2455 = vmatprep.subr.bf16.mxu0 0
    %2456 = vmatpush1.bf16.msra.mxu0 %v2438
    %2457 = vmatprep.subr.bf16.mxu0 0
    %2458 = vmatpush1.bf16.msra.mxu0 %v2439
    %2459 = vmatprep.subr.bf16.mxu0 0
    %2460 = vmatpush1.bf16.msra.mxu0 %v2440
    %2461 = vmatprep.subr.bf16.mxu0 0
    %2462 = vmatpush1.bf16.msra.mxu0 %v2441
    %2463 = vmatprep.subr.bf16.mxu0 0
    %2464 = vmatpush1.bf16.msra.mxu0 %v2442
    %2465 = vmatprep.subr.bf16.mxu0 0
    %2466 = vmatpush1.bf16.msra.mxu0 %v2443
    %2467 = vmatprep.subr.bf16.mxu0 0
    %2468 = vmatpush1.bf16.msra.mxu0 %v2444
    %2469 = vmatprep.subr.bf16.mxu0 0
    %2470 = vmatpush1.bf16.msra.mxu0 0
    %2471 = vmatprep.subr.bf16.mxu0 0
    %2472 = vmatpush1.bf16.msra.mxu0 0
    %2473 = vmatprep.subr.bf16.mxu0 0
    %2474 = vmatpush1.bf16.msra.mxu0 0
    %2475 = vmatprep.subr.bf16.mxu0 0
    %2476 = vmatpush1.bf16.msra.mxu0 0
    %2477 = vmatprep.subr.bf16.mxu0 0
    %2478 = vmatpush1.bf16.msra.mxu0 0
    %2479 = vmatprep.subr.bf16.mxu0 0
    %2480 = vmatpush1.bf16.msra.mxu0 0
    %2481 = vmatprep.subr.bf16.mxu0 0
    %2482 = vmatpush1.bf16.msra.mxu0 0
    %2483 = vmatprep.subr.bf16.mxu0 0
    %2484 = vmatpush1.bf16.msra.mxu0 0
    %2485 = vmatprep.mubr.bf16.mxu0 0
    %2486 = vmatmul.mubr.bf16.gmra.mrb[0].mxu0 %v2381
    %v2487 = vpop.f32.mrb[0].mxu0
    %v2488 = vadd.f32 0.0, %v2487
    %v2489 = vpop.f32.mrb[0].mxu0
    %v2490 = vpop.f32.mrb[0].mxu0
    %v2491 = vadd.f32 0.0, %v2490
    %v2492 = vpop.f32.mrb[0].mxu0
    %2493 = vmatprep.mubr.bf16.mxu0 0
    %2494 = vmatmul.mubr.bf16.gmra.mrb[0].mxu0 %v2382
    %v2495 = vpop.f32.mrb[0].mxu0
    %v2496 = vadd.f32 0.0, %v2495
    %v2497 = vpop.f32.mrb[0].mxu0
    %v2498 = vpop.f32.mrb[0].mxu0
    %v2499 = vadd.f32 0.0, %v2498
    %v2500 = vpop.f32.mrb[0].mxu0
    %2501 = vmatprep.mubr.bf16.mxu0 0
    %2502 = vmatmul.mubr.bf16.gmra.mrb[0].mxu0 %v2383
    %v2503 = vpop.f32.mrb[0].mxu0
    %v2504 = vadd.f32 0.0, %v2503
    %v2505 = vpop.f32.mrb[0].mxu0
    %v2506 = vpop.f32.mrb[0].mxu0
    %v2507 = vadd.f32 0.0, %v2506
    %v2508 = vpop.f32.mrb[0].mxu0
    %2509 = vmatprep.mubr.bf16.mxu0 0
    %2510 = vmatmul.mubr.bf16.gmra.mrb[0].mxu0 %v2384
    %v2511 = vpop.f32.mrb[0].mxu0
    %v2512 = vadd.f32 0.0, %v2511
    %v2513 = vpop.f32.mrb[0].mxu0
    %v2514 = vpop.f32.mrb[0].mxu0
    %v2515 = vadd.f32 0.0, %v2514
    %v2516 = vpop.f32.mrb[0].mxu0
    %2517 = vmatprep.mubr.bf16.mxu0 0
    %2518 = vmatmul.mubr.bf16.gmra.mrb[0].mxu0 %v2385
    %v2519 = vpop.f32.mrb[0].mxu0
    %v2520 = vadd.f32 0.0, %v2519
    %v2521 = vpop.f32.mrb[0].mxu0
    %v2522 = vpop.f32.mrb[0].mxu0
    %v2523 = vadd.f32 0.0, %v2522
    %v2524 = vpop.f32.mrb[0].mxu0
    %2525 = vmatprep.mubr.bf16.mxu0 0
    %2526 = vmatmul.mubr.bf16.gmra.mrb[0].mxu0 %v2386
    %v2527 = vpop.f32.mrb[0].mxu0
    %v2528 = vadd.f32 0.0, %v2527
    %v2529 = vpop.f32.mrb[0].mxu0
    %v2530 = vpop.f32.mrb[0].mxu0
    %v2531 = vadd.f32 0.0, %v2530
    %v2532 = vpop.f32.mrb[0].mxu0
    %2533 = vmatprep.mubr.bf16.mxu0 0
    %2534 = vmatmul.mubr.bf16.gmra.mrb[0].mxu0 %v2387
    %v2535 = vpop.f32.mrb[0].mxu0
    %v2536 = vadd.f32 0.0, %v2535
    %v2537 = vpop.f32.mrb[0].mxu0
    %v2538 = vpop.f32.mrb[0].mxu0
    %v2539 = vadd.f32 0.0, %v2538
    %v2540 = vpop.f32.mrb[0].mxu0
    %2541 = vmatprep.mubr.bf16.mxu0 0
    %2542 = vmatmul.mubr.bf16.gmra.mrb[0].mxu0 %v2388
    %v2543 = vpop.f32.mrb[0].mxu0
    %v2544 = vadd.f32 0.0, %v2543
    %v2545 = vpop.f32.mrb[0].mxu0
    %v2546 = vpop.f32.mrb[0].mxu0
    %v2547 = vadd.f32 0.0, %v2546
    %v2548 = vpop.f32.mrb[0].mxu0
    %2549 = vdwg.mxu0
    %2566 = vrot.lane.b32.xlu0 %v2488, 64
    %v2567 = vpop.permute.xlu0 %2566
    %2568 = vrot.lane.b32.xlu0 %v2491, 64
    %v2569 = vpop.permute.xlu0 %2568
    %2570 = vrot.lane.b32.xlu0 %v2496, 64
    %v2571 = vpop.permute.xlu0 %2570
    %2572 = vrot.lane.b32.xlu0 %v2499, 64
    %v2573 = vpop.permute.xlu0 %2572
    %2574 = vrot.lane.b32.xlu0 %v2504, 64
    %v2575 = vpop.permute.xlu0 %2574
    %2576 = vrot.lane.b32.xlu0 %v2507, 64
    %v2577 = vpop.permute.xlu0 %2576
    %2578 = vrot.lane.b32.xlu0 %v2512, 64
    %v2579 = vpop.permute.xlu0 %2578
    %2580 = vrot.lane.b32.xlu0 %v2515, 64
    %v2581 = vpop.permute.xlu0 %2580
    %2582 = vrot.lane.b32.xlu0 %v2520, 64
    %v2583 = vpop.permute.xlu0 %2582
    %2584 = vrot.lane.b32.xlu0 %v2523, 64
    %v2585 = vpop.permute.xlu0 %2584
    %2586 = vrot.lane.b32.xlu0 %v2528, 64
    %v2587 = vpop.permute.xlu0 %2586
    %2588 = vrot.lane.b32.xlu0 %v2531, 64
    %v2589 = vpop.permute.xlu0 %2588
    %2590 = vrot.lane.b32.xlu0 %v2536, 64
    %v2591 = vpop.permute.xlu0 %2590
    %2592 = vrot.lane.b32.xlu0 %v2539, 64
    %v2593 = vpop.permute.xlu0 %2592
    %2594 = vrot.lane.b32.xlu0 %v2544, 64
    %v2595 = vpop.permute.xlu0 %2594
    %2596 = vrot.lane.b32.xlu0 %v2547, 64
    %v2597 = vpop.permute.xlu0 %2596
    %v2614 = vadd.f32 %v2061, %v2567
    %v2615 = vadd.f32 %v2062, %v2569
    %v2616 = vadd.f32 %v2063, %v2571
    %v2617 = vadd.f32 %v2064, %v2573
    %v2618 = vadd.f32 %v2065, %v2575
    %v2619 = vadd.f32 %v2066, %v2577
    %v2620 = vadd.f32 %v2067, %v2579
    %v2621 = vadd.f32 %v2068, %v2581
    %v2622 = vadd.f32 %v2069, %v2583
    %v2623 = vadd.f32 %v2070, %v2585
    %v2624 = vadd.f32 %v2071, %v2587
    %v2625 = vadd.f32 %v2072, %v2589
    %v2626 = vadd.f32 %v2073, %v2591
    %v2627 = vadd.f32 %v2074, %v2593
    %v2628 = vadd.f32 %v2075, %v2595
    %v2629 = vadd.f32 %v2076, %v2597
    %v2630 = vld [vmem:[%s11] sm:$0x1]
    %v2632 = vlaneseq
    %v2633 = vshrl.u32 %v2632, 7
    %v2634 = vsub.s32 0, %v2633
    %v2635 = vrot.slane %v2630, %v2634
    %2636 = vrot.lane.b32.xlu0 %v2635, 64
    %v2637 = vpop.permute.xlu0 %2636
    %v2639 = vadd.f32 %v2614, %v2637
    %v2640 = vadd.f32 %v2615, %v2637
    %v2641 = vadd.f32 %v2616, %v2637
    %v2642 = vadd.f32 %v2617, %v2637
    %v2643 = vadd.f32 %v2618, %v2637
    %v2644 = vadd.f32 %v2619, %v2637
    %v2645 = vadd.f32 %v2620, %v2637
    %v2646 = vadd.f32 %v2621, %v2637
    %v2647 = vadd.f32 %v2622, %v2637
    %v2648 = vadd.f32 %v2623, %v2637
    %v2649 = vadd.f32 %v2624, %v2637
    %v2650 = vadd.f32 %v2625, %v2637
    %v2651 = vadd.f32 %v2626, %v2637
    %v2652 = vadd.f32 %v2627, %v2637
    %v2653 = vadd.f32 %v2628, %v2637
    %v2654 = vadd.f32 %v2629, %v2637
    %v2655 = vld [vmem:[%s12] sm:$0xf]
    %v2656 = vld [vmem:[%s12 + $0x4] sm:$0xf]
    %v2657 = vld [vmem:[%s12 + $0x8] sm:$0xf]
    %v2658 = vld [vmem:[%s12 + $0xc] sm:$0xf]
    %v2659 = vld [vmem:[%s12 + $0x10] sm:$0xf]
    %v2660 = vld [vmem:[%s12 + $0x14] sm:$0xf]
    %v2661 = vld [vmem:[%s12 + $0x18] sm:$0xf]
    %v2662 = vld [vmem:[%s12 + $0x1c] sm:$0xf]
    %v2663 = vpack.c.bf16 %v2640, %v2639
    %v2664 = vpack.c.bf16 %v2642, %v2641
    %v2665 = vpack.c.bf16 %v2644, %v2643
    %v2666 = vpack.c.bf16 %v2646, %v2645
    %v2667 = vpack.c.bf16 %v2648, %v2647
    %v2668 = vpack.c.bf16 %v2650, %v2649
    %v2669 = vpack.c.bf16 %v2652, %v2651
    %v2670 = vpack.c.bf16 %v2654, %v2653
    %v2671 = vld [vmem:[%s13] sm:$0xf]
    %v2672 = vld [vmem:[%s13 + $0x4] sm:$0xf]
    %v2673 = vld [vmem:[%s13 + $0x8] sm:$0xf]
    %v2674 = vld [vmem:[%s13 + $0xc] sm:$0xf]
    %v2675 = vld [vmem:[%s13 + $0x10] sm:$0xf]
    %v2676 = vld [vmem:[%s13 + $0x14] sm:$0xf]
    %v2677 = vld [vmem:[%s13 + $0x18] sm:$0xf]
    %v2678 = vld [vmem:[%s13 + $0x1c] sm:$0xf]
    %2687 = vrot.lane.b32.xlu0 %v2663, 64
    %v2688 = vpop.permute.xlu0 %2687
    %2689 = vrot.lane.b32.xlu0 %v2664, 64
    %v2690 = vpop.permute.xlu0 %2689
    %2691 = vrot.lane.b32.xlu0 %v2665, 64
    %v2692 = vpop.permute.xlu0 %2691
    %2693 = vrot.lane.b32.xlu0 %v2666, 64
    %v2694 = vpop.permute.xlu0 %2693
    %2695 = vrot.lane.b32.xlu0 %v2667, 64
    %v2696 = vpop.permute.xlu0 %2695
    %2697 = vrot.lane.b32.xlu0 %v2668, 64
    %v2698 = vpop.permute.xlu0 %2697
    %2699 = vrot.lane.b32.xlu0 %v2669, 64
    %v2700 = vpop.permute.xlu0 %2699
    %2701 = vrot.lane.b32.xlu0 %v2670, 64
    %v2702 = vpop.permute.xlu0 %2701
    %v2711 = vunpack.c.l.b16 %v2671
    %v2712 = vunpack.c.l.b16 %v2672
    %v2713 = vunpack.c.l.b16 %v2673
    %v2714 = vunpack.c.l.b16 %v2674
    %v2715 = vunpack.c.l.b16 %v2675
    %v2716 = vunpack.c.l.b16 %v2676
    %v2717 = vunpack.c.l.b16 %v2677
    %v2718 = vunpack.c.l.b16 %v2678
    %v2719 = vpack.c.b16 %v2712, %v2711
    %v2720 = vpack.c.b16 %v2714, %v2713
    %v2721 = vpack.c.b16 %v2716, %v2715
    %v2722 = vpack.c.b16 %v2718, %v2717
    %v2728 = vsel %vm520, %v2688, 0
    %v2731 = vsel %vm520, %v2690, 0
    %v2734 = vsel %vm520, %v2692, 0
    %v2737 = vsel %vm520, %v2694, 0
    %v2740 = vsel %vm520, %v2696, 0
    %v2743 = vsel %vm520, %v2698, 0
    %v2746 = vsel %vm520, %v2700, 0
    %v2749 = vsel %vm520, %v2702, 0
    %2751 = vmatprep.subr.bf16.mxu0 0
    %2752 = vmatpush1.bf16.msra.mxu0 %v2719
    %2753 = vmatprep.subr.bf16.mxu0 0
    %2754 = vmatpush1.bf16.msra.mxu0 %v2720
    %2755 = vmatprep.subr.bf16.mxu0 0
    %2756 = vmatpush1.bf16.msra.mxu0 %v2721
    %2757 = vmatprep.subr.bf16.mxu0 0
    %2758 = vmatpush1.bf16.msra.mxu0 %v2722
    %2759 = vmatprep.subr.bf16.mxu0 0
    %2760 = vmatpush1.bf16.msra.mxu0 0
    %2761 = vmatprep.subr.bf16.mxu0 0
    %2762 = vmatpush1.bf16.msra.mxu0 0
    %2763 = vmatprep.subr.bf16.mxu0 0
    %2764 = vmatpush1.bf16.msra.mxu0 0
    %2765 = vmatprep.subr.bf16.mxu0 0
    %2766 = vmatpush1.bf16.msra.mxu0 0
    %2767 = vmatprep.subr.bf16.mxu0 0
    %2768 = vmatpush1.bf16.msra.mxu0 0
    %2769 = vmatprep.subr.bf16.mxu0 0
    %2770 = vmatpush1.bf16.msra.mxu0 0
    %2771 = vmatprep.subr.bf16.mxu0 0
    %2772 = vmatpush1.bf16.msra.mxu0 0
    %2773 = vmatprep.subr.bf16.mxu0 0
    %2774 = vmatpush1.bf16.msra.mxu0 0
    %2775 = vmatprep.subr.bf16.mxu0 0
    %2776 = vmatpush1.bf16.msra.mxu0 0
    %2777 = vmatprep.subr.bf16.mxu0 0
    %2778 = vmatpush1.bf16.msra.mxu0 0
    %2779 = vmatprep.subr.bf16.mxu0 0
    %2780 = vmatpush1.bf16.msra.mxu0 0
    %2781 = vmatprep.subr.bf16.mxu0 0
    %2782 = vmatpush1.bf16.msra.mxu0 0
    %2783 = vmatprep.mubr.bf16.mxu0 0
    %2784 = vmatmul.mubr.bf16.gmra.mrb[0].mxu0 %v2728
    %v2785 = vpop.f32.mrb[0].mxu0
    %v2786 = vadd.f32 0.0, %v2785
    %v2787 = vpop.f32.mrb[0].mxu0
    %v2788 = vpop.f32.mrb[0].mxu0
    %v2789 = vadd.f32 0.0, %v2788
    %v2790 = vpop.f32.mrb[0].mxu0
    %2791 = vmatprep.mubr.bf16.mxu0 0
    %2792 = vmatmul.mubr.bf16.gmra.mrb[0].mxu0 %v2731
    %v2793 = vpop.f32.mrb[0].mxu0
    %v2794 = vadd.f32 0.0, %v2793
    %v2795 = vpop.f32.mrb[0].mxu0
    %v2796 = vpop.f32.mrb[0].mxu0
    %v2797 = vadd.f32 0.0, %v2796
    %v2798 = vpop.f32.mrb[0].mxu0
    %2799 = vmatprep.mubr.bf16.mxu0 0
    %2800 = vmatmul.mubr.bf16.gmra.mrb[0].mxu0 %v2734
    %v2801 = vpop.f32.mrb[0].mxu0
    %v2802 = vadd.f32 0.0, %v2801
    %v2803 = vpop.f32.mrb[0].mxu0
    %v2804 = vpop.f32.mrb[0].mxu0
    %v2805 = vadd.f32 0.0, %v2804
    %v2806 = vpop.f32.mrb[0].mxu0
    %2807 = vmatprep.mubr.bf16.mxu0 0
    %2808 = vmatmul.mubr.bf16.gmra.mrb[0].mxu0 %v2737
    %v2809 = vpop.f32.mrb[0].mxu0
    %v2810 = vadd.f32 0.0, %v2809
    %v2811 = vpop.f32.mrb[0].mxu0
    %v2812 = vpop.f32.mrb[0].mxu0
    %v2813 = vadd.f32 0.0, %v2812
    %v2814 = vpop.f32.mrb[0].mxu0
    %2815 = vmatprep.mubr.bf16.mxu0 0
    %2816 = vmatmul.mubr.bf16.gmra.mrb[0].mxu0 %v2740
    %v2817 = vpop.f32.mrb[0].mxu0
    %v2818 = vadd.f32 0.0, %v2817
    %v2819 = vpop.f32.mrb[0].mxu0
    %v2820 = vpop.f32.mrb[0].mxu0
    %v2821 = vadd.f32 0.0, %v2820
    %v2822 = vpop.f32.mrb[0].mxu0
    %2823 = vmatprep.mubr.bf16.mxu0 0
    %2824 = vmatmul.mubr.bf16.gmra.mrb[0].mxu0 %v2743
    %v2825 = vpop.f32.mrb[0].mxu0
    %v2826 = vadd.f32 0.0, %v2825
    %v2827 = vpop.f32.mrb[0].mxu0
    %v2828 = vpop.f32.mrb[0].mxu0
    %v2829 = vadd.f32 0.0, %v2828
    %v2830 = vpop.f32.mrb[0].mxu0
    %2831 = vmatprep.mubr.bf16.mxu0 0
    %2832 = vmatmul.mubr.bf16.gmra.mrb[0].mxu0 %v2746
    %v2833 = vpop.f32.mrb[0].mxu0
    %v2834 = vadd.f32 0.0, %v2833
    %v2835 = vpop.f32.mrb[0].mxu0
    %v2836 = vpop.f32.mrb[0].mxu0
    %v2837 = vadd.f32 0.0, %v2836
    %v2838 = vpop.f32.mrb[0].mxu0
    %2839 = vmatprep.mubr.bf16.mxu0 0
    %2840 = vmatmul.mubr.bf16.gmra.mrb[0].mxu0 %v2749
    %v2841 = vpop.f32.mrb[0].mxu0
    %v2842 = vadd.f32 0.0, %v2841
    %v2843 = vpop.f32.mrb[0].mxu0
    %v2844 = vpop.f32.mrb[0].mxu0
    %v2845 = vadd.f32 0.0, %v2844
    %v2846 = vpop.f32.mrb[0].mxu0
    %2847 = vdwg.mxu0
    %v2856 = vunpack.c.l.b16 %v2655
    %v2857 = vunpack.c.l.b16 %v2656
    %v2858 = vunpack.c.l.b16 %v2657
    %v2859 = vunpack.c.l.b16 %v2658
    %v2860 = vunpack.c.l.b16 %v2659
    %v2861 = vunpack.c.l.b16 %v2660
    %v2862 = vunpack.c.l.b16 %v2661
    %v2863 = vunpack.c.l.b16 %v2662
    %v2864 = vpack.c.b16 %v2857, %v2856
    %v2865 = vpack.c.b16 %v2859, %v2858
    %v2866 = vpack.c.b16 %v2861, %v2860
    %v2867 = vpack.c.b16 %v2863, %v2862
    %v2873 = vsel %vm520, %v449, 0
    %v2876 = vsel %vm520, %v450, 0
    %v2879 = vsel %vm520, %v451, 0
    %v2882 = vsel %vm520, %v452, 0
    %v2885 = vsel %vm520, %v453, 0
    %v2888 = vsel %vm520, %v454, 0
    %v2891 = vsel %vm520, %v455, 0
    %v2894 = vsel %vm520, %v456, 0
    %2896 = vmatprep.subr.bf16.mxu0 0
    %2897 = vmatpush1.bf16.msra.mxu0 %v2864
    %2898 = vmatprep.subr.bf16.mxu0 0
    %2899 = vmatpush1.bf16.msra.mxu0 %v2865
    %2900 = vmatprep.subr.bf16.mxu0 0
    %2901 = vmatpush1.bf16.msra.mxu0 %v2866
    %2902 = vmatprep.subr.bf16.mxu0 0
    %2903 = vmatpush1.bf16.msra.mxu0 %v2867
    %2904 = vmatprep.subr.bf16.mxu0 0
    %2905 = vmatpush1.bf16.msra.mxu0 0
    %2906 = vmatprep.subr.bf16.mxu0 0
    %2907 = vmatpush1.bf16.msra.mxu0 0
    %2908 = vmatprep.subr.bf16.mxu0 0
    %2909 = vmatpush1.bf16.msra.mxu0 0
    %2910 = vmatprep.subr.bf16.mxu0 0
    %2911 = vmatpush1.bf16.msra.mxu0 0
    %2912 = vmatprep.subr.bf16.mxu0 0
    %2913 = vmatpush1.bf16.msra.mxu0 0
    %2914 = vmatprep.subr.bf16.mxu0 0
    %2915 = vmatpush1.bf16.msra.mxu0 0
    %2916 = vmatprep.subr.bf16.mxu0 0
    %2917 = vmatpush1.bf16.msra.mxu0 0
    %2918 = vmatprep.subr.bf16.mxu0 0
    %2919 = vmatpush1.bf16.msra.mxu0 0
    %2920 = vmatprep.subr.bf16.mxu0 0
    %2921 = vmatpush1.bf16.msra.mxu0 0
    %2922 = vmatprep.subr.bf16.mxu0 0
    %2923 = vmatpush1.bf16.msra.mxu0 0
    %2924 = vmatprep.subr.bf16.mxu0 0
    %2925 = vmatpush1.bf16.msra.mxu0 0
    %2926 = vmatprep.subr.bf16.mxu0 0
    %2927 = vmatpush1.bf16.msra.mxu0 0
    %2928 = vmatprep.mubr.bf16.mxu0 0
    %2929 = vmatmul.mubr.bf16.gmra.mrb[0].mxu0 %v2873
    %v2930 = vpop.f32.mrb[0].mxu0
    %v2931 = vadd.f32 %v2786, %v2930
    %v2932 = vpop.f32.mrb[0].mxu0
    %v2933 = vpop.f32.mrb[0].mxu0
    %v2934 = vadd.f32 %v2789, %v2933
    %v2935 = vpop.f32.mrb[0].mxu0
    %2936 = vmatprep.mubr.bf16.mxu0 0
    %2937 = vmatmul.mubr.bf16.gmra.mrb[0].mxu0 %v2876
    %v2938 = vpop.f32.mrb[0].mxu0
    %v2939 = vadd.f32 %v2794, %v2938
    %v2940 = vpop.f32.mrb[0].mxu0
    %v2941 = vpop.f32.mrb[0].mxu0
    %v2942 = vadd.f32 %v2797, %v2941
    %v2943 = vpop.f32.mrb[0].mxu0
    %2944 = vmatprep.mubr.bf16.mxu0 0
    %2945 = vmatmul.mubr.bf16.gmra.mrb[0].mxu0 %v2879
    %v2946 = vpop.f32.mrb[0].mxu0
    %v2947 = vadd.f32 %v2802, %v2946
    %v2948 = vpop.f32.mrb[0].mxu0
    %v2949 = vpop.f32.mrb[0].mxu0
    %v2950 = vadd.f32 %v2805, %v2949
    %v2951 = vpop.f32.mrb[0].mxu0
    %2952 = vmatprep.mubr.bf16.mxu0 0
    %2953 = vmatmul.mubr.bf16.gmra.mrb[0].mxu0 %v2882
    %v2954 = vpop.f32.mrb[0].mxu0
    %v2955 = vadd.f32 %v2810, %v2954
    %v2956 = vpop.f32.mrb[0].mxu0
    %v2957 = vpop.f32.mrb[0].mxu0
    %v2958 = vadd.f32 %v2813, %v2957
    %v2959 = vpop.f32.mrb[0].mxu0
    %2960 = vmatprep.mubr.bf16.mxu0 0
    %2961 = vmatmul.mubr.bf16.gmra.mrb[0].mxu0 %v2885
    %v2962 = vpop.f32.mrb[0].mxu0
    %v2963 = vadd.f32 %v2818, %v2962
    %v2964 = vpop.f32.mrb[0].mxu0
    %v2965 = vpop.f32.mrb[0].mxu0
    %v2966 = vadd.f32 %v2821, %v2965
    %v2967 = vpop.f32.mrb[0].mxu0
    %2968 = vmatprep.mubr.bf16.mxu0 0
    %2969 = vmatmul.mubr.bf16.gmra.mrb[0].mxu0 %v2888
    %v2970 = vpop.f32.mrb[0].mxu0
    %v2971 = vadd.f32 %v2826, %v2970
    %v2972 = vpop.f32.mrb[0].mxu0
    %v2973 = vpop.f32.mrb[0].mxu0
    %v2974 = vadd.f32 %v2829, %v2973
    %v2975 = vpop.f32.mrb[0].mxu0
    %2976 = vmatprep.mubr.bf16.mxu0 0
    %2977 = vmatmul.mubr.bf16.gmra.mrb[0].mxu0 %v2891
    %v2978 = vpop.f32.mrb[0].mxu0
    %v2979 = vadd.f32 %v2834, %v2978
    %v2980 = vpop.f32.mrb[0].mxu0
    %v2981 = vpop.f32.mrb[0].mxu0
    %v2982 = vadd.f32 %v2837, %v2981
    %v2983 = vpop.f32.mrb[0].mxu0
    %2984 = vmatprep.mubr.bf16.mxu0 0
    %2985 = vmatmul.mubr.bf16.gmra.mrb[0].mxu0 %v2894
    %v2986 = vpop.f32.mrb[0].mxu0
    %v2987 = vadd.f32 %v2842, %v2986
    %v2988 = vpop.f32.mrb[0].mxu0
    %v2989 = vpop.f32.mrb[0].mxu0
    %v2990 = vadd.f32 %v2845, %v2989
    %v2991 = vpop.f32.mrb[0].mxu0
    %2992 = vdwg.mxu0
    %v2993 = vld [vmem:[%s14] sm:$0x1]
    %v2995 = vlaneseq
    %v2996 = vshrl.u32 %v2995, 7
    %v2997 = vsub.s32 0, %v2996
    %v2998 = vrot.slane %v2993, %v2997
    %v3000 = vadd.f32 %v2931, %v2998
    %v3001 = vadd.f32 %v2934, %v2998
    %v3002 = vadd.f32 %v2939, %v2998
    %v3003 = vadd.f32 %v2942, %v2998
    %v3004 = vadd.f32 %v2947, %v2998
    %v3005 = vadd.f32 %v2950, %v2998
    %v3006 = vadd.f32 %v2955, %v2998
    %v3007 = vadd.f32 %v2958, %v2998
    %v3008 = vadd.f32 %v2963, %v2998
    %v3009 = vadd.f32 %v2966, %v2998
    %v3010 = vadd.f32 %v2971, %v2998
    %v3011 = vadd.f32 %v2974, %v2998
    %v3012 = vadd.f32 %v2979, %v2998
    %v3013 = vadd.f32 %v2982, %v2998
    %v3014 = vadd.f32 %v2987, %v2998
    %v3015 = vadd.f32 %v2990, %v2998
    %v3016 = vxor.u32 %v3000, 2147483648
    %v3017 = vxor.u32 %v3001, 2147483648
    %v3018 = vxor.u32 %v3002, 2147483648
    %v3019 = vxor.u32 %v3003, 2147483648
    %v3020 = vxor.u32 %v3004, 2147483648
    %v3021 = vxor.u32 %v3005, 2147483648
    %v3022 = vxor.u32 %v3006, 2147483648
    %v3023 = vxor.u32 %v3007, 2147483648
    %v3024 = vxor.u32 %v3008, 2147483648
    %v3025 = vxor.u32 %v3009, 2147483648
    %v3026 = vxor.u32 %v3010, 2147483648
    %v3027 = vxor.u32 %v3011, 2147483648
    %v3028 = vxor.u32 %v3012, 2147483648
    %v3029 = vxor.u32 %v3013, 2147483648
    %v3030 = vxor.u32 %v3014, 2147483648
    %v3031 = vxor.u32 %v3015, 2147483648
    %v3032 = vmul.f32 %v3016, 1.442695
    %v3033 = vpow.pop %v3032
    %v3034 = vmul.f32 %v3017, 1.442695
    %v3035 = vpow.pop %v3034
    %v3036 = vmul.f32 %v3018, 1.442695
    %v3037 = vpow.pop %v3036
    %v3038 = vmul.f32 %v3019, 1.442695
    %v3039 = vpow.pop %v3038
    %v3040 = vmul.f32 %v3020, 1.442695
    %v3041 = vpow.pop %v3040
    %v3042 = vmul.f32 %v3021, 1.442695
    %v3043 = vpow.pop %v3042
    %v3044 = vmul.f32 %v3022, 1.442695
    %v3045 = vpow.pop %v3044
    %v3046 = vmul.f32 %v3023, 1.442695
    %v3047 = vpow.pop %v3046
    %v3048 = vmul.f32 %v3024, 1.442695
    %v3049 = vpow.pop %v3048
    %v3050 = vmul.f32 %v3025, 1.442695
    %v3051 = vpow.pop %v3050
    %v3052 = vmul.f32 %v3026, 1.442695
    %v3053 = vpow.pop %v3052
    %v3054 = vmul.f32 %v3027, 1.442695
    %v3055 = vpow.pop %v3054
    %v3056 = vmul.f32 %v3028, 1.442695
    %v3057 = vpow.pop %v3056
    %v3058 = vmul.f32 %v3029, 1.442695
    %v3059 = vpow.pop %v3058
    %v3060 = vmul.f32 %v3030, 1.442695
    %v3061 = vpow.pop %v3060
    %v3062 = vmul.f32 %v3031, 1.442695
    %v3063 = vpow.pop %v3062
    %v3064 = vadd.f32 %v3033, 1.0
    %v3065 = vadd.f32 %v3035, 1.0
    %v3066 = vadd.f32 %v3037, 1.0
    %v3067 = vadd.f32 %v3039, 1.0
    %v3068 = vadd.f32 %v3041, 1.0
    %v3069 = vadd.f32 %v3043, 1.0
    %v3070 = vadd.f32 %v3045, 1.0
    %v3071 = vadd.f32 %v3047, 1.0
    %v3072 = vadd.f32 %v3049, 1.0
    %v3073 = vadd.f32 %v3051, 1.0
    %v3074 = vadd.f32 %v3053, 1.0
    %v3075 = vadd.f32 %v3055, 1.0
    %v3076 = vadd.f32 %v3057, 1.0
    %v3077 = vadd.f32 %v3059, 1.0
    %v3078 = vadd.f32 %v3061, 1.0
    %v3079 = vadd.f32 %v3063, 1.0
    %v3080 = vrcp.pop %v3064
    %v3081 = vmul.f32 1.0, %v3080
    %v3082 = vrcp.pop %v3065
    %v3083 = vmul.f32 1.0, %v3082
    %v3084 = vrcp.pop %v3066
    %v3085 = vmul.f32 1.0, %v3084
    %v3086 = vrcp.pop %v3067
    %v3087 = vmul.f32 1.0, %v3086
    %v3088 = vrcp.pop %v3068
    %v3089 = vmul.f32 1.0, %v3088
    %v3090 = vrcp.pop %v3069
    %v3091 = vmul.f32 1.0, %v3090
    %v3092 = vrcp.pop %v3070
    %v3093 = vmul.f32 1.0, %v3092
    %v3094 = vrcp.pop %v3071
    %v3095 = vmul.f32 1.0, %v3094
    %v3096 = vrcp.pop %v3072
    %v3097 = vmul.f32 1.0, %v3096
    %v3098 = vrcp.pop %v3073
    %v3099 = vmul.f32 1.0, %v3098
    %v3100 = vrcp.pop %v3074
    %v3101 = vmul.f32 1.0, %v3100
    %v3102 = vrcp.pop %v3075
    %v3103 = vmul.f32 1.0, %v3102
    %v3104 = vrcp.pop %v3076
    %v3105 = vmul.f32 1.0, %v3104
    %v3106 = vrcp.pop %v3077
    %v3107 = vmul.f32 1.0, %v3106
    %v3108 = vrcp.pop %v3078
    %v3109 = vmul.f32 1.0, %v3108
    %v3110 = vrcp.pop %v3079
    %v3111 = vmul.f32 1.0, %v3110
    %v3112 = vmul.f32 %v3000, %v3081
    %v3113 = vmul.f32 %v3001, %v3083
    %v3114 = vmul.f32 %v3002, %v3085
    %v3115 = vmul.f32 %v3003, %v3087
    %v3116 = vmul.f32 %v3004, %v3089
    %v3117 = vmul.f32 %v3005, %v3091
    %v3118 = vmul.f32 %v3006, %v3093
    %v3119 = vmul.f32 %v3007, %v3095
    %v3120 = vmul.f32 %v3008, %v3097
    %v3121 = vmul.f32 %v3009, %v3099
    %v3122 = vmul.f32 %v3010, %v3101
    %v3123 = vmul.f32 %v3011, %v3103
    %v3124 = vmul.f32 %v3012, %v3105
    %v3125 = vmul.f32 %v3013, %v3107
    %v3126 = vmul.f32 %v3014, %v3109
    %v3127 = vmul.f32 %v3015, %v3111
    %3128 = vxpose.xlu0.b32.start [1/16] %v3112, 128
    %3129 = vxpose.xlu0.b32.cont [2/16] %v3113, 128
    %3130 = vxpose.xlu0.b32.cont [3/16] %v3114, 128
    %3131 = vxpose.xlu0.b32.cont [4/16] %v3115, 128
    %3132 = vxpose.xlu0.b32.cont [5/16] %v3116, 128
    %3133 = vxpose.xlu0.b32.cont [6/16] %v3117, 128
    %3134 = vxpose.xlu0.b32.cont [7/16] %v3118, 128
    %3135 = vxpose.xlu0.b32.cont [8/16] %v3119, 128
    %3136 = vxpose.xlu0.b32.cont [9/16] 0.0, 128
    %3137 = vxpose.xlu0.b32.cont [10/16] 0.0, 128
    %3138 = vxpose.xlu0.b32.cont [11/16] 0.0, 128
    %3139 = vxpose.xlu0.b32.cont [12/16] 0.0, 128
    %3140 = vxpose.xlu0.b32.cont [13/16] 0.0, 128
    %3141 = vxpose.xlu0.b32.cont [14/16] 0.0, 128
    %3142 = vxpose.xlu0.b32.cont [15/16] 0.0, 128
    %3143 = vxpose.xlu0.b32.end [16/16] 0.0, 128
    %v3144 = vpop.trf.xlu0
    %v3145 = vpop.trf.xlu0
    %v3146 = vpop.trf.xlu0
    %v3147 = vpop.trf.xlu0
    %v3148 = vpop.trf.xlu0
    %v3149 = vpop.trf.xlu0
    %v3150 = vpop.trf.xlu0
    %v3151 = vpop.trf.xlu0
    %v3152 = vpop.trf.xlu0
    %v3153 = vpop.trf.xlu0
    %v3154 = vpop.trf.xlu0
    %v3155 = vpop.trf.xlu0
    %v3156 = vpop.trf.xlu0
    %v3157 = vpop.trf.xlu0
    %v3158 = vpop.trf.xlu0
    %v3159 = vpop.trf.xlu0
    %3160 = vxpose.xlu0.b32.start [1/16] %v3120, 128
    %3161 = vxpose.xlu0.b32.cont [2/16] %v3121, 128
    %3162 = vxpose.xlu0.b32.cont [3/16] %v3122, 128
    %3163 = vxpose.xlu0.b32.cont [4/16] %v3123, 128
    %3164 = vxpose.xlu0.b32.cont [5/16] %v3124, 128
    %3165 = vxpose.xlu0.b32.cont [6/16] %v3125, 128
    %3166 = vxpose.xlu0.b32.cont [7/16] %v3126, 128
    %3167 = vxpose.xlu0.b32.cont [8/16] %v3127, 128
    %3168 = vxpose.xlu0.b32.cont [9/16] 0.0, 128
    %3169 = vxpose.xlu0.b32.cont [10/16] 0.0, 128
    %3170 = vxpose.xlu0.b32.cont [11/16] 0.0, 128
    %3171 = vxpose.xlu0.b32.cont [12/16] 0.0, 128
    %3172 = vxpose.xlu0.b32.cont [13/16] 0.0, 128
    %3173 = vxpose.xlu0.b32.cont [14/16] 0.0, 128
    %3174 = vxpose.xlu0.b32.cont [15/16] 0.0, 128
    %3175 = vxpose.xlu0.b32.end [16/16] 0.0, 128
    %v3176 = vpop.trf.xlu0
    %v3177 = vpop.trf.xlu0
    %v3178 = vpop.trf.xlu0
    %v3179 = vpop.trf.xlu0
    %v3180 = vpop.trf.xlu0
    %v3181 = vpop.trf.xlu0
    %v3182 = vpop.trf.xlu0
    %v3183 = vpop.trf.xlu0
    %v3184 = vpop.trf.xlu0
    %v3185 = vpop.trf.xlu0
    %v3186 = vpop.trf.xlu0
    %v3187 = vpop.trf.xlu0
    %v3188 = vpop.trf.xlu0
    %v3189 = vpop.trf.xlu0
    %v3190 = vpop.trf.xlu0
    %v3191 = vpop.trf.xlu0
    %3192 = vst.msk [vmem:[%s15] sm:$0xff] %vm520, %v3144
    %3193 = vst.msk [vmem:[%s15 + $0x8] sm:$0xff] %vm520, %v3145
    %3194 = vst.msk [vmem:[%s15 + $0x10] sm:$0xff] %vm520, %v3146
    %3195 = vst.msk [vmem:[%s15 + $0x18] sm:$0xff] %vm520, %v3147
    %3196 = vst.msk [vmem:[%s15 + $0x20] sm:$0xff] %vm520, %v3148
    %3197 = vst.msk [vmem:[%s15 + $0x28] sm:$0xff] %vm520, %v3149
    %3198 = vst.msk [vmem:[%s15 + $0x30] sm:$0xff] %vm520, %v3150
    %3199 = vst.msk [vmem:[%s15 + $0x38] sm:$0xff] %vm520, %v3151
    %3200 = vst.msk [vmem:[%s15 + $0x40] sm:$0xff] %vm520, %v3152
    %3201 = vst.msk [vmem:[%s15 + $0x48] sm:$0xff] %vm520, %v3153
    %3202 = vst.msk [vmem:[%s15 + $0x50] sm:$0xff] %vm520, %v3154
    %3203 = vst.msk [vmem:[%s15 + $0x58] sm:$0xff] %vm520, %v3155
    %3204 = vst.msk [vmem:[%s15 + $0x60] sm:$0xff] %vm520, %v3156
    %3205 = vst.msk [vmem:[%s15 + $0x68] sm:$0xff] %vm520, %v3157
    %3206 = vst.msk [vmem:[%s15 + $0x70] sm:$0xff] %vm520, %v3158
    %3207 = vst.msk [vmem:[%s15 + $0x78] sm:$0xff] %vm520, %v3159
    %3208 = vst.msk [vmem:[%s15 + $0x80] sm:$0xff] %vm520, %v3176
    %3209 = vst.msk [vmem:[%s15 + $0x88] sm:$0xff] %vm520, %v3177
    %3210 = vst.msk [vmem:[%s15 + $0x90] sm:$0xff] %vm520, %v3178
    %3211 = vst.msk [vmem:[%s15 + $0x98] sm:$0xff] %vm520, %v3179
    %3212 = vst.msk [vmem:[%s15 + $0xa0] sm:$0xff] %vm520, %v3180
    %3213 = vst.msk [vmem:[%s15 + $0xa8] sm:$0xff] %vm520, %v3181
    %3214 = vst.msk [vmem:[%s15 + $0xb0] sm:$0xff] %vm520, %v3182
    %3215 = vst.msk [vmem:[%s15 + $0xb8] sm:$0xff] %vm520, %v3183
    %3216 = vst.msk [vmem:[%s15 + $0xc0] sm:$0xff] %vm520, %v3184
    %3217 = vst.msk [vmem:[%s15 + $0xc8] sm:$0xff] %vm520, %v3185
    %3218 = vst.msk [vmem:[%s15 + $0xd0] sm:$0xff] %vm520, %v3186
    %3219 = vst.msk [vmem:[%s15 + $0xd8] sm:$0xff] %vm520, %v3187
    %3220 = vst.msk [vmem:[%s15 + $0xe0] sm:$0xff] %vm520, %v3188
    %3221 = vst.msk [vmem:[%s15 + $0xe8] sm:$0xff] %vm520, %v3189
    %3222 = vst.msk [vmem:[%s15 + $0xf0] sm:$0xff] %vm520, %v3190
    %3223 = vst.msk [vmem:[%s15 + $0xf8] sm:$0xff] %vm520, %v3191
    // Predicated region
    $region66: #{_psa_forward_impl.1} parent=1 // pred_check
      _
    $region67: #{_psa_forward_impl.1} parent=1 // pred_check_branch
      %3225 = sbr.rel (0) target = $region69
    $region68: #{_psa_forward_impl.1} parent=1 // pred_region
      _
    $region69: #{_psa_forward_impl.1} parent=1 // pred_fallthru
      _
    // Predicated region
    $region70: #{_psa_forward_impl.1} parent=1 // pred_check
      _
    $region71: #{_psa_forward_impl.1} parent=1 // pred_check_branch
      %3227 = sbr.rel (0) target = $region73
    $region72: #{_psa_forward_impl.1} parent=1 // pred_region
      _
    $region73: #{_psa_forward_impl.1} parent=1 // pred_fallthru
      _
    %3228 = vsyncpa [#allocation3], 1

</llo_original>
